<compile_context>
chip_gen: v6e
topology: v6e:2x2x1
jax: 0.10.0
libtpu: 0.0.40
codegen_flags: <defaults>
</compile_context>

<pallas_src>
import functools
import math

import jax
import jax.numpy as jnp
from jax.experimental import pallas as pl
from jax.experimental.pallas import tpu as pltpu


# ---------------------------------------------------------------------------
# kernels
# ---------------------------------------------------------------------------
def _encoder_layer_kernel(*refs, nhead, eps, has_mask, fuse_final_norm):
    refs = list(refs)
    idx = 0

    def nxt():
        nonlocal idx
        r = refs[idx]
        idx += 1
        return r

    xq_ref = nxt()                      # (1, TQ, E) query rows (residual stream)
    xf_ref = nxt()                      # (1, S,  E) full sequence (K/V source)
    mask_ref = nxt() if has_mask else None   # (TQ, S) additive float mask
    wq_ref = nxt(); bq_ref = nxt()           # (E, E) bf16 (scale folded), (1, E) f32
    wkv_ref = nxt(); bkv_ref = nxt()         # (E, 2E) bf16, (1, 2E) f32
    wo_ref = nxt(); bo_ref = nxt()           # (E, E) bf16, (1, E) f32
    w1_ref = nxt(); b1_ref = nxt()           # (E, F) bf16, (1, F) f32
    w2_ref = nxt(); b2_ref = nxt()           # (F, E) bf16, (1, E) f32
    g1_ref = nxt(); be1_ref = nxt()          # LayerNorm 1
    g2_ref = nxt(); be2_ref = nxt()          # LayerNorm 2
    if fuse_final_norm:
        gf_ref = nxt(); bf_ref = nxt()       # final CRE-level LayerNorm
    out_ref = nxt()
    assert idx == len(refs)

    TQ = xq_ref.shape[1]
    S = xf_ref.shape[1]
    E = xq_ref.shape[2]
    hd = E // nhead

    xq = xq_ref[0]                           # (TQ, E) f32 residual stream
    xf = xf_ref[0]                           # (S,  E) f32
    xq_b = xq.astype(jnp.bfloat16)
    xf_b = xf.astype(jnp.bfloat16)

    # --- projections (MXU, bf16 operands, f32 accumulate) ---
    # 1/sqrt(hd) is already folded into wq / bq at parameter-prep time.
    q = jnp.dot(xq_b, wq_ref[...], preferred_element_type=jnp.float32) + bq_ref[0]
    kv = jnp.dot(xf_b, wkv_ref[...], preferred_element_type=jnp.float32) + bkv_ref[0]
    k = kv[:, :E]
    v = kv[:, E:]

    q_b = q.astype(jnp.bfloat16)
    k_b = k.astype(jnp.bfloat16)
    v_b = v.astype(jnp.bfloat16)

    if has_mask:
        mask = mask_ref[...]

    # Contract last dims directly (q @ k^T without materializing k^T).
    dn_qk = (((1,), (1,)), ((), ()))

    # Accumulate the output projection per head -> lane-dense (TQ, E); no concat.
    attn_proj = jnp.zeros((TQ, E), jnp.float32)
    for h in range(nhead):                   # static loop over heads
        sl = slice(h * hd, (h + 1) * hd)
        s = jax.lax.dot_general(q_b[:, sl], k_b[:, sl], dn_qk,
                                preferred_element_type=jnp.float32)   # (TQ, S)
        if has_mask:
            s = s + mask
        s = s - jnp.max(s, axis=-1, keepdims=True)
        p = jnp.exp(s)
        p = p * pl.reciprocal(jnp.sum(p, axis=-1, keepdims=True), approx=True)
        o_h = jnp.dot(p.astype(jnp.bfloat16), v_b[:, sl],
                      preferred_element_type=jnp.float32)             # (TQ, hd)
        attn_proj = attn_proj + jnp.dot(
            o_h.astype(jnp.bfloat16), wo_ref[sl, :],
            preferred_element_type=jnp.float32)                       # (TQ, E)
    attn_proj = attn_proj + bo_ref[0]

    def layer_norm(y, g, b):
        mu = jnp.mean(y, axis=-1, keepdims=True)
        var = jnp.mean((y - mu) ** 2, axis=-1, keepdims=True)
        return (y - mu) * jax.lax.rsqrt(var + eps) * g + b

    # residual + norm1
    x1 = layer_norm(xq + attn_proj, g1_ref[0], be1_ref[0])

    # --- feed-forward (ReLU), bf16 matmuls / f32 accumulate ---
    h1 = jnp.dot(x1.astype(jnp.bfloat16), w1_ref[...],
                 preferred_element_type=jnp.float32) + b1_ref[0]
    h1 = jnp.maximum(h1, 0.0)
    ff = jnp.dot(h1.astype(jnp.bfloat16), w2_ref[...],
                 preferred_element_type=jnp.float32) + b2_ref[0]

    # residual + norm2 (+ optional fused final CRE LayerNorm)
    y = layer_norm(x1 + ff, g2_ref[0], be2_ref[0])
    if fuse_final_norm:
        y = layer_norm(y, gf_ref[0], bf_ref[0])
    out_ref[0] = y


def _final_norm_kernel(x_ref, g_ref, b_ref, out_ref, *, eps):
    # Only used when there are zero encoder layers (otherwise fused above).
    x = x_ref[0]
    mu = jnp.mean(x, axis=-1, keepdims=True)
    var = jnp.mean((x - mu) ** 2, axis=-1, keepdims=True)
    out_ref[0] = (x - mu) * jax.lax.rsqrt(var + eps) * g_ref[0] + b_ref[0]


# ---------------------------------------------------------------------------
# wrappers
# ---------------------------------------------------------------------------
_VMEM_LIMIT = 64 * 1024 * 1024          # safe on v5e/v6e (128 MiB) and v7x (64 MiB)


def _choose_q_tile(S, max_tile=512):
    """Query-tile length: multiple of 8 dividing S (or S itself when small)."""
    if S <= max_tile:
        return S
    for t in range(max_tile, 7, -1):
        if S % t == 0 and t % 8 == 0:
            return t
    return S


_SINGLE_BUFFER_OK = [True]              # cached capability flag for pl.Buffered(1)


def _run_layer_impl(x_bse, mask, p, nhead, final_norm, single_buffer_consts):
    B, S, E = x_bse.shape
    F = p["w1"].shape[1]
    TQ = _choose_q_tile(S)
    nq = S // TQ
    has_mask = mask is not None
    fuse_final = final_norm is not None

    def const_spec(shape):
        # Constant-index operand (weights / biases / LN params): index_map is
        # always zeros, so double buffering is pure VMEM waste -> Buffered(1).
        zeros = (0,) * len(shape)
        if single_buffer_consts:
            return pl.BlockSpec(shape, lambda b, qi: zeros,
                                pipeline_mode=pl.Buffered(1))
        return pl.BlockSpec(shape, lambda b, qi: zeros)

    in_specs = [
        pl.BlockSpec((1, TQ, E), lambda b, qi: (b, qi, 0)),   # x query tile
        pl.BlockSpec((1, S, E), lambda b, qi: (b, 0, 0)),     # x full (K/V source)
    ]
    args = [x_bse, x_bse]
    if has_mask:
        in_specs.append(pl.BlockSpec((TQ, S), lambda b, qi: (qi, 0)))
        args.append(mask)
    for name, shape in [("wq", (E, E)), ("bq", (1, E)),
                        ("wkv", (E, 2 * E)), ("bkv", (1, 2 * E)),
                        ("wo", (E, E)), ("bo", (1, E)),
                        ("w1", (E, F)), ("b1", (1, F)),
                        ("w2", (F, E)), ("b2", (1, E)),
                        ("g1", (1, E)), ("be1", (1, E)),
                        ("g2", (1, E)), ("be2", (1, E))]:
        in_specs.append(const_spec(shape))
        args.append(p[name])
    if fuse_final:
        in_specs.append(const_spec((1, E)))
        args.append(final_norm["g"].astype(jnp.float32))
        in_specs.append(const_spec((1, E)))
        args.append(final_norm["b"].astype(jnp.float32))

    kernel = functools.partial(_encoder_layer_kernel, nhead=nhead, eps=1e-5,
                               has_mask=has_mask, fuse_final_norm=fuse_final)
    return pl.pallas_call(
        kernel,
        out_shape=jax.ShapeDtypeStruct((B, S, E), jnp.float32),
        grid=(B, nq),
        in_specs=in_specs,
        out_specs=pl.BlockSpec((1, TQ, E), lambda b, qi: (b, qi, 0)),
        compiler_params=pltpu.CompilerParams(
            dimension_semantics=("parallel", "parallel"),
            vmem_limit_bytes=_VMEM_LIMIT),
    )(*args)


def _run_layer(x_bse, mask, p, nhead, final_norm=None):
    if _SINGLE_BUFFER_OK[0]:
        try:
            return _run_layer_impl(x_bse, mask, p, nhead, final_norm, True)
        except Exception:
            _SINGLE_BUFFER_OK[0] = False   # pipeline_mode=Buffered(1) unsupported
    return _run_layer_impl(x_bse, mask, p, nhead, final_norm, False)


def _prep_layer_params(p, nhead):
    """Split QKV, fold 1/sqrt(hd) into Q weights/bias, cast weights to bf16."""
    E = p["wo"].shape[0]
    hd = E // nhead
    scale = 1.0 / math.sqrt(hd)
    wqkv, bqkv = p["wqkv"], p["bqkv"]
    return {
        "wq": (wqkv[:, :E] * scale).astype(jnp.bfloat16),
        "bq": (bqkv[:, :E] * scale).astype(jnp.float32),
        "wkv": wqkv[:, E:].astype(jnp.bfloat16),
        "bkv": bqkv[:, E:].astype(jnp.float32),
        "wo": p["wo"].astype(jnp.bfloat16),
        "bo": p["bo"].astype(jnp.float32),
        "w1": p["w1"].astype(jnp.bfloat16),
        "b1": p["b1"].astype(jnp.float32),
        "w2": p["w2"].astype(jnp.bfloat16),
        "b2": p["b2"].astype(jnp.float32),
        "g1": p["g1"].astype(jnp.float32), "be1": p["be1"].astype(jnp.float32),
        "g2": p["g2"].astype(jnp.float32), "be2": p["be2"].astype(jnp.float32),
    }


def cre_forward(src_sbe, layer_params, mask=None, norm_params=None, *, nhead):
    """CRE.forward.  src_sbe: (S, B, E) PyTorch layout; returns (S, B, E)."""
    S, B, E = src_sbe.shape
    x = jnp.transpose(src_sbe, (1, 0, 2)).astype(jnp.float32)     # -> (B, S, E)
    if mask is not None:
        mask = mask.astype(jnp.float32)
    # TODO(synk): src_key_padding_mask is not implemented (would fold into a
    # per-batch additive mask passed to the kernel).

    prepped = [_prep_layer_params(p, nhead) for p in layer_params]
    n = len(prepped)
    for i, p in enumerate(prepped):
        fuse = norm_params if (norm_params is not None and i == n - 1) else None
        x = _run_layer(x, mask, p, nhead, final_norm=fuse)

    if norm_params is not None and n == 0:
        x = pl.pallas_call(
            functools.partial(_final_norm_kernel, eps=1e-5),
            out_shape=jax.ShapeDtypeStruct((B, S, E), jnp.float32),
            grid=(B,),
            in_specs=[pl.BlockSpec((1, S, E), lambda b: (b, 0, 0)),
                      pl.BlockSpec((1, E), lambda b: (0, 0)),
                      pl.BlockSpec((1, E), lambda b: (0, 0))],
            out_specs=pl.BlockSpec((1, S, E), lambda b: (b, 0, 0)),
            compiler_params=pltpu.CompilerParams(
                dimension_semantics=("parallel",),
                vmem_limit_bytes=_VMEM_LIMIT),
        )(x, norm_params["g"].astype(jnp.float32),
          norm_params["b"].astype(jnp.float32))

    return jnp.transpose(x, (1, 0, 2))                            # back to (S, B, E)


def init_encoder_layer_params(key, d_model, dim_feedforward):
    ks = jax.random.split(key, 4)

    def xavier(k, shape):
        bound = math.sqrt(6.0 / (shape[0] + shape[1]))
        return jax.random.uniform(k, shape, jnp.float32, -bound, bound)

    # weights stored pre-transposed to (in, out)
    return {
        "wqkv": xavier(ks[0], (d_model, 3 * d_model)),
        "bqkv": jnp.zeros((1, 3 * d_model), jnp.float32),
        "wo":   xavier(ks[1], (d_model, d_model)),
        "bo":   jnp.zeros((1, d_model), jnp.float32),
        "w1":   xavier(ks[2], (d_model, dim_feedforward)),
        "b1":   jnp.zeros((1, dim_feedforward), jnp.float32),
        "w2":   xavier(ks[3], (dim_feedforward, d_model)),
        "b2":   jnp.zeros((1, d_model), jnp.float32),
        "g1":   jnp.ones((1, d_model), jnp.float32),
        "be1":  jnp.zeros((1, d_model), jnp.float32),
        "g2":   jnp.ones((1, d_model), jnp.float32),
        "be2":  jnp.zeros((1, d_model), jnp.float32),
    }


if __name__ == "__main__":
    # Small but lane-dense demo config (E multiple of 128, hd=32).
    SEQ, BATCH, D_MODEL, NHEAD, DIM_FF, NUM_LAYERS = 16, 2, 128, 4, 256, 2

    key = jax.random.PRNGKey(0)
    k_src, k_w = jax.random.split(key)
    src = jax.random.normal(k_src, (SEQ, BATCH, D_MODEL), jnp.float32)

    # _get_clones deepcopies a single initialized layer -> identical weights.
    base_params = init_encoder_layer_params(k_w, D_MODEL, DIM_FF)
    layer_params = [base_params for _ in range(NUM_LAYERS)]

    # 1) norm=None, mask=None (PyTorch defaults) -> maskless kernel variant.
    out = cre_forward(src, layer_params, mask=None, norm_params=None, nhead=NHEAD)
    jax.block_until_ready(out)
    assert out.shape == (SEQ, BATCH, D_MODEL)
    assert bool(jnp.all(jnp.isfinite(out)))

    # 2) causal additive mask + final LayerNorm (fused into the last layer).
    causal = jnp.where(jnp.arange(SEQ)[:, None] >= jnp.arange(SEQ)[None, :],
                       0.0, -1e9).astype(jnp.float32)
    norm_params = {"g": jnp.ones((1, D_MODEL), jnp.float32),
                   "b": jnp.zeros((1, D_MODEL), jnp.float32)}
    out2 = cre_forward(src, layer_params, mask=causal, norm_params=norm_params,
                       nhead=NHEAD)
    jax.block_until_ready(out2)
    assert out2.shape == (SEQ, BATCH, D_MODEL)
    assert bool(jnp.all(jnp.isfinite(out2)))

    print("KERNEL_OK")
</pallas_src>

<mosaic_0001>
module attributes {stable_mosaic.version = 11 : i64} {
  func.func @_encoder_layer_kernel(%arg0: i32, %arg1: i32, %arg2: memref<1x16x128xf32, #tpu.memory_space<vmem>>, %arg3: memref<1x16x128xf32, #tpu.memory_space<vmem>>, %arg4: memref<128x128xbf16, #tpu.memory_space<vmem>>, %arg5: memref<1x128xf32, #tpu.memory_space<vmem>>, %arg6: memref<128x256xbf16, #tpu.memory_space<vmem>>, %arg7: memref<1x256xf32, #tpu.memory_space<vmem>>, %arg8: memref<128x128xbf16, #tpu.memory_space<vmem>>, %arg9: memref<1x128xf32, #tpu.memory_space<vmem>>, %arg10: memref<128x256xbf16, #tpu.memory_space<vmem>>, %arg11: memref<1x256xf32, #tpu.memory_space<vmem>>, %arg12: memref<256x128xbf16, #tpu.memory_space<vmem>>, %arg13: memref<1x128xf32, #tpu.memory_space<vmem>>, %arg14: memref<1x128xf32, #tpu.memory_space<vmem>>, %arg15: memref<1x128xf32, #tpu.memory_space<vmem>>, %arg16: memref<1x128xf32, #tpu.memory_space<vmem>>, %arg17: memref<1x128xf32, #tpu.memory_space<vmem>>, %arg18: memref<1x16x128xf32, #tpu.memory_space<vmem>>) attributes {dimension_semantics = [#tpu.dimension_semantics<parallel>, #tpu.dimension_semantics<parallel>], iteration_bounds = array<i64: 2, 1>, scalar_prefetch = 0 : i64, scratch_operands = 0 : i64, tpu.core_type = #tpu.core_type<tc>, window_params = [{transform_indices = @transform_0, window_bounds = array<i64: 1, 16, 128>}, {transform_indices = @transform_1, window_bounds = array<i64: 1, 16, 128>}, {pipeline_mode = #tpu.pipeline_mode<synchronous>, transform_indices = @transform_2, window_bounds = array<i64: 128, 128>}, {pipeline_mode = #tpu.pipeline_mode<synchronous>, transform_indices = @transform_3, window_bounds = array<i64: 1, 128>}, {pipeline_mode = #tpu.pipeline_mode<synchronous>, transform_indices = @transform_4, window_bounds = array<i64: 128, 256>}, {pipeline_mode = #tpu.pipeline_mode<synchronous>, transform_indices = @transform_5, window_bounds = array<i64: 1, 256>}, {pipeline_mode = #tpu.pipeline_mode<synchronous>, transform_indices = @transform_6, window_bounds = array<i64: 128, 128>}, {pipeline_mode = #tpu.pipeline_mode<synchronous>, transform_indices = @transform_7, window_bounds = array<i64: 1, 128>}, {pipeline_mode = #tpu.pipeline_mode<synchronous>, transform_indices = @transform_8, window_bounds = array<i64: 128, 256>}, {pipeline_mode = #tpu.pipeline_mode<synchronous>, transform_indices = @transform_9, window_bounds = array<i64: 1, 256>}, {pipeline_mode = #tpu.pipeline_mode<synchronous>, transform_indices = @transform_10, window_bounds = array<i64: 256, 128>}, {pipeline_mode = #tpu.pipeline_mode<synchronous>, transform_indices = @transform_11, window_bounds = array<i64: 1, 128>}, {pipeline_mode = #tpu.pipeline_mode<synchronous>, transform_indices = @transform_12, window_bounds = array<i64: 1, 128>}, {pipeline_mode = #tpu.pipeline_mode<synchronous>, transform_indices = @transform_13, window_bounds = array<i64: 1, 128>}, {pipeline_mode = #tpu.pipeline_mode<synchronous>, transform_indices = @transform_14, window_bounds = array<i64: 1, 128>}, {pipeline_mode = #tpu.pipeline_mode<synchronous>, transform_indices = @transform_15, window_bounds = array<i64: 1, 128>}, {transform_indices = @transform_16, window_bounds = array<i64: 1, 16, 128>}]} {
    %c0 = arith.constant 0 : index
    %c0_0 = arith.constant 0 : index
    %c0_1 = arith.constant 0 : index
    %0 = vector.load %arg2[%c0, %c0_0, %c0_1] : memref<1x16x128xf32, #tpu.memory_space<vmem>>, vector<1x16x128xf32>
    %1 = vector.shape_cast %0 : vector<1x16x128xf32> to vector<16x128xf32>
    %c0_2 = arith.constant 0 : index
    %c0_3 = arith.constant 0 : index
    %c0_4 = arith.constant 0 : index
    %2 = vector.load %arg3[%c0_2, %c0_3, %c0_4] : memref<1x16x128xf32, #tpu.memory_space<vmem>>, vector<1x16x128xf32>
    %3 = vector.shape_cast %2 : vector<1x16x128xf32> to vector<16x128xf32>
    %4 = arith.truncf %1 : vector<16x128xf32> to vector<16x128xbf16>
    %5 = arith.truncf %3 : vector<16x128xf32> to vector<16x128xbf16>
    %c0_5 = arith.constant 0 : index
    %c0_6 = arith.constant 0 : index
    %6 = vector.load %arg4[%c0_5, %c0_6] : memref<128x128xbf16, #tpu.memory_space<vmem>>, vector<128x128xbf16>
    %cst = arith.constant dense<0.000000e+00> : vector<16x128xf32>
    %7 = tpu.matmul %4, %6, %cst {dimension_numbers = #tpu.dot_dimension_numbers<[1], [0], [0], [1], [0, 0, 1, 1], [], []>} : vector<16x128xbf16>, vector<128x128xbf16>, vector<16x128xf32> -> vector<16x128xf32>
    %c0_7 = arith.constant 0 : index
    %c0_8 = arith.constant 0 : index
    %8 = vector.load %arg5[%c0_7, %c0_8] : memref<1x128xf32, #tpu.memory_space<vmem>>, vector<1x128xf32>
    %9 = vector.shape_cast %8 : vector<1x128xf32> to vector<128xf32>
    %10 = vector.shape_cast %9 : vector<128xf32> to vector<1x128xf32>
    %11 = vector.broadcast %10 : vector<1x128xf32> to vector<16x128xf32>
    %12 = arith.addf %7, %11 : vector<16x128xf32>
    %c0_9 = arith.constant 0 : index
    %c0_10 = arith.constant 0 : index
    %13 = vector.load %arg6[%c0_9, %c0_10] : memref<128x256xbf16, #tpu.memory_space<vmem>>, vector<128x256xbf16>
    %cst_11 = arith.constant dense<0.000000e+00> : vector<16x256xf32>
    %14 = tpu.matmul %5, %13, %cst_11 {dimension_numbers = #tpu.dot_dimension_numbers<[1], [0], [0], [1], [0, 0, 1, 1], [], []>} : vector<16x128xbf16>, vector<128x256xbf16>, vector<16x256xf32> -> vector<16x256xf32>
    %c0_12 = arith.constant 0 : index
    %c0_13 = arith.constant 0 : index
    %15 = vector.load %arg7[%c0_12, %c0_13] : memref<1x256xf32, #tpu.memory_space<vmem>>, vector<1x256xf32>
    %16 = vector.shape_cast %15 : vector<1x256xf32> to vector<256xf32>
    %17 = vector.shape_cast %16 : vector<256xf32> to vector<1x256xf32>
    %18 = vector.broadcast %17 : vector<1x256xf32> to vector<16x256xf32>
    %19 = arith.addf %14, %18 : vector<16x256xf32>
    %20 = vector.extract_strided_slice %19 {offsets = [0, 0], sizes = [16, 128], strides = [1, 1]} : vector<16x256xf32> to vector<16x128xf32>
    %21 = vector.extract_strided_slice %19 {offsets = [0, 128], sizes = [16, 128], strides = [1, 1]} : vector<16x256xf32> to vector<16x128xf32>
    %22 = arith.truncf %12 : vector<16x128xf32> to vector<16x128xbf16>
    %23 = arith.truncf %20 : vector<16x128xf32> to vector<16x128xbf16>
    %24 = arith.truncf %21 : vector<16x128xf32> to vector<16x128xbf16>
    %cst_14 = arith.constant 0.000000e+00 : f32
    %25 = vector.broadcast %cst_14 : f32 to vector<16x128xf32>
    %26 = vector.extract_strided_slice %22 {offsets = [0, 0], sizes = [16, 32], strides = [1, 1]} : vector<16x128xbf16> to vector<16x32xbf16>
    %27 = vector.extract_strided_slice %23 {offsets = [0, 0], sizes = [16, 32], strides = [1, 1]} : vector<16x128xbf16> to vector<16x32xbf16>
    %cst_15 = arith.constant dense<0.000000e+00> : vector<16x16xf32>
    %28 = tpu.matmul %26, %27, %cst_15 {dimension_numbers = #tpu.dot_dimension_numbers<[1], [1], [0], [0], [0, 0, 1, 0], [], []>} : vector<16x32xbf16>, vector<16x32xbf16>, vector<16x16xf32> -> vector<16x16xf32>
    %cst_16 = arith.constant dense<0xFF800000> : vector<16xf32>
    %29 = vector.multi_reduction <maximumf>, %28, %cst_16 [1] : vector<16x16xf32> to vector<16xf32>
    %30 = vector.shape_cast %29 : vector<16xf32> to vector<16x1xf32>
    %31 = vector.broadcast %30 : vector<16x1xf32> to vector<16x16xf32>
    %32 = arith.subf %28, %31 : vector<16x16xf32>
    %33 = math.exp %32 : vector<16x16xf32>
    %cst_17 = arith.constant dense<0.000000e+00> : vector<16xf32>
    %34 = vector.multi_reduction <add>, %33, %cst_17 [1] : vector<16x16xf32> to vector<16xf32>
    %35 = vector.shape_cast %34 : vector<16xf32> to vector<16x1xf32>
    %36 = tpu.reciprocal %35 {approx = true} : vector<16x1xf32> -> vector<16x1xf32>
    %37 = vector.broadcast %36 : vector<16x1xf32> to vector<16x16xf32>
    %38 = arith.mulf %33, %37 : vector<16x16xf32>
    %39 = arith.truncf %38 : vector<16x16xf32> to vector<16x16xbf16>
    %40 = vector.extract_strided_slice %24 {offsets = [0, 0], sizes = [16, 32], strides = [1, 1]} : vector<16x128xbf16> to vector<16x32xbf16>
    %cst_18 = arith.constant dense<0.000000e+00> : vector<16x32xf32>
    %41 = tpu.matmul %39, %40, %cst_18 {dimension_numbers = #tpu.dot_dimension_numbers<[1], [0], [0], [1], [0, 0, 1, 1], [], []>} : vector<16x16xbf16>, vector<16x32xbf16>, vector<16x32xf32> -> vector<16x32xf32>
    %42 = arith.truncf %41 : vector<16x32xf32> to vector<16x32xbf16>
    %c0_19 = arith.constant 0 : index
    %c0_20 = arith.constant 0 : index
    %43 = vector.load %arg8[%c0_19, %c0_20] : memref<128x128xbf16, #tpu.memory_space<vmem>>, vector<32x128xbf16>
    %cst_21 = arith.constant dense<0.000000e+00> : vector<16x128xf32>
    %44 = tpu.matmul %42, %43, %cst_21 {dimension_numbers = #tpu.dot_dimension_numbers<[1], [0], [0], [1], [0, 0, 1, 1], [], []>} : vector<16x32xbf16>, vector<32x128xbf16>, vector<16x128xf32> -> vector<16x128xf32>
    %45 = arith.addf %25, %44 : vector<16x128xf32>
    %46 = vector.extract_strided_slice %22 {offsets = [0, 32], sizes = [16, 32], strides = [1, 1]} : vector<16x128xbf16> to vector<16x32xbf16>
    %47 = vector.extract_strided_slice %23 {offsets = [0, 32], sizes = [16, 32], strides = [1, 1]} : vector<16x128xbf16> to vector<16x32xbf16>
    %cst_22 = arith.constant dense<0.000000e+00> : vector<16x16xf32>
    %48 = tpu.matmul %46, %47, %cst_22 {dimension_numbers = #tpu.dot_dimension_numbers<[1], [1], [0], [0], [0, 0, 1, 0], [], []>} : vector<16x32xbf16>, vector<16x32xbf16>, vector<16x16xf32> -> vector<16x16xf32>
    %cst_23 = arith.constant dense<0xFF800000> : vector<16xf32>
    %49 = vector.multi_reduction <maximumf>, %48, %cst_23 [1] : vector<16x16xf32> to vector<16xf32>
    %50 = vector.shape_cast %49 : vector<16xf32> to vector<16x1xf32>
    %51 = vector.broadcast %50 : vector<16x1xf32> to vector<16x16xf32>
    %52 = arith.subf %48, %51 : vector<16x16xf32>
    %53 = math.exp %52 : vector<16x16xf32>
    %cst_24 = arith.constant dense<0.000000e+00> : vector<16xf32>
    %54 = vector.multi_reduction <add>, %53, %cst_24 [1] : vector<16x16xf32> to vector<16xf32>
    %55 = vector.shape_cast %54 : vector<16xf32> to vector<16x1xf32>
    %56 = tpu.reciprocal %55 {approx = true} : vector<16x1xf32> -> vector<16x1xf32>
    %57 = vector.broadcast %56 : vector<16x1xf32> to vector<16x16xf32>
    %58 = arith.mulf %53, %57 : vector<16x16xf32>
    %59 = arith.truncf %58 : vector<16x16xf32> to vector<16x16xbf16>
    %60 = vector.extract_strided_slice %24 {offsets = [0, 32], sizes = [16, 32], strides = [1, 1]} : vector<16x128xbf16> to vector<16x32xbf16>
    %cst_25 = arith.constant dense<0.000000e+00> : vector<16x32xf32>
    %61 = tpu.matmul %59, %60, %cst_25 {dimension_numbers = #tpu.dot_dimension_numbers<[1], [0], [0], [1], [0, 0, 1, 1], [], []>} : vector<16x16xbf16>, vector<16x32xbf16>, vector<16x32xf32> -> vector<16x32xf32>
    %62 = arith.truncf %61 : vector<16x32xf32> to vector<16x32xbf16>
    %c32 = arith.constant 32 : index
    %c0_26 = arith.constant 0 : index
    %63 = vector.load %arg8[%c32, %c0_26] : memref<128x128xbf16, #tpu.memory_space<vmem>>, vector<32x128xbf16>
    %cst_27 = arith.constant dense<0.000000e+00> : vector<16x128xf32>
    %64 = tpu.matmul %62, %63, %cst_27 {dimension_numbers = #tpu.dot_dimension_numbers<[1], [0], [0], [1], [0, 0, 1, 1], [], []>} : vector<16x32xbf16>, vector<32x128xbf16>, vector<16x128xf32> -> vector<16x128xf32>
    %65 = arith.addf %45, %64 : vector<16x128xf32>
    %66 = vector.extract_strided_slice %22 {offsets = [0, 64], sizes = [16, 32], strides = [1, 1]} : vector<16x128xbf16> to vector<16x32xbf16>
    %67 = vector.extract_strided_slice %23 {offsets = [0, 64], sizes = [16, 32], strides = [1, 1]} : vector<16x128xbf16> to vector<16x32xbf16>
    %cst_28 = arith.constant dense<0.000000e+00> : vector<16x16xf32>
    %68 = tpu.matmul %66, %67, %cst_28 {dimension_numbers = #tpu.dot_dimension_numbers<[1], [1], [0], [0], [0, 0, 1, 0], [], []>} : vector<16x32xbf16>, vector<16x32xbf16>, vector<16x16xf32> -> vector<16x16xf32>
    %cst_29 = arith.constant dense<0xFF800000> : vector<16xf32>
    %69 = vector.multi_reduction <maximumf>, %68, %cst_29 [1] : vector<16x16xf32> to vector<16xf32>
    %70 = vector.shape_cast %69 : vector<16xf32> to vector<16x1xf32>
    %71 = vector.broadcast %70 : vector<16x1xf32> to vector<16x16xf32>
    %72 = arith.subf %68, %71 : vector<16x16xf32>
    %73 = math.exp %72 : vector<16x16xf32>
    %cst_30 = arith.constant dense<0.000000e+00> : vector<16xf32>
    %74 = vector.multi_reduction <add>, %73, %cst_30 [1] : vector<16x16xf32> to vector<16xf32>
    %75 = vector.shape_cast %74 : vector<16xf32> to vector<16x1xf32>
    %76 = tpu.reciprocal %75 {approx = true} : vector<16x1xf32> -> vector<16x1xf32>
    %77 = vector.broadcast %76 : vector<16x1xf32> to vector<16x16xf32>
    %78 = arith.mulf %73, %77 : vector<16x16xf32>
    %79 = arith.truncf %78 : vector<16x16xf32> to vector<16x16xbf16>
    %80 = vector.extract_strided_slice %24 {offsets = [0, 64], sizes = [16, 32], strides = [1, 1]} : vector<16x128xbf16> to vector<16x32xbf16>
    %cst_31 = arith.constant dense<0.000000e+00> : vector<16x32xf32>
    %81 = tpu.matmul %79, %80, %cst_31 {dimension_numbers = #tpu.dot_dimension_numbers<[1], [0], [0], [1], [0, 0, 1, 1], [], []>} : vector<16x16xbf16>, vector<16x32xbf16>, vector<16x32xf32> -> vector<16x32xf32>
    %82 = arith.truncf %81 : vector<16x32xf32> to vector<16x32xbf16>
    %c64 = arith.constant 64 : index
    %c0_32 = arith.constant 0 : index
    %83 = vector.load %arg8[%c64, %c0_32] : memref<128x128xbf16, #tpu.memory_space<vmem>>, vector<32x128xbf16>
    %cst_33 = arith.constant dense<0.000000e+00> : vector<16x128xf32>
    %84 = tpu.matmul %82, %83, %cst_33 {dimension_numbers = #tpu.dot_dimension_numbers<[1], [0], [0], [1], [0, 0, 1, 1], [], []>} : vector<16x32xbf16>, vector<32x128xbf16>, vector<16x128xf32> -> vector<16x128xf32>
    %85 = arith.addf %65, %84 : vector<16x128xf32>
    %86 = vector.extract_strided_slice %22 {offsets = [0, 96], sizes = [16, 32], strides = [1, 1]} : vector<16x128xbf16> to vector<16x32xbf16>
    %87 = vector.extract_strided_slice %23 {offsets = [0, 96], sizes = [16, 32], strides = [1, 1]} : vector<16x128xbf16> to vector<16x32xbf16>
    %cst_34 = arith.constant dense<0.000000e+00> : vector<16x16xf32>
    %88 = tpu.matmul %86, %87, %cst_34 {dimension_numbers = #tpu.dot_dimension_numbers<[1], [1], [0], [0], [0, 0, 1, 0], [], []>} : vector<16x32xbf16>, vector<16x32xbf16>, vector<16x16xf32> -> vector<16x16xf32>
    %cst_35 = arith.constant dense<0xFF800000> : vector<16xf32>
    %89 = vector.multi_reduction <maximumf>, %88, %cst_35 [1] : vector<16x16xf32> to vector<16xf32>
    %90 = vector.shape_cast %89 : vector<16xf32> to vector<16x1xf32>
    %91 = vector.broadcast %90 : vector<16x1xf32> to vector<16x16xf32>
    %92 = arith.subf %88, %91 : vector<16x16xf32>
    %93 = math.exp %92 : vector<16x16xf32>
    %cst_36 = arith.constant dense<0.000000e+00> : vector<16xf32>
    %94 = vector.multi_reduction <add>, %93, %cst_36 [1] : vector<16x16xf32> to vector<16xf32>
    %95 = vector.shape_cast %94 : vector<16xf32> to vector<16x1xf32>
    %96 = tpu.reciprocal %95 {approx = true} : vector<16x1xf32> -> vector<16x1xf32>
    %97 = vector.broadcast %96 : vector<16x1xf32> to vector<16x16xf32>
    %98 = arith.mulf %93, %97 : vector<16x16xf32>
    %99 = arith.truncf %98 : vector<16x16xf32> to vector<16x16xbf16>
    %100 = vector.extract_strided_slice %24 {offsets = [0, 96], sizes = [16, 32], strides = [1, 1]} : vector<16x128xbf16> to vector<16x32xbf16>
    %cst_37 = arith.constant dense<0.000000e+00> : vector<16x32xf32>
    %101 = tpu.matmul %99, %100, %cst_37 {dimension_numbers = #tpu.dot_dimension_numbers<[1], [0], [0], [1], [0, 0, 1, 1], [], []>} : vector<16x16xbf16>, vector<16x32xbf16>, vector<16x32xf32> -> vector<16x32xf32>
    %102 = arith.truncf %101 : vector<16x32xf32> to vector<16x32xbf16>
    %c96 = arith.constant 96 : index
    %c0_38 = arith.constant 0 : index
    %103 = vector.load %arg8[%c96, %c0_38] : memref<128x128xbf16, #tpu.memory_space<vmem>>, vector<32x128xbf16>
    %cst_39 = arith.constant dense<0.000000e+00> : vector<16x128xf32>
    %104 = tpu.matmul %102, %103, %cst_39 {dimension_numbers = #tpu.dot_dimension_numbers<[1], [0], [0], [1], [0, 0, 1, 1], [], []>} : vector<16x32xbf16>, vector<32x128xbf16>, vector<16x128xf32> -> vector<16x128xf32>
    %105 = arith.addf %85, %104 : vector<16x128xf32>
    %c0_40 = arith.constant 0 : index
    %c0_41 = arith.constant 0 : index
    %106 = vector.load %arg9[%c0_40, %c0_41] : memref<1x128xf32, #tpu.memory_space<vmem>>, vector<1x128xf32>
    %107 = vector.shape_cast %106 : vector<1x128xf32> to vector<128xf32>
    %108 = vector.shape_cast %107 : vector<128xf32> to vector<1x128xf32>
    %109 = vector.broadcast %108 : vector<1x128xf32> to vector<16x128xf32>
    %110 = arith.addf %105, %109 : vector<16x128xf32>
    %111 = arith.addf %1, %110 : vector<16x128xf32>
    %c0_42 = arith.constant 0 : index
    %c0_43 = arith.constant 0 : index
    %112 = vector.load %arg14[%c0_42, %c0_43] : memref<1x128xf32, #tpu.memory_space<vmem>>, vector<1x128xf32>
    %113 = vector.shape_cast %112 : vector<1x128xf32> to vector<128xf32>
    %c0_44 = arith.constant 0 : index
    %c0_45 = arith.constant 0 : index
    %114 = vector.load %arg15[%c0_44, %c0_45] : memref<1x128xf32, #tpu.memory_space<vmem>>, vector<1x128xf32>
    %115 = vector.shape_cast %114 : vector<1x128xf32> to vector<128xf32>
    %cst_46 = arith.constant dense<0.000000e+00> : vector<16xf32>
    %116 = vector.multi_reduction <add>, %111, %cst_46 [1] : vector<16x128xf32> to vector<16xf32>
    %117 = vector.shape_cast %116 : vector<16xf32> to vector<16x1xf32>
    %cst_47 = arith.constant 1.280000e+02 : f32
    %118 = vector.broadcast %cst_47 : f32 to vector<16x1xf32>
    %119 = arith.divf %117, %118 : vector<16x1xf32>
    %120 = vector.broadcast %119 : vector<16x1xf32> to vector<16x128xf32>
    %121 = arith.subf %111, %120 : vector<16x128xf32>
    %122 = arith.mulf %121, %121 : vector<16x128xf32>
    %cst_48 = arith.constant dense<0.000000e+00> : vector<16xf32>
    %123 = vector.multi_reduction <add>, %122, %cst_48 [1] : vector<16x128xf32> to vector<16xf32>
    %124 = vector.shape_cast %123 : vector<16xf32> to vector<16x1xf32>
    %cst_49 = arith.constant 1.280000e+02 : f32
    %125 = vector.broadcast %cst_49 : f32 to vector<16x1xf32>
    %126 = arith.divf %124, %125 : vector<16x1xf32>
    %127 = vector.broadcast %119 : vector<16x1xf32> to vector<16x128xf32>
    %128 = arith.subf %111, %127 : vector<16x128xf32>
    %cst_50 = arith.constant 9.99999974E-6 : f32
    %129 = vector.broadcast %cst_50 : f32 to vector<16x1xf32>
    %130 = arith.addf %126, %129 : vector<16x1xf32>
    %131 = math.rsqrt %130 : vector<16x1xf32>
    %132 = vector.broadcast %131 : vector<16x1xf32> to vector<16x128xf32>
    %133 = arith.mulf %128, %132 : vector<16x128xf32>
    %134 = vector.shape_cast %113 : vector<128xf32> to vector<1x128xf32>
    %135 = vector.broadcast %134 : vector<1x128xf32> to vector<16x128xf32>
    %136 = arith.mulf %133, %135 : vector<16x128xf32>
    %137 = vector.shape_cast %115 : vector<128xf32> to vector<1x128xf32>
    %138 = vector.broadcast %137 : vector<1x128xf32> to vector<16x128xf32>
    %139 = arith.addf %136, %138 : vector<16x128xf32>
    %140 = arith.truncf %139 : vector<16x128xf32> to vector<16x128xbf16>
    %c0_51 = arith.constant 0 : index
    %c0_52 = arith.constant 0 : index
    %141 = vector.load %arg10[%c0_51, %c0_52] : memref<128x256xbf16, #tpu.memory_space<vmem>>, vector<128x256xbf16>
    %cst_53 = arith.constant dense<0.000000e+00> : vector<16x256xf32>
    %142 = tpu.matmul %140, %141, %cst_53 {dimension_numbers = #tpu.dot_dimension_numbers<[1], [0], [0], [1], [0, 0, 1, 1], [], []>} : vector<16x128xbf16>, vector<128x256xbf16>, vector<16x256xf32> -> vector<16x256xf32>
    %c0_54 = arith.constant 0 : index
    %c0_55 = arith.constant 0 : index
    %143 = vector.load %arg11[%c0_54, %c0_55] : memref<1x256xf32, #tpu.memory_space<vmem>>, vector<1x256xf32>
    %144 = vector.shape_cast %143 : vector<1x256xf32> to vector<256xf32>
    %145 = vector.shape_cast %144 : vector<256xf32> to vector<1x256xf32>
    %146 = vector.broadcast %145 : vector<1x256xf32> to vector<16x256xf32>
    %147 = arith.addf %142, %146 : vector<16x256xf32>
    %cst_56 = arith.constant 0.000000e+00 : f32
    %148 = vector.broadcast %cst_56 : f32 to vector<16x256xf32>
    %149 = arith.maximumf %147, %148 : vector<16x256xf32>
    %150 = arith.truncf %149 : vector<16x256xf32> to vector<16x256xbf16>
    %c0_57 = arith.constant 0 : index
    %c0_58 = arith.constant 0 : index
    %151 = vector.load %arg12[%c0_57, %c0_58] : memref<256x128xbf16, #tpu.memory_space<vmem>>, vector<256x128xbf16>
    %cst_59 = arith.constant dense<0.000000e+00> : vector<16x128xf32>
    %152 = tpu.matmul %150, %151, %cst_59 {dimension_numbers = #tpu.dot_dimension_numbers<[1], [0], [0], [1], [0, 0, 1, 1], [], []>} : vector<16x256xbf16>, vector<256x128xbf16>, vector<16x128xf32> -> vector<16x128xf32>
    %c0_60 = arith.constant 0 : index
    %c0_61 = arith.constant 0 : index
    %153 = vector.load %arg13[%c0_60, %c0_61] : memref<1x128xf32, #tpu.memory_space<vmem>>, vector<1x128xf32>
    %154 = vector.shape_cast %153 : vector<1x128xf32> to vector<128xf32>
    %155 = vector.shape_cast %154 : vector<128xf32> to vector<1x128xf32>
    %156 = vector.broadcast %155 : vector<1x128xf32> to vector<16x128xf32>
    %157 = arith.addf %152, %156 : vector<16x128xf32>
    %158 = arith.addf %139, %157 : vector<16x128xf32>
    %c0_62 = arith.constant 0 : index
    %c0_63 = arith.constant 0 : index
    %159 = vector.load %arg16[%c0_62, %c0_63] : memref<1x128xf32, #tpu.memory_space<vmem>>, vector<1x128xf32>
    %160 = vector.shape_cast %159 : vector<1x128xf32> to vector<128xf32>
    %c0_64 = arith.constant 0 : index
    %c0_65 = arith.constant 0 : index
    %161 = vector.load %arg17[%c0_64, %c0_65] : memref<1x128xf32, #tpu.memory_space<vmem>>, vector<1x128xf32>
    %162 = vector.shape_cast %161 : vector<1x128xf32> to vector<128xf32>
    %cst_66 = arith.constant dense<0.000000e+00> : vector<16xf32>
    %163 = vector.multi_reduction <add>, %158, %cst_66 [1] : vector<16x128xf32> to vector<16xf32>
    %164 = vector.shape_cast %163 : vector<16xf32> to vector<16x1xf32>
    %cst_67 = arith.constant 1.280000e+02 : f32
    %165 = vector.broadcast %cst_67 : f32 to vector<16x1xf32>
    %166 = arith.divf %164, %165 : vector<16x1xf32>
    %167 = vector.broadcast %166 : vector<16x1xf32> to vector<16x128xf32>
    %168 = arith.subf %158, %167 : vector<16x128xf32>
    %169 = arith.mulf %168, %168 : vector<16x128xf32>
    %cst_68 = arith.constant dense<0.000000e+00> : vector<16xf32>
    %170 = vector.multi_reduction <add>, %169, %cst_68 [1] : vector<16x128xf32> to vector<16xf32>
    %171 = vector.shape_cast %170 : vector<16xf32> to vector<16x1xf32>
    %cst_69 = arith.constant 1.280000e+02 : f32
    %172 = vector.broadcast %cst_69 : f32 to vector<16x1xf32>
    %173 = arith.divf %171, %172 : vector<16x1xf32>
    %174 = vector.broadcast %166 : vector<16x1xf32> to vector<16x128xf32>
    %175 = arith.subf %158, %174 : vector<16x128xf32>
    %cst_70 = arith.constant 9.99999974E-6 : f32
    %176 = vector.broadcast %cst_70 : f32 to vector<16x1xf32>
    %177 = arith.addf %173, %176 : vector<16x1xf32>
    %178 = math.rsqrt %177 : vector<16x1xf32>
    %179 = vector.broadcast %178 : vector<16x1xf32> to vector<16x128xf32>
    %180 = arith.mulf %175, %179 : vector<16x128xf32>
    %181 = vector.shape_cast %160 : vector<128xf32> to vector<1x128xf32>
    %182 = vector.broadcast %181 : vector<1x128xf32> to vector<16x128xf32>
    %183 = arith.mulf %180, %182 : vector<16x128xf32>
    %184 = vector.shape_cast %162 : vector<128xf32> to vector<1x128xf32>
    %185 = vector.broadcast %184 : vector<1x128xf32> to vector<16x128xf32>
    %186 = arith.addf %183, %185 : vector<16x128xf32>
    %c0_71 = arith.constant 0 : index
    %c0_72 = arith.constant 0 : index
    %c0_73 = arith.constant 0 : index
    %187 = vector.load %arg18[%c0_71, %c0_72, %c0_73] : memref<1x16x128xf32, #tpu.memory_space<vmem>>, vector<1x16x128xf32>
    %188 = vector.shape_cast %187 : vector<1x16x128xf32> to vector<16x128xf32>
    %189 = vector.shape_cast %186 : vector<16x128xf32> to vector<1x16x128xf32>
    tpu.vector_store %arg18[%c0_71, %c0_72, %c0_73], %189 {strides = array<i32>} : memref<1x16x128xf32, #tpu.memory_space<vmem>>, vector<1x16x128xf32>,
    return
  }
  func.func @transform_0(%arg0: i32, %arg1: i32) -> (i32, i32, i32) {
    %c0_i32 = arith.constant 0 : i32
    %c0_i32_0 = arith.constant 0 : i32
    return %arg0, %arg1, %c0_i32 : i32, i32, i32
  }
  func.func @transform_1(%arg0: i32, %arg1: i32) -> (i32, i32, i32) {
    %c0_i32 = arith.constant 0 : i32
    %c0_i32_0 = arith.constant 0 : i32
    %c0_i32_1 = arith.constant 0 : i32
    return %arg0, %c0_i32, %c0_i32_0 : i32, i32, i32
  }
  func.func @transform_2(%arg0: i32, %arg1: i32) -> (i32, i32) {
    %c0_i32 = arith.constant 0 : i32
    %c0_i32_0 = arith.constant 0 : i32
    %c0_i32_1 = arith.constant 0 : i32
    return %c0_i32, %c0_i32_0 : i32, i32
  }
  func.func @transform_3(%arg0: i32, %arg1: i32) -> (i32, i32) {
    %c0_i32 = arith.constant 0 : i32
    %c0_i32_0 = arith.constant 0 : i32
    %c0_i32_1 = arith.constant 0 : i32
    return %c0_i32, %c0_i32_0 : i32, i32
  }
  func.func @transform_4(%arg0: i32, %arg1: i32) -> (i32, i32) {
    %c0_i32 = arith.constant 0 : i32
    %c0_i32_0 = arith.constant 0 : i32
    %c0_i32_1 = arith.constant 0 : i32
    return %c0_i32, %c0_i32_0 : i32, i32
  }
  func.func @transform_5(%arg0: i32, %arg1: i32) -> (i32, i32) {
    %c0_i32 = arith.constant 0 : i32
    %c0_i32_0 = arith.constant 0 : i32
    %c0_i32_1 = arith.constant 0 : i32
    return %c0_i32, %c0_i32_0 : i32, i32
  }
  func.func @transform_6(%arg0: i32, %arg1: i32) -> (i32, i32) {
    %c0_i32 = arith.constant 0 : i32
    %c0_i32_0 = arith.constant 0 : i32
    %c0_i32_1 = arith.constant 0 : i32
    return %c0_i32, %c0_i32_0 : i32, i32
  }
  func.func @transform_7(%arg0: i32, %arg1: i32) -> (i32, i32) {
    %c0_i32 = arith.constant 0 : i32
    %c0_i32_0 = arith.constant 0 : i32
    %c0_i32_1 = arith.constant 0 : i32
    return %c0_i32, %c0_i32_0 : i32, i32
  }
  func.func @transform_8(%arg0: i32, %arg1: i32) -> (i32, i32) {
    %c0_i32 = arith.constant 0 : i32
    %c0_i32_0 = arith.constant 0 : i32
    %c0_i32_1 = arith.constant 0 : i32
    return %c0_i32, %c0_i32_0 : i32, i32
  }
  func.func @transform_9(%arg0: i32, %arg1: i32) -> (i32, i32) {
    %c0_i32 = arith.constant 0 : i32
    %c0_i32_0 = arith.constant 0 : i32
    %c0_i32_1 = arith.constant 0 : i32
    return %c0_i32, %c0_i32_0 : i32, i32
  }
  func.func @transform_10(%arg0: i32, %arg1: i32) -> (i32, i32) {
    %c0_i32 = arith.constant 0 : i32
    %c0_i32_0 = arith.constant 0 : i32
    %c0_i32_1 = arith.constant 0 : i32
    return %c0_i32, %c0_i32_0 : i32, i32
  }
  func.func @transform_11(%arg0: i32, %arg1: i32) -> (i32, i32) {
    %c0_i32 = arith.constant 0 : i32
    %c0_i32_0 = arith.constant 0 : i32
    %c0_i32_1 = arith.constant 0 : i32
    return %c0_i32, %c0_i32_0 : i32, i32
  }
  func.func @transform_12(%arg0: i32, %arg1: i32) -> (i32, i32) {
    %c0_i32 = arith.constant 0 : i32
    %c0_i32_0 = arith.constant 0 : i32
    %c0_i32_1 = arith.constant 0 : i32
    return %c0_i32, %c0_i32_0 : i32, i32
  }
  func.func @transform_13(%arg0: i32, %arg1: i32) -> (i32, i32) {
    %c0_i32 = arith.constant 0 : i32
    %c0_i32_0 = arith.constant 0 : i32
    %c0_i32_1 = arith.constant 0 : i32
    return %c0_i32, %c0_i32_0 : i32, i32
  }
  func.func @transform_14(%arg0: i32, %arg1: i32) -> (i32, i32) {
    %c0_i32 = arith.constant 0 : i32
    %c0_i32_0 = arith.constant 0 : i32
    %c0_i32_1 = arith.constant 0 : i32
    return %c0_i32, %c0_i32_0 : i32, i32
  }
  func.func @transform_15(%arg0: i32, %arg1: i32) -> (i32, i32) {
    %c0_i32 = arith.constant 0 : i32
    %c0_i32_0 = arith.constant 0 : i32
    %c0_i32_1 = arith.constant 0 : i32
    return %c0_i32, %c0_i32_0 : i32, i32
  }
  func.func @transform_16(%arg0: i32, %arg1: i32) -> (i32, i32, i32) {
    %c0_i32 = arith.constant 0 : i32
    %c0_i32_0 = arith.constant 0 : i32
    return %arg0, %arg1, %c0_i32 : i32, i32, i32
  }
}

module attributes {stable_mosaic.version = 11 : i64} {
  func.func @_encoder_layer_kernel(%arg0: i32, %arg1: i32, %arg2: memref<1x16x128xf32, #tpu.memory_space<vmem>>, %arg3: memref<1x16x128xf32, #tpu.memory_space<vmem>>, %arg4: memref<128x128xbf16, #tpu.memory_space<vmem>>, %arg5: memref<1x128xf32, #tpu.memory_space<vmem>>, %arg6: memref<128x256xbf16, #tpu.memory_space<vmem>>, %arg7: memref<1x256xf32, #tpu.memory_space<vmem>>, %arg8: memref<128x128xbf16, #tpu.memory_space<vmem>>, %arg9: memref<1x128xf32, #tpu.memory_space<vmem>>, %arg10: memref<128x256xbf16, #tpu.memory_space<vmem>>, %arg11: memref<1x256xf32, #tpu.memory_space<vmem>>, %arg12: memref<256x128xbf16, #tpu.memory_space<vmem>>, %arg13: memref<1x128xf32, #tpu.memory_space<vmem>>, %arg14: memref<1x128xf32, #tpu.memory_space<vmem>>, %arg15: memref<1x128xf32, #tpu.memory_space<vmem>>, %arg16: memref<1x128xf32, #tpu.memory_space<vmem>>, %arg17: memref<1x128xf32, #tpu.memory_space<vmem>>, %arg18: memref<1x16x128xf32, #tpu.memory_space<vmem>>) attributes {dimension_semantics = [#tpu.dimension_semantics<parallel>, #tpu.dimension_semantics<parallel>], iteration_bounds = array<i64: 2, 1>, scalar_prefetch = 0 : i64, scratch_operands = 0 : i64, tpu.core_type = #tpu.core_type<tc>, window_params = [{transform_indices = @transform_0, window_bounds = array<i64: 1, 16, 128>}, {transform_indices = @transform_1, window_bounds = array<i64: 1, 16, 128>}, {pipeline_mode = #tpu.pipeline_mode<synchronous>, transform_indices = @transform_2, window_bounds = array<i64: 128, 128>}, {pipeline_mode = #tpu.pipeline_mode<synchronous>, transform_indices = @transform_3, window_bounds = array<i64: 1, 128>}, {pipeline_mode = #tpu.pipeline_mode<synchronous>, transform_indices = @transform_4, window_bounds = array<i64: 128, 256>}, {pipeline_mode = #tpu.pipeline_mode<synchronous>, transform_indices = @transform_5, window_bounds = array<i64: 1, 256>}, {pipeline_mode = #tpu.pipeline_mode<synchronous>, transform_indices = @transform_6, window_bounds = array<i64: 128, 128>}, {pipeline_mode = #tpu.pipeline_mode<synchronous>, transform_indices = @transform_7, window_bounds = array<i64: 1, 128>}, {pipeline_mode = #tpu.pipeline_mode<synchronous>, transform_indices = @transform_8, window_bounds = array<i64: 128, 256>}, {pipeline_mode = #tpu.pipeline_mode<synchronous>, transform_indices = @transform_9, window_bounds = array<i64: 1, 256>}, {pipeline_mode = #tpu.pipeline_mode<synchronous>, transform_indices = @transform_10, window_bounds = array<i64: 256, 128>}, {pipeline_mode = #tpu.pipeline_mode<synchronous>, transform_indices = @transform_11, window_bounds = array<i64: 1, 128>}, {pipeline_mode = #tpu.pipeline_mode<synchronous>, transform_indices = @transform_12, window_bounds = array<i64: 1, 128>}, {pipeline_mode = #tpu.pipeline_mode<synchronous>, transform_indices = @transform_13, window_bounds = array<i64: 1, 128>}, {pipeline_mode = #tpu.pipeline_mode<synchronous>, transform_indices = @transform_14, window_bounds = array<i64: 1, 128>}, {pipeline_mode = #tpu.pipeline_mode<synchronous>, transform_indices = @transform_15, window_bounds = array<i64: 1, 128>}, {transform_indices = @transform_16, window_bounds = array<i64: 1, 16, 128>}]} {
    %c0 = arith.constant 0 : index
    %c0_0 = arith.constant 0 : index
    %c0_1 = arith.constant 0 : index
    %0 = vector.load %arg2[%c0, %c0_0, %c0_1] : memref<1x16x128xf32, #tpu.memory_space<vmem>>, vector<1x16x128xf32>
    %1 = vector.shape_cast %0 : vector<1x16x128xf32> to vector<16x128xf32>
    %c0_2 = arith.constant 0 : index
    %c0_3 = arith.constant 0 : index
    %c0_4 = arith.constant 0 : index
    %2 = vector.load %arg3[%c0_2, %c0_3, %c0_4] : memref<1x16x128xf32, #tpu.memory_space<vmem>>, vector<1x16x128xf32>
    %3 = vector.shape_cast %2 : vector<1x16x128xf32> to vector<16x128xf32>
    %4 = arith.truncf %1 : vector<16x128xf32> to vector<16x128xbf16>
    %5 = arith.truncf %3 : vector<16x128xf32> to vector<16x128xbf16>
    %c0_5 = arith.constant 0 : index
    %c0_6 = arith.constant 0 : index
    %6 = vector.load %arg4[%c0_5, %c0_6] : memref<128x128xbf16, #tpu.memory_space<vmem>>, vector<128x128xbf16>
    %cst = arith.constant dense<0.000000e+00> : vector<16x128xf32>
    %7 = tpu.matmul %4, %6, %cst {dimension_numbers = #tpu.dot_dimension_numbers<[1], [0], [0], [1], [0, 0, 1, 1], [], []>} : vector<16x128xbf16>, vector<128x128xbf16>, vector<16x128xf32> -> vector<16x128xf32>
    %c0_7 = arith.constant 0 : index
    %c0_8 = arith.constant 0 : index
    %8 = vector.load %arg5[%c0_7, %c0_8] : memref<1x128xf32, #tpu.memory_space<vmem>>, vector<1x128xf32>
    %9 = vector.shape_cast %8 : vector<1x128xf32> to vector<128xf32>
    %10 = vector.shape_cast %9 : vector<128xf32> to vector<1x128xf32>
    %11 = vector.broadcast %10 : vector<1x128xf32> to vector<16x128xf32>
    %12 = arith.addf %7, %11 : vector<16x128xf32>
    %c0_9 = arith.constant 0 : index
    %c0_10 = arith.constant 0 : index
    %13 = vector.load %arg6[%c0_9, %c0_10] : memref<128x256xbf16, #tpu.memory_space<vmem>>, vector<128x256xbf16>
    %cst_11 = arith.constant dense<0.000000e+00> : vector<16x256xf32>
    %14 = tpu.matmul %5, %13, %cst_11 {dimension_numbers = #tpu.dot_dimension_numbers<[1], [0], [0], [1], [0, 0, 1, 1], [], []>} : vector<16x128xbf16>, vector<128x256xbf16>, vector<16x256xf32> -> vector<16x256xf32>
    %c0_12 = arith.constant 0 : index
    %c0_13 = arith.constant 0 : index
    %15 = vector.load %arg7[%c0_12, %c0_13] : memref<1x256xf32, #tpu.memory_space<vmem>>, vector<1x256xf32>
    %16 = vector.shape_cast %15 : vector<1x256xf32> to vector<256xf32>
    %17 = vector.shape_cast %16 : vector<256xf32> to vector<1x256xf32>
    %18 = vector.broadcast %17 : vector<1x256xf32> to vector<16x256xf32>
    %19 = arith.addf %14, %18 : vector<16x256xf32>
    %20 = vector.extract_strided_slice %19 {offsets = [0, 0], sizes = [16, 128], strides = [1, 1]} : vector<16x256xf32> to vector<16x128xf32>
    %21 = vector.extract_strided_slice %19 {offsets = [0, 128], sizes = [16, 128], strides = [1, 1]} : vector<16x256xf32> to vector<16x128xf32>
    %22 = arith.truncf %12 : vector<16x128xf32> to vector<16x128xbf16>
    %23 = arith.truncf %20 : vector<16x128xf32> to vector<16x128xbf16>
    %24 = arith.truncf %21 : vector<16x128xf32> to vector<16x128xbf16>
    %cst_14 = arith.constant 0.000000e+00 : f32
    %25 = vector.broadcast %cst_14 : f32 to vector<16x128xf32>
    %26 = vector.extract_strided_slice %22 {offsets = [0, 0], sizes = [16, 32], strides = [1, 1]} : vector<16x128xbf16> to vector<16x32xbf16>
    %27 = vector.extract_strided_slice %23 {offsets = [0, 0], sizes = [16, 32], strides = [1, 1]} : vector<16x128xbf16> to vector<16x32xbf16>
    %cst_15 = arith.constant dense<0.000000e+00> : vector<16x16xf32>
    %28 = tpu.matmul %26, %27, %cst_15 {dimension_numbers = #tpu.dot_dimension_numbers<[1], [1], [0], [0], [0, 0, 1, 0], [], []>} : vector<16x32xbf16>, vector<16x32xbf16>, vector<16x16xf32> -> vector<16x16xf32>
    %cst_16 = arith.constant dense<0xFF800000> : vector<16xf32>
    %29 = vector.multi_reduction <maximumf>, %28, %cst_16 [1] : vector<16x16xf32> to vector<16xf32>
    %30 = vector.shape_cast %29 : vector<16xf32> to vector<16x1xf32>
    %31 = vector.broadcast %30 : vector<16x1xf32> to vector<16x16xf32>
    %32 = arith.subf %28, %31 : vector<16x16xf32>
    %33 = math.exp %32 : vector<16x16xf32>
    %cst_17 = arith.constant dense<0.000000e+00> : vector<16xf32>
    %34 = vector.multi_reduction <add>, %33, %cst_17 [1] : vector<16x16xf32> to vector<16xf32>
    %35 = vector.shape_cast %34 : vector<16xf32> to vector<16x1xf32>
    %36 = tpu.reciprocal %35 {approx = true} : vector<16x1xf32> -> vector<16x1xf32>
    %37 = vector.broadcast %36 : vector<16x1xf32> to vector<16x16xf32>
    %38 = arith.mulf %33, %37 : vector<16x16xf32>
    %39 = arith.truncf %38 : vector<16x16xf32> to vector<16x16xbf16>
    %40 = vector.extract_strided_slice %24 {offsets = [0, 0], sizes = [16, 32], strides = [1, 1]} : vector<16x128xbf16> to vector<16x32xbf16>
    %cst_18 = arith.constant dense<0.000000e+00> : vector<16x32xf32>
    %41 = tpu.matmul %39, %40, %cst_18 {dimension_numbers = #tpu.dot_dimension_numbers<[1], [0], [0], [1], [0, 0, 1, 1], [], []>} : vector<16x16xbf16>, vector<16x32xbf16>, vector<16x32xf32> -> vector<16x32xf32>
    %42 = arith.truncf %41 : vector<16x32xf32> to vector<16x32xbf16>
    %c0_19 = arith.constant 0 : index
    %c0_20 = arith.constant 0 : index
    %43 = vector.load %arg8[%c0_19, %c0_20] : memref<128x128xbf16, #tpu.memory_space<vmem>>, vector<32x128xbf16>
    %cst_21 = arith.constant dense<0.000000e+00> : vector<16x128xf32>
    %44 = tpu.matmul %42, %43, %cst_21 {dimension_numbers = #tpu.dot_dimension_numbers<[1], [0], [0], [1], [0, 0, 1, 1], [], []>} : vector<16x32xbf16>, vector<32x128xbf16>, vector<16x128xf32> -> vector<16x128xf32>
    %45 = arith.addf %25, %44 : vector<16x128xf32>
    %46 = vector.extract_strided_slice %22 {offsets = [0, 32], sizes = [16, 32], strides = [1, 1]} : vector<16x128xbf16> to vector<16x32xbf16>
    %47 = vector.extract_strided_slice %23 {offsets = [0, 32], sizes = [16, 32], strides = [1, 1]} : vector<16x128xbf16> to vector<16x32xbf16>
    %cst_22 = arith.constant dense<0.000000e+00> : vector<16x16xf32>
    %48 = tpu.matmul %46, %47, %cst_22 {dimension_numbers = #tpu.dot_dimension_numbers<[1], [1], [0], [0], [0, 0, 1, 0], [], []>} : vector<16x32xbf16>, vector<16x32xbf16>, vector<16x16xf32> -> vector<16x16xf32>
    %cst_23 = arith.constant dense<0xFF800000> : vector<16xf32>
    %49 = vector.multi_reduction <maximumf>, %48, %cst_23 [1] : vector<16x16xf32> to vector<16xf32>
    %50 = vector.shape_cast %49 : vector<16xf32> to vector<16x1xf32>
    %51 = vector.broadcast %50 : vector<16x1xf32> to vector<16x16xf32>
    %52 = arith.subf %48, %51 : vector<16x16xf32>
    %53 = math.exp %52 : vector<16x16xf32>
    %cst_24 = arith.constant dense<0.000000e+00> : vector<16xf32>
    %54 = vector.multi_reduction <add>, %53, %cst_24 [1] : vector<16x16xf32> to vector<16xf32>
    %55 = vector.shape_cast %54 : vector<16xf32> to vector<16x1xf32>
    %56 = tpu.reciprocal %55 {approx = true} : vector<16x1xf32> -> vector<16x1xf32>
    %57 = vector.broadcast %56 : vector<16x1xf32> to vector<16x16xf32>
    %58 = arith.mulf %53, %57 : vector<16x16xf32>
    %59 = arith.truncf %58 : vector<16x16xf32> to vector<16x16xbf16>
    %60 = vector.extract_strided_slice %24 {offsets = [0, 32], sizes = [16, 32], strides = [1, 1]} : vector<16x128xbf16> to vector<16x32xbf16>
    %cst_25 = arith.constant dense<0.000000e+00> : vector<16x32xf32>
    %61 = tpu.matmul %59, %60, %cst_25 {dimension_numbers = #tpu.dot_dimension_numbers<[1], [0], [0], [1], [0, 0, 1, 1], [], []>} : vector<16x16xbf16>, vector<16x32xbf16>, vector<16x32xf32> -> vector<16x32xf32>
    %62 = arith.truncf %61 : vector<16x32xf32> to vector<16x32xbf16>
    %c32 = arith.constant 32 : index
    %c0_26 = arith.constant 0 : index
    %63 = vector.load %arg8[%c32, %c0_26] : memref<128x128xbf16, #tpu.memory_space<vmem>>, vector<32x128xbf16>
    %cst_27 = arith.constant dense<0.000000e+00> : vector<16x128xf32>
    %64 = tpu.matmul %62, %63, %cst_27 {dimension_numbers = #tpu.dot_dimension_numbers<[1], [0], [0], [1], [0, 0, 1, 1], [], []>} : vector<16x32xbf16>, vector<32x128xbf16>, vector<16x128xf32> -> vector<16x128xf32>
    %65 = arith.addf %45, %64 : vector<16x128xf32>
    %66 = vector.extract_strided_slice %22 {offsets = [0, 64], sizes = [16, 32], strides = [1, 1]} : vector<16x128xbf16> to vector<16x32xbf16>
    %67 = vector.extract_strided_slice %23 {offsets = [0, 64], sizes = [16, 32], strides = [1, 1]} : vector<16x128xbf16> to vector<16x32xbf16>
    %cst_28 = arith.constant dense<0.000000e+00> : vector<16x16xf32>
    %68 = tpu.matmul %66, %67, %cst_28 {dimension_numbers = #tpu.dot_dimension_numbers<[1], [1], [0], [0], [0, 0, 1, 0], [], []>} : vector<16x32xbf16>, vector<16x32xbf16>, vector<16x16xf32> -> vector<16x16xf32>
    %cst_29 = arith.constant dense<0xFF800000> : vector<16xf32>
    %69 = vector.multi_reduction <maximumf>, %68, %cst_29 [1] : vector<16x16xf32> to vector<16xf32>
    %70 = vector.shape_cast %69 : vector<16xf32> to vector<16x1xf32>
    %71 = vector.broadcast %70 : vector<16x1xf32> to vector<16x16xf32>
    %72 = arith.subf %68, %71 : vector<16x16xf32>
    %73 = math.exp %72 : vector<16x16xf32>
    %cst_30 = arith.constant dense<0.000000e+00> : vector<16xf32>
    %74 = vector.multi_reduction <add>, %73, %cst_30 [1] : vector<16x16xf32> to vector<16xf32>
    %75 = vector.shape_cast %74 : vector<16xf32> to vector<16x1xf32>
    %76 = tpu.reciprocal %75 {approx = true} : vector<16x1xf32> -> vector<16x1xf32>
    %77 = vector.broadcast %76 : vector<16x1xf32> to vector<16x16xf32>
    %78 = arith.mulf %73, %77 : vector<16x16xf32>
    %79 = arith.truncf %78 : vector<16x16xf32> to vector<16x16xbf16>
    %80 = vector.extract_strided_slice %24 {offsets = [0, 64], sizes = [16, 32], strides = [1, 1]} : vector<16x128xbf16> to vector<16x32xbf16>
    %cst_31 = arith.constant dense<0.000000e+00> : vector<16x32xf32>
    %81 = tpu.matmul %79, %80, %cst_31 {dimension_numbers = #tpu.dot_dimension_numbers<[1], [0], [0], [1], [0, 0, 1, 1], [], []>} : vector<16x16xbf16>, vector<16x32xbf16>, vector<16x32xf32> -> vector<16x32xf32>
    %82 = arith.truncf %81 : vector<16x32xf32> to vector<16x32xbf16>
    %c64 = arith.constant 64 : index
    %c0_32 = arith.constant 0 : index
    %83 = vector.load %arg8[%c64, %c0_32] : memref<128x128xbf16, #tpu.memory_space<vmem>>, vector<32x128xbf16>
    %cst_33 = arith.constant dense<0.000000e+00> : vector<16x128xf32>
    %84 = tpu.matmul %82, %83, %cst_33 {dimension_numbers = #tpu.dot_dimension_numbers<[1], [0], [0], [1], [0, 0, 1, 1], [], []>} : vector<16x32xbf16>, vector<32x128xbf16>, vector<16x128xf32> -> vector<16x128xf32>
    %85 = arith.addf %65, %84 : vector<16x128xf32>
    %86 = vector.extract_strided_slice %22 {offsets = [0, 96], sizes = [16, 32], strides = [1, 1]} : vector<16x128xbf16> to vector<16x32xbf16>
    %87 = vector.extract_strided_slice %23 {offsets = [0, 96], sizes = [16, 32], strides = [1, 1]} : vector<16x128xbf16> to vector<16x32xbf16>
    %cst_34 = arith.constant dense<0.000000e+00> : vector<16x16xf32>
    %88 = tpu.matmul %86, %87, %cst_34 {dimension_numbers = #tpu.dot_dimension_numbers<[1], [1], [0], [0], [0, 0, 1, 0], [], []>} : vector<16x32xbf16>, vector<16x32xbf16>, vector<16x16xf32> -> vector<16x16xf32>
    %cst_35 = arith.constant dense<0xFF800000> : vector<16xf32>
    %89 = vector.multi_reduction <maximumf>, %88, %cst_35 [1] : vector<16x16xf32> to vector<16xf32>
    %90 = vector.shape_cast %89 : vector<16xf32> to vector<16x1xf32>
    %91 = vector.broadcast %90 : vector<16x1xf32> to vector<16x16xf32>
    %92 = arith.subf %88, %91 : vector<16x16xf32>
    %93 = math.exp %92 : vector<16x16xf32>
    %cst_36 = arith.constant dense<0.000000e+00> : vector<16xf32>
    %94 = vector.multi_reduction <add>, %93, %cst_36 [1] : vector<16x16xf32> to vector<16xf32>
    %95 = vector.shape_cast %94 : vector<16xf32> to vector<16x1xf32>
    %96 = tpu.reciprocal %95 {approx = true} : vector<16x1xf32> -> vector<16x1xf32>
    %97 = vector.broadcast %96 : vector<16x1xf32> to vector<16x16xf32>
    %98 = arith.mulf %93, %97 : vector<16x16xf32>
    %99 = arith.truncf %98 : vector<16x16xf32> to vector<16x16xbf16>
    %100 = vector.extract_strided_slice %24 {offsets = [0, 96], sizes = [16, 32], strides = [1, 1]} : vector<16x128xbf16> to vector<16x32xbf16>
    %cst_37 = arith.constant dense<0.000000e+00> : vector<16x32xf32>
    %101 = tpu.matmul %99, %100, %cst_37 {dimension_numbers = #tpu.dot_dimension_numbers<[1], [0], [0], [1], [0, 0, 1, 1], [], []>} : vector<16x16xbf16>, vector<16x32xbf16>, vector<16x32xf32> -> vector<16x32xf32>
    %102 = arith.truncf %101 : vector<16x32xf32> to vector<16x32xbf16>
    %c96 = arith.constant 96 : index
    %c0_38 = arith.constant 0 : index
    %103 = vector.load %arg8[%c96, %c0_38] : memref<128x128xbf16, #tpu.memory_space<vmem>>, vector<32x128xbf16>
    %cst_39 = arith.constant dense<0.000000e+00> : vector<16x128xf32>
    %104 = tpu.matmul %102, %103, %cst_39 {dimension_numbers = #tpu.dot_dimension_numbers<[1], [0], [0], [1], [0, 0, 1, 1], [], []>} : vector<16x32xbf16>, vector<32x128xbf16>, vector<16x128xf32> -> vector<16x128xf32>
    %105 = arith.addf %85, %104 : vector<16x128xf32>
    %c0_40 = arith.constant 0 : index
    %c0_41 = arith.constant 0 : index
    %106 = vector.load %arg9[%c0_40, %c0_41] : memref<1x128xf32, #tpu.memory_space<vmem>>, vector<1x128xf32>
    %107 = vector.shape_cast %106 : vector<1x128xf32> to vector<128xf32>
    %108 = vector.shape_cast %107 : vector<128xf32> to vector<1x128xf32>
    %109 = vector.broadcast %108 : vector<1x128xf32> to vector<16x128xf32>
    %110 = arith.addf %105, %109 : vector<16x128xf32>
    %111 = arith.addf %1, %110 : vector<16x128xf32>
    %c0_42 = arith.constant 0 : index
    %c0_43 = arith.constant 0 : index
    %112 = vector.load %arg14[%c0_42, %c0_43] : memref<1x128xf32, #tpu.memory_space<vmem>>, vector<1x128xf32>
    %113 = vector.shape_cast %112 : vector<1x128xf32> to vector<128xf32>
    %c0_44 = arith.constant 0 : index
    %c0_45 = arith.constant 0 : index
    %114 = vector.load %arg15[%c0_44, %c0_45] : memref<1x128xf32, #tpu.memory_space<vmem>>, vector<1x128xf32>
    %115 = vector.shape_cast %114 : vector<1x128xf32> to vector<128xf32>
    %cst_46 = arith.constant dense<0.000000e+00> : vector<16xf32>
    %116 = vector.multi_reduction <add>, %111, %cst_46 [1] : vector<16x128xf32> to vector<16xf32>
    %117 = vector.shape_cast %116 : vector<16xf32> to vector<16x1xf32>
    %cst_47 = arith.constant 1.280000e+02 : f32
    %118 = vector.broadcast %cst_47 : f32 to vector<16x1xf32>
    %119 = arith.divf %117, %118 : vector<16x1xf32>
    %120 = vector.broadcast %119 : vector<16x1xf32> to vector<16x128xf32>
    %121 = arith.subf %111, %120 : vector<16x128xf32>
    %122 = arith.mulf %121, %121 : vector<16x128xf32>
    %cst_48 = arith.constant dense<0.000000e+00> : vector<16xf32>
    %123 = vector.multi_reduction <add>, %122, %cst_48 [1] : vector<16x128xf32> to vector<16xf32>
    %124 = vector.shape_cast %123 : vector<16xf32> to vector<16x1xf32>
    %cst_49 = arith.constant 1.280000e+02 : f32
    %125 = vector.broadcast %cst_49 : f32 to vector<16x1xf32>
    %126 = arith.divf %124, %125 : vector<16x1xf32>
    %127 = vector.broadcast %119 : vector<16x1xf32> to vector<16x128xf32>
    %128 = arith.subf %111, %127 : vector<16x128xf32>
    %cst_50 = arith.constant 9.99999974E-6 : f32
    %129 = vector.broadcast %cst_50 : f32 to vector<16x1xf32>
    %130 = arith.addf %126, %129 : vector<16x1xf32>
    %131 = math.rsqrt %130 : vector<16x1xf32>
    %132 = vector.broadcast %131 : vector<16x1xf32> to vector<16x128xf32>
    %133 = arith.mulf %128, %132 : vector<16x128xf32>
    %134 = vector.shape_cast %113 : vector<128xf32> to vector<1x128xf32>
    %135 = vector.broadcast %134 : vector<1x128xf32> to vector<16x128xf32>
    %136 = arith.mulf %133, %135 : vector<16x128xf32>
    %137 = vector.shape_cast %115 : vector<128xf32> to vector<1x128xf32>
    %138 = vector.broadcast %137 : vector<1x128xf32> to vector<16x128xf32>
    %139 = arith.addf %136, %138 : vector<16x128xf32>
    %140 = arith.truncf %139 : vector<16x128xf32> to vector<16x128xbf16>
    %c0_51 = arith.constant 0 : index
    %c0_52 = arith.constant 0 : index
    %141 = vector.load %arg10[%c0_51, %c0_52] : memref<128x256xbf16, #tpu.memory_space<vmem>>, vector<128x256xbf16>
    %cst_53 = arith.constant dense<0.000000e+00> : vector<16x256xf32>
    %142 = tpu.matmul %140, %141, %cst_53 {dimension_numbers = #tpu.dot_dimension_numbers<[1], [0], [0], [1], [0, 0, 1, 1], [], []>} : vector<16x128xbf16>, vector<128x256xbf16>, vector<16x256xf32> -> vector<16x256xf32>
    %c0_54 = arith.constant 0 : index
    %c0_55 = arith.constant 0 : index
    %143 = vector.load %arg11[%c0_54, %c0_55] : memref<1x256xf32, #tpu.memory_space<vmem>>, vector<1x256xf32>
    %144 = vector.shape_cast %143 : vector<1x256xf32> to vector<256xf32>
    %145 = vector.shape_cast %144 : vector<256xf32> to vector<1x256xf32>
    %146 = vector.broadcast %145 : vector<1x256xf32> to vector<16x256xf32>
    %147 = arith.addf %142, %146 : vector<16x256xf32>
    %cst_56 = arith.constant 0.000000e+00 : f32
    %148 = vector.broadcast %cst_56 : f32 to vector<16x256xf32>
    %149 = arith.maximumf %147, %148 : vector<16x256xf32>
    %150 = arith.truncf %149 : vector<16x256xf32> to vector<16x256xbf16>
    %c0_57 = arith.constant 0 : index
    %c0_58 = arith.constant 0 : index
    %151 = vector.load %arg12[%c0_57, %c0_58] : memref<256x128xbf16, #tpu.memory_space<vmem>>, vector<256x128xbf16>
    %cst_59 = arith.constant dense<0.000000e+00> : vector<16x128xf32>
    %152 = tpu.matmul %150, %151, %cst_59 {dimension_numbers = #tpu.dot_dimension_numbers<[1], [0], [0], [1], [0, 0, 1, 1], [], []>} : vector<16x256xbf16>, vector<256x128xbf16>, vector<16x128xf32> -> vector<16x128xf32>
    %c0_60 = arith.constant 0 : index
    %c0_61 = arith.constant 0 : index
    %153 = vector.load %arg13[%c0_60, %c0_61] : memref<1x128xf32, #tpu.memory_space<vmem>>, vector<1x128xf32>
    %154 = vector.shape_cast %153 : vector<1x128xf32> to vector<128xf32>
    %155 = vector.shape_cast %154 : vector<128xf32> to vector<1x128xf32>
    %156 = vector.broadcast %155 : vector<1x128xf32> to vector<16x128xf32>
    %157 = arith.addf %152, %156 : vector<16x128xf32>
    %158 = arith.addf %139, %157 : vector<16x128xf32>
    %c0_62 = arith.constant 0 : index
    %c0_63 = arith.constant 0 : index
    %159 = vector.load %arg16[%c0_62, %c0_63] : memref<1x128xf32, #tpu.memory_space<vmem>>, vector<1x128xf32>
    %160 = vector.shape_cast %159 : vector<1x128xf32> to vector<128xf32>
    %c0_64 = arith.constant 0 : index
    %c0_65 = arith.constant 0 : index
    %161 = vector.load %arg17[%c0_64, %c0_65] : memref<1x128xf32, #tpu.memory_space<vmem>>, vector<1x128xf32>
    %162 = vector.shape_cast %161 : vector<1x128xf32> to vector<128xf32>
    %cst_66 = arith.constant dense<0.000000e+00> : vector<16xf32>
    %163 = vector.multi_reduction <add>, %158, %cst_66 [1] : vector<16x128xf32> to vector<16xf32>
    %164 = vector.shape_cast %163 : vector<16xf32> to vector<16x1xf32>
    %cst_67 = arith.constant 1.280000e+02 : f32
    %165 = vector.broadcast %cst_67 : f32 to vector<16x1xf32>
    %166 = arith.divf %164, %165 : vector<16x1xf32>
    %167 = vector.broadcast %166 : vector<16x1xf32> to vector<16x128xf32>
    %168 = arith.subf %158, %167 : vector<16x128xf32>
    %169 = arith.mulf %168, %168 : vector<16x128xf32>
    %cst_68 = arith.constant dense<0.000000e+00> : vector<16xf32>
    %170 = vector.multi_reduction <add>, %169, %cst_68 [1] : vector<16x128xf32> to vector<16xf32>
    %171 = vector.shape_cast %170 : vector<16xf32> to vector<16x1xf32>
    %cst_69 = arith.constant 1.280000e+02 : f32
    %172 = vector.broadcast %cst_69 : f32 to vector<16x1xf32>
    %173 = arith.divf %171, %172 : vector<16x1xf32>
    %174 = vector.broadcast %166 : vector<16x1xf32> to vector<16x128xf32>
    %175 = arith.subf %158, %174 : vector<16x128xf32>
    %cst_70 = arith.constant 9.99999974E-6 : f32
    %176 = vector.broadcast %cst_70 : f32 to vector<16x1xf32>
    %177 = arith.addf %173, %176 : vector<16x1xf32>
    %178 = math.rsqrt %177 : vector<16x1xf32>
    %179 = vector.broadcast %178 : vector<16x1xf32> to vector<16x128xf32>
    %180 = arith.mulf %175, %179 : vector<16x128xf32>
    %181 = vector.shape_cast %160 : vector<128xf32> to vector<1x128xf32>
    %182 = vector.broadcast %181 : vector<1x128xf32> to vector<16x128xf32>
    %183 = arith.mulf %180, %182 : vector<16x128xf32>
    %184 = vector.shape_cast %162 : vector<128xf32> to vector<1x128xf32>
    %185 = vector.broadcast %184 : vector<1x128xf32> to vector<16x128xf32>
    %186 = arith.addf %183, %185 : vector<16x128xf32>
    %c0_71 = arith.constant 0 : index
    %c0_72 = arith.constant 0 : index
    %c0_73 = arith.constant 0 : index
    %187 = vector.load %arg18[%c0_71, %c0_72, %c0_73] : memref<1x16x128xf32, #tpu.memory_space<vmem>>, vector<1x16x128xf32>
    %188 = vector.shape_cast %187 : vector<1x16x128xf32> to vector<16x128xf32>
    %189 = vector.shape_cast %186 : vector<16x128xf32> to vector<1x16x128xf32>
    tpu.vector_store %arg18[%c0_71, %c0_72, %c0_73], %189 {strides = array<i32>} : memref<1x16x128xf32, #tpu.memory_space<vmem>>, vector<1x16x128xf32>,
    return
  }
  func.func @transform_0(%arg0: i32, %arg1: i32) -> (i32, i32, i32) {
    %c0_i32 = arith.constant 0 : i32
    %c0_i32_0 = arith.constant 0 : i32
    return %arg0, %arg1, %c0_i32 : i32, i32, i32
  }
  func.func @transform_1(%arg0: i32, %arg1: i32) -> (i32, i32, i32) {
    %c0_i32 = arith.constant 0 : i32
    %c0_i32_0 = arith.constant 0 : i32
    %c0_i32_1 = arith.constant 0 : i32
    return %arg0, %c0_i32, %c0_i32_0 : i32, i32, i32
  }
  func.func @transform_2(%arg0: i32, %arg1: i32) -> (i32, i32) {
    %c0_i32 = arith.constant 0 : i32
    %c0_i32_0 = arith.constant 0 : i32
    %c0_i32_1 = arith.constant 0 : i32
    return %c0_i32, %c0_i32_0 : i32, i32
  }
  func.func @transform_3(%arg0: i32, %arg1: i32) -> (i32, i32) {
    %c0_i32 = arith.constant 0 : i32
    %c0_i32_0 = arith.constant 0 : i32
    %c0_i32_1 = arith.constant 0 : i32
    return %c0_i32, %c0_i32_0 : i32, i32
  }
  func.func @transform_4(%arg0: i32, %arg1: i32) -> (i32, i32) {
    %c0_i32 = arith.constant 0 : i32
    %c0_i32_0 = arith.constant 0 : i32
    %c0_i32_1 = arith.constant 0 : i32
    return %c0_i32, %c0_i32_0 : i32, i32
  }
  func.func @transform_5(%arg0: i32, %arg1: i32) -> (i32, i32) {
    %c0_i32 = arith.constant 0 : i32
    %c0_i32_0 = arith.constant 0 : i32
    %c0_i32_1 = arith.constant 0 : i32
    return %c0_i32, %c0_i32_0 : i32, i32
  }
  func.func @transform_6(%arg0: i32, %arg1: i32) -> (i32, i32) {
    %c0_i32 = arith.constant 0 : i32
    %c0_i32_0 = arith.constant 0 : i32
    %c0_i32_1 = arith.constant 0 : i32
    return %c0_i32, %c0_i32_0 : i32, i32
  }
  func.func @transform_7(%arg0: i32, %arg1: i32) -> (i32, i32) {
    %c0_i32 = arith.constant 0 : i32
    %c0_i32_0 = arith.constant 0 : i32
    %c0_i32_1 = arith.constant 0 : i32
    return %c0_i32, %c0_i32_0 : i32, i32
  }
  func.func @transform_8(%arg0: i32, %arg1: i32) -> (i32, i32) {
    %c0_i32 = arith.constant 0 : i32
    %c0_i32_0 = arith.constant 0 : i32
    %c0_i32_1 = arith.constant 0 : i32
    return %c0_i32, %c0_i32_0 : i32, i32
  }
  func.func @transform_9(%arg0: i32, %arg1: i32) -> (i32, i32) {
    %c0_i32 = arith.constant 0 : i32
    %c0_i32_0 = arith.constant 0 : i32
    %c0_i32_1 = arith.constant 0 : i32
    return %c0_i32, %c0_i32_0 : i32, i32
  }
  func.func @transform_10(%arg0: i32, %arg1: i32) -> (i32, i32) {
    %c0_i32 = arith.constant 0 : i32
    %c0_i32_0 = arith.constant 0 : i32
    %c0_i32_1 = arith.constant 0 : i32
    return %c0_i32, %c0_i32_0 : i32, i32
  }
  func.func @transform_11(%arg0: i32, %arg1: i32) -> (i32, i32) {
    %c0_i32 = arith.constant 0 : i32
    %c0_i32_0 = arith.constant 0 : i32
    %c0_i32_1 = arith.constant 0 : i32
    return %c0_i32, %c0_i32_0 : i32, i32
  }
  func.func @transform_12(%arg0: i32, %arg1: i32) -> (i32, i32) {
    %c0_i32 = arith.constant 0 : i32
    %c0_i32_0 = arith.constant 0 : i32
    %c0_i32_1 = arith.constant 0 : i32
    return %c0_i32, %c0_i32_0 : i32, i32
  }
  func.func @transform_13(%arg0: i32, %arg1: i32) -> (i32, i32) {
    %c0_i32 = arith.constant 0 : i32
    %c0_i32_0 = arith.constant 0 : i32
    %c0_i32_1 = arith.constant 0 : i32
    return %c0_i32, %c0_i32_0 : i32, i32
  }
  func.func @transform_14(%arg0: i32, %arg1: i32) -> (i32, i32) {
    %c0_i32 = arith.constant 0 : i32
    %c0_i32_0 = arith.constant 0 : i32
    %c0_i32_1 = arith.constant 0 : i32
    return %c0_i32, %c0_i32_0 : i32, i32
  }
  func.func @transform_15(%arg0: i32, %arg1: i32) -> (i32, i32) {
    %c0_i32 = arith.constant 0 : i32
    %c0_i32_0 = arith.constant 0 : i32
    %c0_i32_1 = arith.constant 0 : i32
    return %c0_i32, %c0_i32_0 : i32, i32
  }
  func.func @transform_16(%arg0: i32, %arg1: i32) -> (i32, i32, i32) {
    %c0_i32 = arith.constant 0 : i32
    %c0_i32_0 = arith.constant 0 : i32
    return %arg0, %arg1, %c0_i32 : i32, i32, i32
  }
}

</mosaic_0001>

<llo_original>
// kernel: tpu_custom_call.1
$region0: #{tpu_custom_call.1}
  #allocation0 [shape = 'u32[]', space=smem, size = 0x4, offset = 0x4, fixed_abs, tag = 'smem constant byte address 0x4 - core index']
  #allocation1 [shape = 'u32[144,128]{1,0:T(1,128)}', space=vmem, size = 0x12000, scoped, tag = 'internal scratch']
  %s0 = inlined_call_operand.hbm [shape: f32[2,16,128], index: 0, kind: input, shape index: {}]
  %s1 = inlined_call_operand.hbm [shape: f32[2,16,128], index: 1, kind: input, shape index: {}]
  %s2 = inlined_call_operand.hbm [shape: bf16[128,128], index: 2, kind: input, shape index: {}]
  %s3 = inlined_call_operand.vmem [shape: f32[1,128], index: 3, kind: input, shape index: {}]
  %s4 = inlined_call_operand.hbm [shape: bf16[128,256], index: 4, kind: input, shape index: {}]
  %s5 = inlined_call_operand.vmem [shape: f32[1,256], index: 5, kind: input, shape index: {}]
  %s6 = inlined_call_operand.hbm [shape: bf16[128,128], index: 6, kind: input, shape index: {}]
  %s7 = inlined_call_operand.vmem [shape: f32[1,128], index: 7, kind: input, shape index: {}]
  %s8 = inlined_call_operand.hbm [shape: bf16[128,256], index: 8, kind: input, shape index: {}]
  %s9 = inlined_call_operand.vmem [shape: f32[1,256], index: 9, kind: input, shape index: {}]
  %s10 = inlined_call_operand.hbm [shape: bf16[256,128], index: 10, kind: input, shape index: {}]
  %s11 = inlined_call_operand.vmem [shape: f32[1,128], index: 11, kind: input, shape index: {}]
  %s12 = inlined_call_operand.vmem [shape: f32[1,128], index: 12, kind: input, shape index: {}]
  %s13 = inlined_call_operand.vmem [shape: f32[1,128], index: 13, kind: input, shape index: {}]
  %s14 = inlined_call_operand.vmem [shape: f32[1,128], index: 14, kind: input, shape index: {}]
  %s15 = inlined_call_operand.vmem [shape: f32[1,128], index: 15, kind: input, shape index: {}]
  %s16 = inlined_call_operand.hbm [shape: f32[2,16,128], index: 16, kind: output, shape index: {}]
  %s17 = sld [smem:[#allocation0]]
  $region125: #{tpu_custom_call.1} parent=0
    _
  %s19 = ssub.s32 1, %s17
  %s20 = scalar_select 0, %s19, %s17
  $region1: #{tpu_custom_call.1} parent=0
    #allocation2 [shape = 'u8[16384]{0}', space=vmem, size = 0x4000, scoped, tag = 'input window, operand 0']
    #allocation3 [shape = 's32[2]{0}', space=sflag, size = 0x8, scoped, tag = 'scoped memory for tpu_custom_call.1']
    #allocation4 [shape = 's32[2]{0}', space=sflag, size = 0x8, scoped, tag = 'scoped memory for tpu_custom_call.1']
    #allocation5 [shape = 'u8[16384]{0}', space=vmem, size = 0x4000, scoped, tag = 'input window, operand 1']
    #allocation6 [shape = 's32[2]{0}', space=sflag, size = 0x8, scoped, tag = 'scoped memory for tpu_custom_call.1']
    #allocation7 [shape = 'u8[32768]{0}', space=vmem, size = 0x8000, scoped, tag = 'input window, operand 2, single buffered']
    #allocation8 [shape = 'u8[65536]{0}', space=vmem, size = 0x10000, scoped, tag = 'input window, operand 4, single buffered']
    #allocation9 [shape = 's32[1]{0}', space=sflag, size = 0x4, scoped, tag = 'scoped memory for tpu_custom_call.1']
    #allocation10 [shape = 'u8[32768]{0}', space=vmem, size = 0x8000, scoped, tag = 'input window, operand 6, single buffered']
    #allocation11 [shape = 'u8[65536]{0}', space=vmem, size = 0x10000, scoped, tag = 'input window, operand 8, single buffered']
    #allocation12 [shape = 's32[1]{0}', space=sflag, size = 0x4, scoped, tag = 'scoped memory for tpu_custom_call.1']
    #allocation13 [shape = 'u8[65536]{0}', space=vmem, size = 0x10000, scoped, tag = 'input window, operand 10, single buffered']
    #allocation14 [shape = 'u8[16384]{0}', space=vmem, size = 0x4000, scoped, tag = 'output window, operand 0']
    %21 = vsyncpa [#allocation3], 0
    %s22 = scalar_lea.sflag [#allocation3], 1
    %23 = vsyncpa %s22, 0
    %24 = vsyncpa [#allocation6], 0
    %s25 = scalar_lea.sflag [#allocation6], 1
    %26 = vsyncpa %s25, 0
    %27 = vsyncpa [#allocation9], 0
    %28 = vsyncpa [#allocation12], 0
    %29 = vsyncpa [#allocation4], 0
    %s30 = scalar_lea.sflag [#allocation4], 1
    %31 = vsyncpa %s30, 0
    loop: start=0, step=1, limit=4
    $region2: #{tpu_custom_call.1} parent=1 // loop_pre_header
      _
    $region3: #{tpu_custom_call.1} parent=1 // loop_header
      %s33 = sphi 0, %s37
      %p34 = scmp.ge.s32.totalorder %s33, 4
      %s40 = sphi 0, %s52
      %s41 = sphi 0, %s48
      %s42 = sphi 0, %s40
      %s43 = sphi 0, %s41
      %s44 = sphi 0, %s42
      %s45 = sphi 0, %s43
      %s57 = sphi 0, %s59
      %s60 = sphi 0, %s57
      %s61 = sphi 0, %s60
      %s77 = sphi 0, %s61
      %s83 = sphi 0, %s85
      %s86 = sphi 0, %s83
      %s87 = sphi 0, %s86
      %s103 = sphi 0, %s87
      %s107 = sphi 0, %s107
      %s109 = sphi 0, %s107
      %s110 = sphi 0, %s109
      %s124 = sphi 0, %s110
      %s128 = sphi 0, %s128
      %s130 = sphi 0, %s128
      %s131 = sphi 0, %s130
      %s145 = sphi 0, %s131
      %s149 = sphi 0, %s149
      %s151 = sphi 0, %s149
      %s152 = sphi 0, %s151
      %s166 = sphi 0, %s152
      %s170 = sphi 0, %s170
      %s172 = sphi 0, %s170
      %s173 = sphi 0, %s172
      %s187 = sphi 0, %s173
      %s191 = sphi 0, %s191
      %s193 = sphi 0, %s191
      %s194 = sphi 0, %s193
      %s208 = sphi 0, %s194
      %s212 = sphi 0, %s212
      %s214 = sphi 0, %s212
      %s215 = sphi 0, %s214
      %s229 = sphi 0, %s215
      %s233 = sphi 0, %s233
      %s235 = sphi 0, %s233
      %s236 = sphi 0, %s235
      %s250 = sphi 0, %s236
      %s254 = sphi 0, %s254
      %s256 = sphi 0, %s254
      %s257 = sphi 0, %s256
      %s271 = sphi 0, %s257
      %s275 = sphi 0, %s275
      %s277 = sphi 0, %s275
      %s278 = sphi 0, %s277
      %s292 = sphi 0, %s278
      %s296 = sphi 0, %s296
      %s298 = sphi 0, %s296
      %s299 = sphi 0, %s298
      %s313 = sphi 0, %s299
      %s317 = sphi 0, %s317
      %s319 = sphi 0, %s317
      %s320 = sphi 0, %s319
      %s334 = sphi 0, %s320
      %s338 = sphi 0, %s338
      %s340 = sphi 0, %s338
      %s341 = sphi 0, %s340
      %s355 = sphi 0, %s341
      %s359 = sphi 0, %s359
      %s361 = sphi 0, %s359
      %s362 = sphi 0, %s361
      %s376 = sphi 0, %s362
      %s380 = sphi 0, %s380
      %s382 = sphi 0, %s380
      %s383 = sphi 0, %s382
      %s397 = sphi 0, %s383
      %s405 = sphi 0, %s407
      %s408 = sphi 0, %s405
      %s409 = sphi 0, %s408
      %s425 = sphi 0, %s409
    $region4: #{tpu_custom_call.1} parent=1 // loop_header_branch
      %36 = sbr.rel (%p34) target = $region8
    $region5: #{tpu_custom_call.1} parent=1 // loop_body
      %s38 = ssub.s32 %s33, 1
      %s39 = ssub.s32 %s33, 2
      %s46 = sadd.s32 1, %s41
      %p47 = scmp.ge.s32.totalorder %s46, 1
      %s48 = scalar_select %p47, 0, %s46
      %s49 = sadd.s32 1, %s40
      %s50 = scalar_select %p47, %s49, %s40
      %p51 = scmp.ge.s32.totalorder %s50, 2
      %s52 = scalar_select %p51, 0, %s50
      %s53 = ssub.s32 %s40, %s52
      %s54 = ssub.s32 %s41, %s48
      %s55 = sor.u32 %s53, %s54
      %p56 = scmp.eq.s32.totalorder %s55, 0
      %s58 = sadd.s32 %s57, 1
      %s59 = scalar_select %p56, %s57, %s58
      %p62 = pneg %p56
      %p63 = scmp.eq.s32.totalorder %s33, 1
      %p64 = por %p62, %p63
      %p65 = scmp.ne.s32.totalorder %s57, %s60
      %p66 = scmp.eq.s32.totalorder %s33, 0
      %p67 = por %p65, %p66
      %p68 = scmp.ne.s32.totalorder %s57, %s60
      %p69 = scmp.eq.s32.totalorder %s38, 1
      %p70 = por %p68, %p69
      %p71 = scmp.ne.s32.totalorder %s60, %s61
      %p72 = scmp.eq.s32.totalorder %s38, 0
      %p73 = por %p71, %p72
      %p74 = scmp.ne.s32.totalorder %s60, %s61
      %p75 = scmp.eq.s32.totalorder %s39, 1
      %p76 = por %p74, %p75
      %p78 = scmp.ne.s32.totalorder %s61, %s77
      %p79 = scmp.eq.s32.totalorder %s39, 0
      %p80 = por %p78, %p79
      %s81 = ssub.s32 %s40, %s52
      %p82 = scmp.eq.s32.totalorder %s81, 0
      %s84 = sadd.s32 %s83, 1
      %s85 = scalar_select %p82, %s83, %s84
      %p88 = pneg %p82
      %p89 = scmp.eq.s32.totalorder %s33, 1
      %p90 = por %p88, %p89
      %p91 = scmp.ne.s32.totalorder %s83, %s86
      %p92 = scmp.eq.s32.totalorder %s33, 0
      %p93 = por %p91, %p92
      %p94 = scmp.ne.s32.totalorder %s83, %s86
      %p95 = scmp.eq.s32.totalorder %s38, 1
      %p96 = por %p94, %p95
      %p97 = scmp.ne.s32.totalorder %s86, %s87
      %p98 = scmp.eq.s32.totalorder %s38, 0
      %p99 = por %p97, %p98
      %p100 = scmp.ne.s32.totalorder %s86, %s87
      %p101 = scmp.eq.s32.totalorder %s39, 1
      %p102 = por %p100, %p101
      %p104 = scmp.ne.s32.totalorder %s87, %s103
      %p105 = scmp.eq.s32.totalorder %s39, 0
      %p106 = por %p104, %p105
      %s108 = sadd.s32 %s107, 1
      %p111 = scmp.eq.s32.totalorder %s33, 1
      %p112 = scmp.ne.s32.totalorder %s107, %s109
      %p113 = scmp.eq.s32.totalorder %s33, 0
      %p114 = por %p112, %p113
      %p115 = scmp.ne.s32.totalorder %s107, %s109
      %p116 = scmp.eq.s32.totalorder %s38, 1
      %p117 = por %p115, %p116
      %p118 = scmp.ne.s32.totalorder %s109, %s110
      %p119 = scmp.eq.s32.totalorder %s38, 0
      %p120 = por %p118, %p119
      %p121 = scmp.ne.s32.totalorder %s109, %s110
      %p122 = scmp.eq.s32.totalorder %s39, 1
      %p123 = por %p121, %p122
      %p125 = scmp.ne.s32.totalorder %s110, %s124
      %p126 = scmp.eq.s32.totalorder %s39, 0
      %p127 = por %p125, %p126
      %s129 = sadd.s32 %s128, 1
      %p132 = scmp.eq.s32.totalorder %s33, 1
      %p133 = scmp.ne.s32.totalorder %s128, %s130
      %p134 = scmp.eq.s32.totalorder %s33, 0
      %p135 = por %p133, %p134
      %p136 = scmp.ne.s32.totalorder %s128, %s130
      %p137 = scmp.eq.s32.totalorder %s38, 1
      %p138 = por %p136, %p137
      %p139 = scmp.ne.s32.totalorder %s130, %s131
      %p140 = scmp.eq.s32.totalorder %s38, 0
      %p141 = por %p139, %p140
      %p142 = scmp.ne.s32.totalorder %s130, %s131
      %p143 = scmp.eq.s32.totalorder %s39, 1
      %p144 = por %p142, %p143
      %p146 = scmp.ne.s32.totalorder %s131, %s145
      %p147 = scmp.eq.s32.totalorder %s39, 0
      %p148 = por %p146, %p147
      %s150 = sadd.s32 %s149, 1
      %p153 = scmp.eq.s32.totalorder %s33, 1
      %p154 = scmp.ne.s32.totalorder %s149, %s151
      %p155 = scmp.eq.s32.totalorder %s33, 0
      %p156 = por %p154, %p155
      %p157 = scmp.ne.s32.totalorder %s149, %s151
      %p158 = scmp.eq.s32.totalorder %s38, 1
      %p159 = por %p157, %p158
      %p160 = scmp.ne.s32.totalorder %s151, %s152
      %p161 = scmp.eq.s32.totalorder %s38, 0
      %p162 = por %p160, %p161
      %p163 = scmp.ne.s32.totalorder %s151, %s152
      %p164 = scmp.eq.s32.totalorder %s39, 1
      %p165 = por %p163, %p164
      %p167 = scmp.ne.s32.totalorder %s152, %s166
      %p168 = scmp.eq.s32.totalorder %s39, 0
      %p169 = por %p167, %p168
      %s171 = sadd.s32 %s170, 1
      %p174 = scmp.eq.s32.totalorder %s33, 1
      %p175 = scmp.ne.s32.totalorder %s170, %s172
      %p176 = scmp.eq.s32.totalorder %s33, 0
      %p177 = por %p175, %p176
      %p178 = scmp.ne.s32.totalorder %s170, %s172
      %p179 = scmp.eq.s32.totalorder %s38, 1
      %p180 = por %p178, %p179
      %p181 = scmp.ne.s32.totalorder %s172, %s173
      %p182 = scmp.eq.s32.totalorder %s38, 0
      %p183 = por %p181, %p182
      %p184 = scmp.ne.s32.totalorder %s172, %s173
      %p185 = scmp.eq.s32.totalorder %s39, 1
      %p186 = por %p184, %p185
      %p188 = scmp.ne.s32.totalorder %s173, %s187
      %p189 = scmp.eq.s32.totalorder %s39, 0
      %p190 = por %p188, %p189
      %s192 = sadd.s32 %s191, 1
      %p195 = scmp.eq.s32.totalorder %s33, 1
      %p196 = scmp.ne.s32.totalorder %s191, %s193
      %p197 = scmp.eq.s32.totalorder %s33, 0
      %p198 = por %p196, %p197
      %p199 = scmp.ne.s32.totalorder %s191, %s193
      %p200 = scmp.eq.s32.totalorder %s38, 1
      %p201 = por %p199, %p200
      %p202 = scmp.ne.s32.totalorder %s193, %s194
      %p203 = scmp.eq.s32.totalorder %s38, 0
      %p204 = por %p202, %p203
      %p205 = scmp.ne.s32.totalorder %s193, %s194
      %p206 = scmp.eq.s32.totalorder %s39, 1
      %p207 = por %p205, %p206
      %p209 = scmp.ne.s32.totalorder %s194, %s208
      %p210 = scmp.eq.s32.totalorder %s39, 0
      %p211 = por %p209, %p210
      %s213 = sadd.s32 %s212, 1
      %p216 = scmp.eq.s32.totalorder %s33, 1
      %p217 = scmp.ne.s32.totalorder %s212, %s214
      %p218 = scmp.eq.s32.totalorder %s33, 0
      %p219 = por %p217, %p218
      %p220 = scmp.ne.s32.totalorder %s212, %s214
      %p221 = scmp.eq.s32.totalorder %s38, 1
      %p222 = por %p220, %p221
      %p223 = scmp.ne.s32.totalorder %s214, %s215
      %p224 = scmp.eq.s32.totalorder %s38, 0
      %p225 = por %p223, %p224
      %p226 = scmp.ne.s32.totalorder %s214, %s215
      %p227 = scmp.eq.s32.totalorder %s39, 1
      %p228 = por %p226, %p227
      %p230 = scmp.ne.s32.totalorder %s215, %s229
      %p231 = scmp.eq.s32.totalorder %s39, 0
      %p232 = por %p230, %p231
      %s234 = sadd.s32 %s233, 1
      %p237 = scmp.eq.s32.totalorder %s33, 1
      %p238 = scmp.ne.s32.totalorder %s233, %s235
      %p239 = scmp.eq.s32.totalorder %s33, 0
      %p240 = por %p238, %p239
      %p241 = scmp.ne.s32.totalorder %s233, %s235
      %p242 = scmp.eq.s32.totalorder %s38, 1
      %p243 = por %p241, %p242
      %p244 = scmp.ne.s32.totalorder %s235, %s236
      %p245 = scmp.eq.s32.totalorder %s38, 0
      %p246 = por %p244, %p245
      %p247 = scmp.ne.s32.totalorder %s235, %s236
      %p248 = scmp.eq.s32.totalorder %s39, 1
      %p249 = por %p247, %p248
      %p251 = scmp.ne.s32.totalorder %s236, %s250
      %p252 = scmp.eq.s32.totalorder %s39, 0
      %p253 = por %p251, %p252
      %s255 = sadd.s32 %s254, 1
      %p258 = scmp.eq.s32.totalorder %s33, 1
      %p259 = scmp.ne.s32.totalorder %s254, %s256
      %p260 = scmp.eq.s32.totalorder %s33, 0
      %p261 = por %p259, %p260
      %p262 = scmp.ne.s32.totalorder %s254, %s256
      %p263 = scmp.eq.s32.totalorder %s38, 1
      %p264 = por %p262, %p263
      %p265 = scmp.ne.s32.totalorder %s256, %s257
      %p266 = scmp.eq.s32.totalorder %s38, 0
      %p267 = por %p265, %p266
      %p268 = scmp.ne.s32.totalorder %s256, %s257
      %p269 = scmp.eq.s32.totalorder %s39, 1
      %p270 = por %p268, %p269
      %p272 = scmp.ne.s32.totalorder %s257, %s271
      %p273 = scmp.eq.s32.totalorder %s39, 0
      %p274 = por %p272, %p273
      %s276 = sadd.s32 %s275, 1
      %p279 = scmp.eq.s32.totalorder %s33, 1
      %p280 = scmp.ne.s32.totalorder %s275, %s277
      %p281 = scmp.eq.s32.totalorder %s33, 0
      %p282 = por %p280, %p281
      %p283 = scmp.ne.s32.totalorder %s275, %s277
      %p284 = scmp.eq.s32.totalorder %s38, 1
      %p285 = por %p283, %p284
      %p286 = scmp.ne.s32.totalorder %s277, %s278
      %p287 = scmp.eq.s32.totalorder %s38, 0
      %p288 = por %p286, %p287
      %p289 = scmp.ne.s32.totalorder %s277, %s278
      %p290 = scmp.eq.s32.totalorder %s39, 1
      %p291 = por %p289, %p290
      %p293 = scmp.ne.s32.totalorder %s278, %s292
      %p294 = scmp.eq.s32.totalorder %s39, 0
      %p295 = por %p293, %p294
      %s297 = sadd.s32 %s296, 1
      %p300 = scmp.eq.s32.totalorder %s33, 1
      %p301 = scmp.ne.s32.totalorder %s296, %s298
      %p302 = scmp.eq.s32.totalorder %s33, 0
      %p303 = por %p301, %p302
      %p304 = scmp.ne.s32.totalorder %s296, %s298
      %p305 = scmp.eq.s32.totalorder %s38, 1
      %p306 = por %p304, %p305
      %p307 = scmp.ne.s32.totalorder %s298, %s299
      %p308 = scmp.eq.s32.totalorder %s38, 0
      %p309 = por %p307, %p308
      %p310 = scmp.ne.s32.totalorder %s298, %s299
      %p311 = scmp.eq.s32.totalorder %s39, 1
      %p312 = por %p310, %p311
      %p314 = scmp.ne.s32.totalorder %s299, %s313
      %p315 = scmp.eq.s32.totalorder %s39, 0
      %p316 = por %p314, %p315
      %s318 = sadd.s32 %s317, 1
      %p321 = scmp.eq.s32.totalorder %s33, 1
      %p322 = scmp.ne.s32.totalorder %s317, %s319
      %p323 = scmp.eq.s32.totalorder %s33, 0
      %p324 = por %p322, %p323
      %p325 = scmp.ne.s32.totalorder %s317, %s319
      %p326 = scmp.eq.s32.totalorder %s38, 1
      %p327 = por %p325, %p326
      %p328 = scmp.ne.s32.totalorder %s319, %s320
      %p329 = scmp.eq.s32.totalorder %s38, 0
      %p330 = por %p328, %p329
      %p331 = scmp.ne.s32.totalorder %s319, %s320
      %p332 = scmp.eq.s32.totalorder %s39, 1
      %p333 = por %p331, %p332
      %p335 = scmp.ne.s32.totalorder %s320, %s334
      %p336 = scmp.eq.s32.totalorder %s39, 0
      %p337 = por %p335, %p336
      %s339 = sadd.s32 %s338, 1
      %p342 = scmp.eq.s32.totalorder %s33, 1
      %p343 = scmp.ne.s32.totalorder %s338, %s340
      %p344 = scmp.eq.s32.totalorder %s33, 0
      %p345 = por %p343, %p344
      %p346 = scmp.ne.s32.totalorder %s338, %s340
      %p347 = scmp.eq.s32.totalorder %s38, 1
      %p348 = por %p346, %p347
      %p349 = scmp.ne.s32.totalorder %s340, %s341
      %p350 = scmp.eq.s32.totalorder %s38, 0
      %p351 = por %p349, %p350
      %p352 = scmp.ne.s32.totalorder %s340, %s341
      %p353 = scmp.eq.s32.totalorder %s39, 1
      %p354 = por %p352, %p353
      %p356 = scmp.ne.s32.totalorder %s341, %s355
      %p357 = scmp.eq.s32.totalorder %s39, 0
      %p358 = por %p356, %p357
      %s360 = sadd.s32 %s359, 1
      %p363 = scmp.eq.s32.totalorder %s33, 1
      %p364 = scmp.ne.s32.totalorder %s359, %s361
      %p365 = scmp.eq.s32.totalorder %s33, 0
      %p366 = por %p364, %p365
      %p367 = scmp.ne.s32.totalorder %s359, %s361
      %p368 = scmp.eq.s32.totalorder %s38, 1
      %p369 = por %p367, %p368
      %p370 = scmp.ne.s32.totalorder %s361, %s362
      %p371 = scmp.eq.s32.totalorder %s38, 0
      %p372 = por %p370, %p371
      %p373 = scmp.ne.s32.totalorder %s361, %s362
      %p374 = scmp.eq.s32.totalorder %s39, 1
      %p375 = por %p373, %p374
      %p377 = scmp.ne.s32.totalorder %s362, %s376
      %p378 = scmp.eq.s32.totalorder %s39, 0
      %p379 = por %p377, %p378
      %s381 = sadd.s32 %s380, 1
      %p384 = scmp.eq.s32.totalorder %s33, 1
      %p385 = scmp.ne.s32.totalorder %s380, %s382
      %p386 = scmp.eq.s32.totalorder %s33, 0
      %p387 = por %p385, %p386
      %p388 = scmp.ne.s32.totalorder %s380, %s382
      %p389 = scmp.eq.s32.totalorder %s38, 1
      %p390 = por %p388, %p389
      %p391 = scmp.ne.s32.totalorder %s382, %s383
      %p392 = scmp.eq.s32.totalorder %s38, 0
      %p393 = por %p391, %p392
      %p394 = scmp.ne.s32.totalorder %s382, %s383
      %p395 = scmp.eq.s32.totalorder %s39, 1
      %p396 = por %p394, %p395
      %p398 = scmp.ne.s32.totalorder %s383, %s397
      %p399 = scmp.eq.s32.totalorder %s39, 0
      %p400 = por %p398, %p399
      %s401 = ssub.s32 %s40, %s52
      %s402 = ssub.s32 %s41, %s48
      %s403 = sor.u32 %s401, %s402
      %p404 = scmp.eq.s32.totalorder %s403, 0
      %s406 = sadd.s32 %s405, 1
      %s407 = scalar_select %p404, %s405, %s406
      %p410 = pneg %p404
      %p411 = scmp.eq.s32.totalorder %s33, 1
      %p412 = por %p410, %p411
      %p413 = scmp.ne.s32.totalorder %s405, %s408
      %p414 = scmp.eq.s32.totalorder %s33, 0
      %p415 = por %p413, %p414
      %p416 = scmp.ne.s32.totalorder %s405, %s408
      %p417 = scmp.eq.s32.totalorder %s38, 1
      %p418 = por %p416, %p417
      %p419 = scmp.ne.s32.totalorder %s408, %s409
      %p420 = scmp.eq.s32.totalorder %s38, 0
      %p421 = por %p419, %p420
      %p422 = scmp.ne.s32.totalorder %s408, %s409
      %p423 = scmp.eq.s32.totalorder %s39, 1
      %p424 = por %p422, %p423
      %p426 = scmp.ne.s32.totalorder %s409, %s425
      %p427 = scmp.eq.s32.totalorder %s39, 0
      %p428 = por %p426, %p427
      %p429 = scmp.le.s32.totalorder 1, %s33
      %p430 = scmp.lt.s32.totalorder %s33, 3
      %p431 = pnand %p429, %p430
      %p432 = pneg %p431
      // Predicated region
      $region9: #{tpu_custom_call.1} parent=5 // pred_check
        _
      $region10: #{tpu_custom_call.1} parent=5 // pred_check_branch
        %434 = sbr.rel (%p431) target = $region12
      $region11: #{tpu_custom_call.1} parent=5 // pred_region
        %s435 = ssub.s32 %s33, 1
        // Predicated region
        $region13: #{tpu_custom_call.1} parent=11 // pred_check
          %p436 = pneg %p120
        $region14: #{tpu_custom_call.1} parent=11 // pred_check_branch
          %438 = sbr.rel (%p436) target = $region16
        $region15: #{tpu_custom_call.1} parent=11 // pred_region
          %s440 = ssub.s32 1024, 1024
          %441 = vsyncadd [#allocation6], %s440
          %s442 = sshll.u32 [#allocation7], 4
          %s443 = int_to_ptr.vmem [resolvable:$true] %s442
          %448 = dma.hbm_to_vmem [thread:$0]  %s2, 1024, %s443, [#allocation6], 64, 64, 4
        $region16: #{tpu_custom_call.1} parent=11 // pred_fallthru
          _
        // Predicated region
        $region17: #{tpu_custom_call.1} parent=11 // pred_check
          %p449 = pneg %p141
        $region18: #{tpu_custom_call.1} parent=11 // pred_check_branch
          %451 = sbr.rel (%p449) target = $region20
        $region19: #{tpu_custom_call.1} parent=11 // pred_region
          _
        $region20: #{tpu_custom_call.1} parent=11 // pred_fallthru
          _
        // Predicated region
        $region21: #{tpu_custom_call.1} parent=11 // pred_check
          %p452 = pneg %p162
        $region22: #{tpu_custom_call.1} parent=11 // pred_check_branch
          %454 = sbr.rel (%p452) target = $region24
        $region23: #{tpu_custom_call.1} parent=11 // pred_region
          %s456 = ssub.s32 2048, 2048
          %457 = vsyncadd [#allocation9], %s456
          %s458 = sshll.u32 [#allocation8], 4
          %s459 = int_to_ptr.vmem [resolvable:$true] %s458
          %464 = dma.hbm_to_vmem [thread:$0]  %s4, 2048, %s459, [#allocation9], 128, 128, 8
        $region24: #{tpu_custom_call.1} parent=11 // pred_fallthru
          _
        // Predicated region
        $region25: #{tpu_custom_call.1} parent=11 // pred_check
          %p465 = pneg %p183
        $region26: #{tpu_custom_call.1} parent=11 // pred_check_branch
          %467 = sbr.rel (%p465) target = $region28
        $region27: #{tpu_custom_call.1} parent=11 // pred_region
          _
        $region28: #{tpu_custom_call.1} parent=11 // pred_fallthru
          _
        // Predicated region
        $region29: #{tpu_custom_call.1} parent=11 // pred_check
          %p468 = pneg %p204
        $region30: #{tpu_custom_call.1} parent=11 // pred_check_branch
          %470 = sbr.rel (%p468) target = $region32
        $region31: #{tpu_custom_call.1} parent=11 // pred_region
          %s472 = ssub.s32 1024, 1024
          %473 = vsyncadd [#allocation9], %s472
          %s474 = sshll.u32 [#allocation10], 4
          %s475 = int_to_ptr.vmem [resolvable:$true] %s474
          %480 = dma.hbm_to_vmem [thread:$0]  %s6, 1024, %s475, [#allocation9], 64, 64, 4
        $region32: #{tpu_custom_call.1} parent=11 // pred_fallthru
          _
        // Predicated region
        $region33: #{tpu_custom_call.1} parent=11 // pred_check
          %p481 = pneg %p225
        $region34: #{tpu_custom_call.1} parent=11 // pred_check_branch
          %483 = sbr.rel (%p481) target = $region36
        $region35: #{tpu_custom_call.1} parent=11 // pred_region
          _
        $region36: #{tpu_custom_call.1} parent=11 // pred_fallthru
          _
        // Predicated region
        $region37: #{tpu_custom_call.1} parent=11 // pred_check
          %p484 = pneg %p246
        $region38: #{tpu_custom_call.1} parent=11 // pred_check_branch
          %486 = sbr.rel (%p484) target = $region40
        $region39: #{tpu_custom_call.1} parent=11 // pred_region
          %s488 = ssub.s32 2048, 2048
          %489 = vsyncadd [#allocation12], %s488
          %s490 = sshll.u32 [#allocation11], 4
          %s491 = int_to_ptr.vmem [resolvable:$true] %s490
          %496 = dma.hbm_to_vmem [thread:$0]  %s8, 2048, %s491, [#allocation12], 128, 128, 8
        $region40: #{tpu_custom_call.1} parent=11 // pred_fallthru
          _
        // Predicated region
        $region41: #{tpu_custom_call.1} parent=11 // pred_check
          %p497 = pneg %p267
        $region42: #{tpu_custom_call.1} parent=11 // pred_check_branch
          %499 = sbr.rel (%p497) target = $region44
        $region43: #{tpu_custom_call.1} parent=11 // pred_region
          _
        $region44: #{tpu_custom_call.1} parent=11 // pred_fallthru
          _
        // Predicated region
        $region45: #{tpu_custom_call.1} parent=11 // pred_check
          %p500 = pneg %p288
        $region46: #{tpu_custom_call.1} parent=11 // pred_check_branch
          %502 = sbr.rel (%p500) target = $region48
        $region47: #{tpu_custom_call.1} parent=11 // pred_region
          %s504 = ssub.s32 2048, 2048
          %505 = vsyncadd [#allocation12], %s504
          %s506 = sshll.u32 [#allocation13], 4
          %s507 = int_to_ptr.vmem [resolvable:$true] %s506
          %512 = dma.hbm_to_vmem [thread:$0]  %s10, 2048, %s507, [#allocation12], 64, 64, 4
        $region48: #{tpu_custom_call.1} parent=11 // pred_fallthru
          _
        // Predicated region
        $region49: #{tpu_custom_call.1} parent=11 // pred_check
          %p513 = pneg %p309
        $region50: #{tpu_custom_call.1} parent=11 // pred_check_branch
          %515 = sbr.rel (%p513) target = $region52
        $region51: #{tpu_custom_call.1} parent=11 // pred_region
          _
        $region52: #{tpu_custom_call.1} parent=11 // pred_fallthru
          _
        // Predicated region
        $region53: #{tpu_custom_call.1} parent=11 // pred_check
          %p516 = pneg %p330
        $region54: #{tpu_custom_call.1} parent=11 // pred_check_branch
          %518 = sbr.rel (%p516) target = $region56
        $region55: #{tpu_custom_call.1} parent=11 // pred_region
          _
        $region56: #{tpu_custom_call.1} parent=11 // pred_fallthru
          _
        // Predicated region
        $region57: #{tpu_custom_call.1} parent=11 // pred_check
          %p519 = pneg %p351
        $region58: #{tpu_custom_call.1} parent=11 // pred_check_branch
          %521 = sbr.rel (%p519) target = $region60
        $region59: #{tpu_custom_call.1} parent=11 // pred_region
          _
        $region60: #{tpu_custom_call.1} parent=11 // pred_fallthru
          _
        // Predicated region
        $region61: #{tpu_custom_call.1} parent=11 // pred_check
          %p522 = pneg %p372
        $region62: #{tpu_custom_call.1} parent=11 // pred_check_branch
          %524 = sbr.rel (%p522) target = $region64
        $region63: #{tpu_custom_call.1} parent=11 // pred_region
          _
        $region64: #{tpu_custom_call.1} parent=11 // pred_fallthru
          _
        // Predicated region
        $region65: #{tpu_custom_call.1} parent=11 // pred_check
          %p525 = pneg %p393
        $region66: #{tpu_custom_call.1} parent=11 // pred_check_branch
          %527 = sbr.rel (%p525) target = $region68
        $region67: #{tpu_custom_call.1} parent=11 // pred_region
          _
        $region68: #{tpu_custom_call.1} parent=11 // pred_fallthru
          _
      $region12: #{tpu_custom_call.1} parent=5 // pred_fallthru
        _
      %p528 = scmp.lt.s32.totalorder %s33, 2
      // Predicated region
      $region69: #{tpu_custom_call.1} parent=5 // pred_check
        %p529 = pneg %p528
      $region70: #{tpu_custom_call.1} parent=5 // pred_check_branch
        %531 = sbr.rel (%p529) target = $region72
      $region71: #{tpu_custom_call.1} parent=5 // pred_region
        // Predicated region
        $region73: #{tpu_custom_call.1} parent=71 // pred_check
          %p532 = pneg %p67
        $region74: #{tpu_custom_call.1} parent=71 // pred_check_branch
          %534 = sbr.rel (%p532) target = $region76
        $region75: #{tpu_custom_call.1} parent=71 // pred_region
          %s535 = sand.u32 %s57, 1
          %s536 = scalar_lea.sflag [#allocation3], %s535
          %s537 = sand.u32 %s57, 1
          %s538 = smul.addr %s537, 16
          %s539 = scalar_lea.vmem [#allocation2], %s538
          %s540 = smul.u32 2, %s41
          %s542 = ssub.s32 256, 256
          %543 = vsyncadd %s536, %s542
          %s544 = smul.addr %s40, 2
          %s545 = sadd.s32 %s540, %s544
          %s546 = smul.addr %s545, 128
          %s547 = scalar_lea.hbm %s0, %s546
          %s548 = sshll.u32 %s539, 4
          %s549 = int_to_ptr.vmem [resolvable:$true] %s548
          %554 = dma.hbm_to_vmem [thread:$0]  %s547, 256, %s549, %s536, 128, 128, 8
        $region76: #{tpu_custom_call.1} parent=71 // pred_fallthru
          _
        // Predicated region
        $region77: #{tpu_custom_call.1} parent=71 // pred_check
          %p555 = pneg %p93
        $region78: #{tpu_custom_call.1} parent=71 // pred_check_branch
          %557 = sbr.rel (%p555) target = $region80
        $region79: #{tpu_custom_call.1} parent=71 // pred_region
          %s558 = sand.u32 %s33, 1
          %s559 = scalar_lea.sflag [#allocation6], %s558
          %s560 = sand.u32 %s83, 1
          %s561 = smul.addr %s560, 16
          %s562 = scalar_lea.vmem [#allocation5], %s561
          %s564 = ssub.s32 256, 256
          %565 = vsyncadd %s559, %s564
          %s566 = smul.addr %s40, 2
          %s567 = smul.addr %s566, 128
          %s568 = scalar_lea.hbm %s1, %s567
          %s569 = sshll.u32 %s562, 4
          %s570 = int_to_ptr.vmem [resolvable:$true] %s569
          %575 = dma.hbm_to_vmem [thread:$0]  %s568, 256, %s570, %s559, 128, 128, 8
        $region80: #{tpu_custom_call.1} parent=71 // pred_fallthru
          _
      $region72: #{tpu_custom_call.1} parent=5 // pred_fallthru
        _
      %p576 = scmp.le.s32.totalorder 1, %s33
      %p577 = scmp.lt.s32.totalorder %s33, 3
      %p578 = pnand %p576, %p577
      %p579 = pneg %p578
      // Predicated region
      $region81: #{tpu_custom_call.1} parent=5 // pred_check
        _
      $region82: #{tpu_custom_call.1} parent=5 // pred_check_branch
        %581 = sbr.rel (%p578) target = $region84
      $region83: #{tpu_custom_call.1} parent=5 // pred_region
        %s582 = ssub.s32 %s33, 1
        %s583 = sand.u32 %s60, 1
        %s584 = scalar_lea.sflag [#allocation3], %s583
        %s585 = sand.u32 %s60, 1
        %s586 = smul.addr %s585, 16
        %s587 = scalar_lea.vmem [#allocation2], %s586
        // Predicated region
        $region85: #{tpu_custom_call.1} parent=83 // pred_check
          %p588 = pneg %p73
        $region86: #{tpu_custom_call.1} parent=83 // pred_check_branch
          %590 = sbr.rel (%p588) target = $region88
        $region87: #{tpu_custom_call.1} parent=83 // pred_region
          %591 = dma.done %s584, 256
        $region88: #{tpu_custom_call.1} parent=83 // pred_fallthru
          _
        %s592 = sand.u32 %s38, 1
        %s593 = scalar_lea.sflag [#allocation6], %s592
        %s594 = sand.u32 %s86, 1
        %s595 = smul.addr %s594, 16
        %s596 = scalar_lea.vmem [#allocation5], %s595
        // Predicated region
        $region89: #{tpu_custom_call.1} parent=83 // pred_check
          %p597 = pneg %p99
        $region90: #{tpu_custom_call.1} parent=83 // pred_check_branch
          %599 = sbr.rel (%p597) target = $region92
        $region91: #{tpu_custom_call.1} parent=83 // pred_region
          %600 = dma.done %s593, 256
        $region92: #{tpu_custom_call.1} parent=83 // pred_fallthru
          _
        // Predicated region
        $region93: #{tpu_custom_call.1} parent=83 // pred_check
          %p601 = pneg %p120
        $region94: #{tpu_custom_call.1} parent=83 // pred_check_branch
          %603 = sbr.rel (%p601) target = $region96
        $region95: #{tpu_custom_call.1} parent=83 // pred_region
          %604 = dma.done [#allocation6], 1024
        $region96: #{tpu_custom_call.1} parent=83 // pred_fallthru
          _
        // Predicated region
        $region97: #{tpu_custom_call.1} parent=83 // pred_check
          %p605 = pneg %p162
        $region98: #{tpu_custom_call.1} parent=83 // pred_check_branch
          %607 = sbr.rel (%p605) target = $region100
        $region99: #{tpu_custom_call.1} parent=83 // pred_region
          %608 = dma.done [#allocation9], 2048
        $region100: #{tpu_custom_call.1} parent=83 // pred_fallthru
          _
        // Predicated region
        $region101: #{tpu_custom_call.1} parent=83 // pred_check
          %p609 = pneg %p204
        $region102: #{tpu_custom_call.1} parent=83 // pred_check_branch
          %611 = sbr.rel (%p609) target = $region104
        $region103: #{tpu_custom_call.1} parent=83 // pred_region
          %612 = dma.done [#allocation9], 1024
        $region104: #{tpu_custom_call.1} parent=83 // pred_fallthru
          _
        // Predicated region
        $region105: #{tpu_custom_call.1} parent=83 // pred_check
          %p613 = pneg %p246
        $region106: #{tpu_custom_call.1} parent=83 // pred_check_branch
          %615 = sbr.rel (%p613) target = $region108
        $region107: #{tpu_custom_call.1} parent=83 // pred_region
          %616 = dma.done [#allocation12], 2048
        $region108: #{tpu_custom_call.1} parent=83 // pred_fallthru
          _
        // Predicated region
        $region109: #{tpu_custom_call.1} parent=83 // pred_check
          %p617 = pneg %p288
        $region110: #{tpu_custom_call.1} parent=83 // pred_check_branch
          %619 = sbr.rel (%p617) target = $region112
        $region111: #{tpu_custom_call.1} parent=83 // pred_region
          %620 = dma.done [#allocation12], 2048
        $region112: #{tpu_custom_call.1} parent=83 // pred_fallthru
          _
        %s621 = sand.u32 %s60, 1
        %s622 = scalar_lea.sflag [#allocation3], %s621
        %s623 = sand.u32 %s60, 1
        %s624 = smul.addr %s623, 16
        %s625 = scalar_lea.vmem [#allocation2], %s624
        %p626 = pneg %p73
        %p627 = pneg %p70
        %s628 = sand.u32 %s38, 1
        %s629 = scalar_lea.sflag [#allocation6], %s628
        %s630 = sand.u32 %s86, 1
        %s631 = smul.addr %s630, 16
        %s632 = scalar_lea.vmem [#allocation5], %s631
        %p633 = pneg %p99
        %p634 = pneg %p96
        %p635 = pneg %p120
        %p636 = pneg %p117
        %p637 = pneg %p141
        %p638 = pneg %p138
        %p639 = pneg %p162
        %p640 = pneg %p159
        %p641 = pneg %p183
        %p642 = pneg %p180
        %p643 = pneg %p204
        %p644 = pneg %p201
        %p645 = pneg %p225
        %p646 = pneg %p222
        %p647 = pneg %p246
        %p648 = pneg %p243
        %p649 = pneg %p267
        %p650 = pneg %p264
        %p651 = pneg %p288
        %p652 = pneg %p285
        %p653 = pneg %p309
        %p654 = pneg %p306
        %p655 = pneg %p330
        %p656 = pneg %p327
        %p657 = pneg %p351
        %p658 = pneg %p348
        %p659 = pneg %p372
        %p660 = pneg %p369
        %p661 = pneg %p393
        %p662 = pneg %p390
        %p663 = pneg %p421
        %p664 = pneg %p418
        %s665 = sand.u32 %s408, 1
        %s666 = scalar_lea.sflag [#allocation4], %s665
        %s667 = sand.u32 %s408, 1
        %s668 = smul.addr %s667, 16
        %s669 = scalar_lea.vmem [#allocation14], %s668
        %s670 = smul.u32 2, %s43
        %s671 = smul.u32 2, %s43
        %v673 = vld [vmem:[%s587] sm:$0xff]
        %v674 = vld [vmem:[%s587 + $0x8] sm:$0xff]
        %v675 = vld [vmem:[%s596] sm:$0xff]
        %v676 = vld [vmem:[%s596 + $0x8] sm:$0xff]
        %v677 = vpack.c.bf16 %v674, %v673
        %v678 = vpack.c.bf16 %v676, %v675
        %v679 = vld [vmem:[#allocation7] sm:$0xf]
        %v680 = vld [vmem:[#allocation7 + $0x4] sm:$0xf]
        %v681 = vld [vmem:[#allocation7 + $0x8] sm:$0xf]
        %v682 = vld [vmem:[#allocation7 + $0xc] sm:$0xf]
        %v683 = vld [vmem:[#allocation7 + $0x10] sm:$0xf]
        %v684 = vld [vmem:[#allocation7 + $0x14] sm:$0xf]
        %v685 = vld [vmem:[#allocation7 + $0x18] sm:$0xf]
        %v686 = vld [vmem:[#allocation7 + $0x1c] sm:$0xf]
        %v687 = vld [vmem:[#allocation7 + $0x20] sm:$0xf]
        %v688 = vld [vmem:[#allocation7 + $0x24] sm:$0xf]
        %v689 = vld [vmem:[#allocation7 + $0x28] sm:$0xf]
        %v690 = vld [vmem:[#allocation7 + $0x2c] sm:$0xf]
        %v691 = vld [vmem:[#allocation7 + $0x30] sm:$0xf]
        %v692 = vld [vmem:[#allocation7 + $0x34] sm:$0xf]
        %v693 = vld [vmem:[#allocation7 + $0x38] sm:$0xf]
        %v694 = vld [vmem:[#allocation7 + $0x3c] sm:$0xf]
        %v695 = vld [vmem:[%s3] sm:$0x1]
        %v697 = vlaneseq
        %v698 = vshrl.u32 %v697, 7
        %v699 = vsub.s32 0, %v698
        %v700 = vrot.slane %v695, %v699
        %v718 = vunpack.c.l.b16 %v679
        %v719 = vunpack.c.l.b16 %v680
        %v720 = vunpack.c.l.b16 %v681
        %v721 = vunpack.c.l.b16 %v682
        %v722 = vunpack.c.l.b16 %v683
        %v723 = vunpack.c.l.b16 %v684
        %v724 = vunpack.c.l.b16 %v685
        %v725 = vunpack.c.l.b16 %v686
        %v726 = vunpack.c.l.b16 %v687
        %v727 = vunpack.c.l.b16 %v688
        %v728 = vunpack.c.l.b16 %v689
        %v729 = vunpack.c.l.b16 %v690
        %v730 = vunpack.c.l.b16 %v691
        %v731 = vunpack.c.l.b16 %v692
        %v732 = vunpack.c.l.b16 %v693
        %v733 = vunpack.c.l.b16 %v694
        %v734 = vpack.c.b16 %v719, %v718
        %v735 = vpack.c.b16 %v721, %v720
        %v736 = vpack.c.b16 %v723, %v722
        %v737 = vpack.c.b16 %v725, %v724
        %v738 = vpack.c.b16 %v727, %v726
        %v739 = vpack.c.b16 %v729, %v728
        %v740 = vpack.c.b16 %v731, %v730
        %v741 = vpack.c.b16 %v733, %v732
        %750 = vmatprep.subr.bf16.mxu0 0
        %751 = vmatpush1.bf16.msra.mxu0 %v741
        %752 = vmatprep.subr.bf16.mxu0 0
        %753 = vmatpush1.bf16.msra.mxu0 %v740
        %754 = vmatprep.subr.bf16.mxu0 0
        %755 = vmatpush1.bf16.msra.mxu0 %v739
        %756 = vmatprep.subr.bf16.mxu0 0
        %757 = vmatpush1.bf16.msra.mxu0 %v738
        %758 = vmatprep.subr.bf16.mxu0 0
        %759 = vmatpush1.bf16.msra.mxu0 %v737
        %760 = vmatprep.subr.bf16.mxu0 0
        %761 = vmatpush1.bf16.msra.mxu0 %v736
        %762 = vmatprep.subr.bf16.mxu0 0
        %763 = vmatpush1.bf16.msra.mxu0 %v735
        %764 = vmatprep.subr.bf16.mxu0 0
        %765 = vmatpush1.bf16.msra.mxu0 %v734
        %766 = vmatprep.subr.bf16.mxu0 0
        %767 = vmatpush2.bf16.msra.mxu0 0
        %768 = vmatprep.subr.bf16.mxu0 0
        %769 = vmatpush2.bf16.msra.mxu0 0
        %770 = vmatprep.subr.bf16.mxu0 0
        %771 = vmatpush2.bf16.msra.mxu0 0
        %772 = vmatprep.subr.bf16.mxu0 0
        %773 = vmatpush2.bf16.msra.mxu0 0
        %774 = vmatprep.subr.bf16.mxu0 0
        %775 = vmatpush2.bf16.msra.mxu0 0
        %776 = vmatprep.subr.bf16.mxu0 0
        %777 = vmatpush2.bf16.msra.mxu0 0
        %778 = vmatprep.subr.bf16.mxu0 0
        %779 = vmatpush2.bf16.msra.mxu0 0
        %780 = vmatprep.subr.bf16.mxu0 0
        %781 = vmatpush2.bf16.msra.mxu0 0
        %782 = vmatprep.mubr.bf16.mxu0 0
        %783 = vmatmul.mubr.bf16.gmra.mxu0 %v677
        %v784 = vpop.f32.mrf.mxu0
        %v785 = vadd.f32 %v700, %v784
        %v786 = vpop.f32.mrf.mxu0
        %v787 = vpop.f32.mrf.mxu0
        %v788 = vadd.f32 %v700, %v787
        %v789 = vpop.f32.mrf.mxu0
        %790 = vdwg.mxu0
        %v791 = vld [vmem:[#allocation8] sm:$0xff]
        %v792 = vld [vmem:[#allocation8 + $0x8] sm:$0xff]
        %v793 = vld [vmem:[#allocation8 + $0x10] sm:$0xff]
        %v794 = vld [vmem:[#allocation8 + $0x18] sm:$0xff]
        %v795 = vld [vmem:[#allocation8 + $0x20] sm:$0xff]
        %v796 = vld [vmem:[#allocation8 + $0x28] sm:$0xff]
        %v797 = vld [vmem:[#allocation8 + $0x30] sm:$0xff]
        %v798 = vld [vmem:[#allocation8 + $0x38] sm:$0xff]
        %v799 = vld [vmem:[#allocation8 + $0x40] sm:$0xff]
        %v800 = vld [vmem:[#allocation8 + $0x48] sm:$0xff]
        %v801 = vld [vmem:[#allocation8 + $0x50] sm:$0xff]
        %v802 = vld [vmem:[#allocation8 + $0x58] sm:$0xff]
        %v803 = vld [vmem:[#allocation8 + $0x60] sm:$0xff]
        %v804 = vld [vmem:[#allocation8 + $0x68] sm:$0xff]
        %v805 = vld [vmem:[#allocation8 + $0x70] sm:$0xff]
        %v806 = vld [vmem:[#allocation8 + $0x78] sm:$0xff]
        %v807 = vld [vmem:[%s5] sm:$0x3]
        %v809 = vlaneseq
        %v810 = vshrl.u32 %v809, 7
        %v811 = vsub.s32 0, %v810
        %v812 = vrot.slane %v807, %v811
        %v813 = vlaneseq
        %v814 = vshrl.u32 %v813, 7
        %v815 = vsub.s32 1, %v814
        %v816 = vrot.slane %v807, %v815
        %v835 = vunpack.c.l.b16 %v791
        %v836 = vunpack.c.h.b16 %v791
        %v837 = vunpack.c.l.b16 %v792
        %v838 = vunpack.c.h.b16 %v792
        %v839 = vunpack.c.l.b16 %v793
        %v840 = vunpack.c.h.b16 %v793
        %v841 = vunpack.c.l.b16 %v794
        %v842 = vunpack.c.h.b16 %v794
        %v843 = vunpack.c.l.b16 %v795
        %v844 = vunpack.c.h.b16 %v795
        %v845 = vunpack.c.l.b16 %v796
        %v846 = vunpack.c.h.b16 %v796
        %v847 = vunpack.c.l.b16 %v797
        %v848 = vunpack.c.h.b16 %v797
        %v849 = vunpack.c.l.b16 %v798
        %v850 = vunpack.c.h.b16 %v798
        %v851 = vunpack.c.l.b16 %v799
        %v852 = vunpack.c.h.b16 %v799
        %v853 = vunpack.c.l.b16 %v800
        %v854 = vunpack.c.h.b16 %v800
        %v855 = vunpack.c.l.b16 %v801
        %v856 = vunpack.c.h.b16 %v801
        %v857 = vunpack.c.l.b16 %v802
        %v858 = vunpack.c.h.b16 %v802
        %v859 = vunpack.c.l.b16 %v803
        %v860 = vunpack.c.h.b16 %v803
        %v861 = vunpack.c.l.b16 %v804
        %v862 = vunpack.c.h.b16 %v804
        %v863 = vunpack.c.l.b16 %v805
        %v864 = vunpack.c.h.b16 %v805
        %v865 = vunpack.c.l.b16 %v806
        %v866 = vunpack.c.h.b16 %v806
        %v867 = vpack.c.b16 %v837, %v835
        %v868 = vpack.c.b16 %v838, %v836
        %v869 = vpack.c.b16 %v841, %v839
        %v870 = vpack.c.b16 %v842, %v840
        %v871 = vpack.c.b16 %v845, %v843
        %v872 = vpack.c.b16 %v846, %v844
        %v873 = vpack.c.b16 %v849, %v847
        %v874 = vpack.c.b16 %v850, %v848
        %v875 = vpack.c.b16 %v853, %v851
        %v876 = vpack.c.b16 %v854, %v852
        %v877 = vpack.c.b16 %v857, %v855
        %v878 = vpack.c.b16 %v858, %v856
        %v879 = vpack.c.b16 %v861, %v859
        %v880 = vpack.c.b16 %v862, %v860
        %v881 = vpack.c.b16 %v865, %v863
        %v882 = vpack.c.b16 %v866, %v864
        %899 = vmatprep.subr.bf16.mxu0 %v882
        %900 = vmatpush1.bf16.msra.mxu0 %v881
        %901 = vmatprep.subr.bf16.mxu0 %v880
        %902 = vmatpush1.bf16.msra.mxu0 %v879
        %903 = vmatprep.subr.bf16.mxu0 %v878
        %904 = vmatpush1.bf16.msra.mxu0 %v877
        %905 = vmatprep.subr.bf16.mxu0 %v876
        %906 = vmatpush1.bf16.msra.mxu0 %v875
        %907 = vmatprep.subr.bf16.mxu0 %v874
        %908 = vmatpush1.bf16.msra.mxu0 %v873
        %909 = vmatprep.subr.bf16.mxu0 %v872
        %910 = vmatpush1.bf16.msra.mxu0 %v871
        %911 = vmatprep.subr.bf16.mxu0 %v870
        %912 = vmatpush1.bf16.msra.mxu0 %v869
        %913 = vmatprep.subr.bf16.mxu0 %v868
        %914 = vmatpush1.bf16.msra.mxu0 %v867
        %915 = vmatprep.subr.bf16.mxu0 0
        %916 = vmatpush2.bf16.msra.mxu0 0
        %917 = vmatprep.subr.bf16.mxu0 0
        %918 = vmatpush2.bf16.msra.mxu0 0
        %919 = vmatprep.subr.bf16.mxu0 0
        %920 = vmatpush2.bf16.msra.mxu0 0
        %921 = vmatprep.subr.bf16.mxu0 0
        %922 = vmatpush2.bf16.msra.mxu0 0
        %923 = vmatprep.subr.bf16.mxu0 0
        %924 = vmatpush2.bf16.msra.mxu0 0
        %925 = vmatprep.subr.bf16.mxu0 0
        %926 = vmatpush2.bf16.msra.mxu0 0
        %927 = vmatprep.subr.bf16.mxu0 0
        %928 = vmatpush2.bf16.msra.mxu0 0
        %929 = vmatprep.subr.bf16.mxu0 0
        %930 = vmatpush2.bf16.msra.mxu0 0
        %931 = vmatprep.mubr.bf16.mxu0 0
        %932 = vmatmul.mubr.bf16.gmra.mxu0 %v678
        %v933 = vpop.f32.mrf.mxu0
        %v934 = vadd.f32 %v812, %v933
        %v935 = vpop.f32.mrf.mxu0
        %v936 = vadd.f32 %v816, %v935
        %v937 = vpop.f32.mrf.mxu0
        %v938 = vadd.f32 %v812, %v937
        %v939 = vpop.f32.mrf.mxu0
        %v940 = vadd.f32 %v816, %v939
        %941 = vdwg.mxu0
        %v942 = vpack.c.bf16 %v788, %v785
        %v943 = vpack.c.bf16 %v938, %v934
        %v944 = vpack.c.bf16 %v940, %v936
        %vm945 = vcmask 261120
        %v947 = vsel %vm945, %v942, 0
        %v950 = vsel %vm945, %v943, 0
        %952 = vmatprep.subr.bf16.mxu0 0
        %953 = vmatpush1.bf16.xpose.msra.mxu0 0
        %954 = vmatprep.subr.bf16.mxu0 0
        %955 = vmatpush1.bf16.xpose.msra.mxu0 0
        %956 = vmatprep.subr.bf16.mxu0 0
        %957 = vmatpush1.bf16.xpose.msra.mxu0 0
        %958 = vmatprep.subr.bf16.mxu0 0
        %959 = vmatpush1.bf16.xpose.msra.mxu0 0
        %960 = vmatprep.subr.bf16.mxu0 0
        %961 = vmatpush1.bf16.xpose.msra.mxu0 0
        %962 = vmatprep.subr.bf16.mxu0 0
        %963 = vmatpush1.bf16.xpose.msra.mxu0 0
        %964 = vmatprep.subr.bf16.mxu0 0
        %965 = vmatpush1.bf16.xpose.msra.mxu0 0
        %966 = vmatprep.subr.bf16.mxu0 0
        %967 = vmatpush1.bf16.xpose.msra.mxu0 %v950
        %968 = vmatprep.subr.bf16.mxu0 0
        %969 = vmatpush2.bf16.xpose.msra.mxu0 0
        %970 = vmatprep.subr.bf16.mxu0 0
        %971 = vmatpush2.bf16.xpose.msra.mxu0 0
        %972 = vmatprep.subr.bf16.mxu0 0
        %973 = vmatpush2.bf16.xpose.msra.mxu0 0
        %974 = vmatprep.subr.bf16.mxu0 0
        %975 = vmatpush2.bf16.xpose.msra.mxu0 0
        %976 = vmatprep.subr.bf16.mxu0 0
        %977 = vmatpush2.bf16.xpose.msra.mxu0 0
        %978 = vmatprep.subr.bf16.mxu0 0
        %979 = vmatpush2.bf16.xpose.msra.mxu0 0
        %980 = vmatprep.subr.bf16.mxu0 0
        %981 = vmatpush2.bf16.xpose.msra.mxu0 0
        %982 = vmatprep.subr.bf16.mxu0 0
        %983 = vmatpush2.bf16.xpose.msra.mxu0 0
        %984 = vmatprep.mubr.bf16.mxu0 0
        %985 = vmatmul.mubr.bf16.gmra.mxu0 %v947
        %v986 = vpop.f32.mrf.mxu0
        %v987 = vadd.f32 0.0, %v986
        %v988 = vpop.f32.mrf.mxu0
        %v989 = vpop.f32.mrf.mxu0
        %v990 = vadd.f32 0.0, %v989
        %v991 = vpop.f32.mrf.mxu0
        %992 = vdwg.mxu0
        %vm993 = vcmask 130048
        %v994 = vsel %vm993, %v987, -inf
        %995 = vmax.xlane.f32.xlu0 %v994
        %v996 = vpop.xlane.xlu0 %995
        %v997 = vsel %vm993, %v990, -inf
        %998 = vmax.xlane.f32.xlu0 %v997
        %v999 = vpop.xlane.xlu0 %998
        %v1000 = vsub.f32 %v987, %v996
        %v1001 = vsub.f32 %v990, %v999
        %v1002 = vmul.f32 %v1000, 1.442695
        %v1003 = vpow.pop %v1002
        %v1004 = vmul.f32 %v1001, 1.442695
        %v1005 = vpow.pop %v1004
        %v1006 = vsel %vm993, %v1003, 0.0
        %1007 = vadd.xlane.f32.xlu0 %v1006
        %v1008 = vpop.xlane.xlu0 %1007
        %v1009 = vsel %vm993, %v1005, 0.0
        %1010 = vadd.xlane.f32.xlu0 %v1009
        %v1011 = vpop.xlane.xlu0 %1010
        %v1012 = vrcp.pop %v1008
        %v1013 = vrcp.pop %v1011
        %v1014 = vmul.f32 %v1003, %v1012
        %v1015 = vmul.f32 %v1005, %v1013
        %v1016 = vpack.c.bf16 %v1015, %v1014
        %v1018 = vsel %vm993, %v1016, 0
        %1020 = vmatprep.subr.bf16.mxu0 0
        %1021 = vmatpush1.bf16.msra.mxu0 0
        %1022 = vmatprep.subr.bf16.mxu0 0
        %1023 = vmatpush1.bf16.msra.mxu0 0
        %1024 = vmatprep.subr.bf16.mxu0 0
        %1025 = vmatpush1.bf16.msra.mxu0 0
        %1026 = vmatprep.subr.bf16.mxu0 0
        %1027 = vmatpush1.bf16.msra.mxu0 0
        %1028 = vmatprep.subr.bf16.mxu0 0
        %1029 = vmatpush1.bf16.msra.mxu0 0
        %1030 = vmatprep.subr.bf16.mxu0 0
        %1031 = vmatpush1.bf16.msra.mxu0 0
        %1032 = vmatprep.subr.bf16.mxu0 0
        %1033 = vmatpush1.bf16.msra.mxu0 0
        %1034 = vmatprep.subr.bf16.mxu0 0
        %1035 = vmatpush1.bf16.msra.mxu0 %v944
        %1036 = vmatprep.subr.bf16.mxu0 0
        %1037 = vmatpush2.bf16.msra.mxu0 0
        %1038 = vmatprep.subr.bf16.mxu0 0
        %1039 = vmatpush2.bf16.msra.mxu0 0
        %1040 = vmatprep.subr.bf16.mxu0 0
        %1041 = vmatpush2.bf16.msra.mxu0 0
        %1042 = vmatprep.subr.bf16.mxu0 0
        %1043 = vmatpush2.bf16.msra.mxu0 0
        %1044 = vmatprep.subr.bf16.mxu0 0
        %1045 = vmatpush2.bf16.msra.mxu0 0
        %1046 = vmatprep.subr.bf16.mxu0 0
        %1047 = vmatpush2.bf16.msra.mxu0 0
        %1048 = vmatprep.subr.bf16.mxu0 0
        %1049 = vmatpush2.bf16.msra.mxu0 0
        %1050 = vmatprep.subr.bf16.mxu0 0
        %1051 = vmatpush2.bf16.msra.mxu0 0
        %1052 = vmatprep.mubr.bf16.mxu0 0
        %1053 = vmatmul.mubr.bf16.gmra.mxu0 %v1018
        %v1054 = vpop.f32.mrf.mxu0
        %v1055 = vadd.f32 0.0, %v1054
        %v1056 = vpop.f32.mrf.mxu0
        %v1057 = vpop.f32.mrf.mxu0
        %v1058 = vadd.f32 0.0, %v1057
        %v1059 = vpop.f32.mrf.mxu0
        %1060 = vdwg.mxu0
        %v1061 = vpack.c.bf16 %v1058, %v1055
        %v1062 = vld [vmem:[#allocation10] sm:$0xf]
        %v1063 = vld [vmem:[#allocation10 + $0x4] sm:$0xf]
        %v1064 = vld [vmem:[#allocation10 + $0x8] sm:$0xf]
        %v1065 = vld [vmem:[#allocation10 + $0xc] sm:$0xf]
        %1067 = vrot.lane.b32.xlu0 %v942, 96
        %v1068 = vpop.permute.xlu0 %1067
        %1070 = vrot.lane.b32.xlu0 %v943, 96
        %v1071 = vpop.permute.xlu0 %1070
        %v1073 = vsel %vm945, %v1068, 0
        %v1076 = vsel %vm945, %v1071, 0
        %1078 = vmatprep.subr.bf16.mxu0 0
        %1079 = vmatpush1.bf16.xpose.msra.mxu0 0
        %1080 = vmatprep.subr.bf16.mxu0 0
        %1081 = vmatpush1.bf16.xpose.msra.mxu0 0
        %1082 = vmatprep.subr.bf16.mxu0 0
        %1083 = vmatpush1.bf16.xpose.msra.mxu0 0
        %1084 = vmatprep.subr.bf16.mxu0 0
        %1085 = vmatpush1.bf16.xpose.msra.mxu0 0
        %1086 = vmatprep.subr.bf16.mxu0 0
        %1087 = vmatpush1.bf16.xpose.msra.mxu0 0
        %1088 = vmatprep.subr.bf16.mxu0 0
        %1089 = vmatpush1.bf16.xpose.msra.mxu0 0
        %1090 = vmatprep.subr.bf16.mxu0 0
        %1091 = vmatpush1.bf16.xpose.msra.mxu0 0
        %1092 = vmatprep.subr.bf16.mxu0 0
        %1093 = vmatpush1.bf16.xpose.msra.mxu0 %v1076
        %1094 = vmatprep.subr.bf16.mxu0 0
        %1095 = vmatpush2.bf16.xpose.msra.mxu0 0
        %1096 = vmatprep.subr.bf16.mxu0 0
        %1097 = vmatpush2.bf16.xpose.msra.mxu0 0
        %1098 = vmatprep.subr.bf16.mxu0 0
        %1099 = vmatpush2.bf16.xpose.msra.mxu0 0
        %1100 = vmatprep.subr.bf16.mxu0 0
        %1101 = vmatpush2.bf16.xpose.msra.mxu0 0
        %1102 = vmatprep.subr.bf16.mxu0 0
        %1103 = vmatpush2.bf16.xpose.msra.mxu0 0
        %1104 = vmatprep.subr.bf16.mxu0 0
        %1105 = vmatpush2.bf16.xpose.msra.mxu0 0
        %1106 = vmatprep.subr.bf16.mxu0 0
        %1107 = vmatpush2.bf16.xpose.msra.mxu0 0
        %1108 = vmatprep.subr.bf16.mxu0 0
        %1109 = vmatpush2.bf16.xpose.msra.mxu0 0
        %1110 = vmatprep.mubr.bf16.mxu0 0
        %1111 = vmatmul.mubr.bf16.gmra.mxu0 %v1073
        %v1112 = vpop.f32.mrf.mxu0
        %v1113 = vadd.f32 0.0, %v1112
        %v1114 = vpop.f32.mrf.mxu0
        %v1115 = vpop.f32.mrf.mxu0
        %v1116 = vadd.f32 0.0, %v1115
        %v1117 = vpop.f32.mrf.mxu0
        %1118 = vdwg.mxu0
        %v1119 = vsel %vm993, %v1113, -inf
        %1120 = vmax.xlane.f32.xlu0 %v1119
        %v1121 = vpop.xlane.xlu0 %1120
        %v1122 = vsel %vm993, %v1116, -inf
        %1123 = vmax.xlane.f32.xlu0 %v1122
        %v1124 = vpop.xlane.xlu0 %1123
        %v1125 = vsub.f32 %v1113, %v1121
        %v1126 = vsub.f32 %v1116, %v1124
        %v1127 = vmul.f32 %v1125, 1.442695
        %v1128 = vpow.pop %v1127
        %v1129 = vmul.f32 %v1126, 1.442695
        %v1130 = vpow.pop %v1129
        %v1131 = vsel %vm993, %v1128, 0.0
        %1132 = vadd.xlane.f32.xlu0 %v1131
        %v1133 = vpop.xlane.xlu0 %1132
        %v1134 = vsel %vm993, %v1130, 0.0
        %1135 = vadd.xlane.f32.xlu0 %v1134
        %v1136 = vpop.xlane.xlu0 %1135
        %v1137 = vrcp.pop %v1133
        %v1138 = vrcp.pop %v1136
        %v1139 = vmul.f32 %v1128, %v1137
        %v1140 = vmul.f32 %v1130, %v1138
        %v1141 = vpack.c.bf16 %v1140, %v1139
        %1143 = vrot.lane.b32.xlu0 %v944, 96
        %v1144 = vpop.permute.xlu0 %1143
        %v1147 = vsel %vm993, %v1141, 0
        %1149 = vmatprep.subr.bf16.mxu0 0
        %1150 = vmatpush1.bf16.msra.mxu0 0
        %1151 = vmatprep.subr.bf16.mxu0 0
        %1152 = vmatpush1.bf16.msra.mxu0 0
        %1153 = vmatprep.subr.bf16.mxu0 0
        %1154 = vmatpush1.bf16.msra.mxu0 0
        %1155 = vmatprep.subr.bf16.mxu0 0
        %1156 = vmatpush1.bf16.msra.mxu0 0
        %1157 = vmatprep.subr.bf16.mxu0 0
        %1158 = vmatpush1.bf16.msra.mxu0 0
        %1159 = vmatprep.subr.bf16.mxu0 0
        %1160 = vmatpush1.bf16.msra.mxu0 0
        %1161 = vmatprep.subr.bf16.mxu0 0
        %1162 = vmatpush1.bf16.msra.mxu0 0
        %1163 = vmatprep.subr.bf16.mxu0 0
        %1164 = vmatpush1.bf16.msra.mxu0 %v1144
        %1165 = vmatprep.subr.bf16.mxu0 0
        %1166 = vmatpush2.bf16.msra.mxu0 0
        %1167 = vmatprep.subr.bf16.mxu0 0
        %1168 = vmatpush2.bf16.msra.mxu0 0
        %1169 = vmatprep.subr.bf16.mxu0 0
        %1170 = vmatpush2.bf16.msra.mxu0 0
        %1171 = vmatprep.subr.bf16.mxu0 0
        %1172 = vmatpush2.bf16.msra.mxu0 0
        %1173 = vmatprep.subr.bf16.mxu0 0
        %1174 = vmatpush2.bf16.msra.mxu0 0
        %1175 = vmatprep.subr.bf16.mxu0 0
        %1176 = vmatpush2.bf16.msra.mxu0 0
        %1177 = vmatprep.subr.bf16.mxu0 0
        %1178 = vmatpush2.bf16.msra.mxu0 0
        %1179 = vmatprep.subr.bf16.mxu0 0
        %1180 = vmatpush2.bf16.msra.mxu0 0
        %1181 = vmatprep.mubr.bf16.mxu0 0
        %1182 = vmatmul.mubr.bf16.gmra.mxu0 %v1147
        %v1183 = vpop.f32.mrf.mxu0
        %v1184 = vadd.f32 0.0, %v1183
        %v1185 = vpop.f32.mrf.mxu0
        %v1186 = vpop.f32.mrf.mxu0
        %v1187 = vadd.f32 0.0, %v1186
        %v1188 = vpop.f32.mrf.mxu0
        %1189 = vdwg.mxu0
        %v1190 = vpack.c.bf16 %v1187, %v1184
        %v1191 = vld [vmem:[#allocation10 + $0x10] sm:$0xf]
        %v1192 = vld [vmem:[#allocation10 + $0x14] sm:$0xf]
        %v1193 = vld [vmem:[#allocation10 + $0x18] sm:$0xf]
        %v1194 = vld [vmem:[#allocation10 + $0x1c] sm:$0xf]
        %v1199 = vunpack.c.l.b16 %v1191
        %v1200 = vunpack.c.l.b16 %v1192
        %v1201 = vunpack.c.l.b16 %v1193
        %v1202 = vunpack.c.l.b16 %v1194
        %v1203 = vpack.c.b16 %v1200, %v1199
        %v1204 = vpack.c.b16 %v1202, %v1201
        %v1208 = vsel %vm945, %v1190, 0
        %1210 = vmatprep.subr.bf16.mxu0 0
        %1211 = vmatpush1.bf16.msra.mxu0 0
        %1212 = vmatprep.subr.bf16.mxu0 0
        %1213 = vmatpush1.bf16.msra.mxu0 0
        %1214 = vmatprep.subr.bf16.mxu0 0
        %1215 = vmatpush1.bf16.msra.mxu0 0
        %1216 = vmatprep.subr.bf16.mxu0 0
        %1217 = vmatpush1.bf16.msra.mxu0 0
        %1218 = vmatprep.subr.bf16.mxu0 0
        %1219 = vmatpush1.bf16.msra.mxu0 0
        %1220 = vmatprep.subr.bf16.mxu0 0
        %1221 = vmatpush1.bf16.msra.mxu0 0
        %1222 = vmatprep.subr.bf16.mxu0 0
        %1223 = vmatpush1.bf16.msra.mxu0 %v1204
        %1224 = vmatprep.subr.bf16.mxu0 0
        %1225 = vmatpush1.bf16.msra.mxu0 %v1203
        %1226 = vmatprep.subr.bf16.mxu0 0
        %1227 = vmatpush2.bf16.msra.mxu0 0
        %1228 = vmatprep.subr.bf16.mxu0 0
        %1229 = vmatpush2.bf16.msra.mxu0 0
        %1230 = vmatprep.subr.bf16.mxu0 0
        %1231 = vmatpush2.bf16.msra.mxu0 0
        %1232 = vmatprep.subr.bf16.mxu0 0
        %1233 = vmatpush2.bf16.msra.mxu0 0
        %1234 = vmatprep.subr.bf16.mxu0 0
        %1235 = vmatpush2.bf16.msra.mxu0 0
        %1236 = vmatprep.subr.bf16.mxu0 0
        %1237 = vmatpush2.bf16.msra.mxu0 0
        %1238 = vmatprep.subr.bf16.mxu0 0
        %1239 = vmatpush2.bf16.msra.mxu0 0
        %1240 = vmatprep.subr.bf16.mxu0 0
        %1241 = vmatpush2.bf16.msra.mxu0 0
        %1242 = vmatprep.mubr.bf16.mxu0 0
        %1243 = vmatmul.mubr.bf16.gmra.mxu0 %v1208
        %v1244 = vpop.f32.mrf.mxu0
        %v1245 = vadd.f32 0.0, %v1244
        %v1246 = vpop.f32.mrf.mxu0
        %v1247 = vpop.f32.mrf.mxu0
        %v1248 = vadd.f32 0.0, %v1247
        %v1249 = vpop.f32.mrf.mxu0
        %1250 = vdwg.mxu0
        %v1255 = vunpack.c.l.b16 %v1062
        %v1256 = vunpack.c.l.b16 %v1063
        %v1257 = vunpack.c.l.b16 %v1064
        %v1258 = vunpack.c.l.b16 %v1065
        %v1259 = vpack.c.b16 %v1256, %v1255
        %v1260 = vpack.c.b16 %v1258, %v1257
        %v1264 = vsel %vm945, %v1061, 0
        %1266 = vmatprep.subr.bf16.mxu0 0
        %1267 = vmatpush1.bf16.msra.mxu0 0
        %1268 = vmatprep.subr.bf16.mxu0 0
        %1269 = vmatpush1.bf16.msra.mxu0 0
        %1270 = vmatprep.subr.bf16.mxu0 0
        %1271 = vmatpush1.bf16.msra.mxu0 0
        %1272 = vmatprep.subr.bf16.mxu0 0
        %1273 = vmatpush1.bf16.msra.mxu0 0
        %1274 = vmatprep.subr.bf16.mxu0 0
        %1275 = vmatpush1.bf16.msra.mxu0 0
        %1276 = vmatprep.subr.bf16.mxu0 0
        %1277 = vmatpush1.bf16.msra.mxu0 0
        %1278 = vmatprep.subr.bf16.mxu0 0
        %1279 = vmatpush1.bf16.msra.mxu0 %v1260
        %1280 = vmatprep.subr.bf16.mxu0 0
        %1281 = vmatpush1.bf16.msra.mxu0 %v1259
        %1282 = vmatprep.subr.bf16.mxu0 0
        %1283 = vmatpush2.bf16.msra.mxu0 0
        %1284 = vmatprep.subr.bf16.mxu0 0
        %1285 = vmatpush2.bf16.msra.mxu0 0
        %1286 = vmatprep.subr.bf16.mxu0 0
        %1287 = vmatpush2.bf16.msra.mxu0 0
        %1288 = vmatprep.subr.bf16.mxu0 0
        %1289 = vmatpush2.bf16.msra.mxu0 0
        %1290 = vmatprep.subr.bf16.mxu0 0
        %1291 = vmatpush2.bf16.msra.mxu0 0
        %1292 = vmatprep.subr.bf16.mxu0 0
        %1293 = vmatpush2.bf16.msra.mxu0 0
        %1294 = vmatprep.subr.bf16.mxu0 0
        %1295 = vmatpush2.bf16.msra.mxu0 0
        %1296 = vmatprep.subr.bf16.mxu0 0
        %1297 = vmatpush2.bf16.msra.mxu0 0
        %1298 = vmatprep.mubr.bf16.mxu0 0
        %1299 = vmatmul.mubr.bf16.gmra.mxu0 %v1264
        %v1300 = vpop.f32.mrf.mxu0
        %v1301 = vadd.f32 %v1245, %v1300
        %v1302 = vpop.f32.mrf.mxu0
        %v1303 = vpop.f32.mrf.mxu0
        %v1304 = vadd.f32 %v1248, %v1303
        %v1305 = vpop.f32.mrf.mxu0
        %1306 = vdwg.mxu0
        %1307 = vrot.lane.b32.xlu0 %v942, 64
        %v1308 = vpop.permute.xlu0 %1307
        %1309 = vrot.lane.b32.xlu0 %v943, 64
        %v1310 = vpop.permute.xlu0 %1309
        %v1312 = vsel %vm945, %v1308, 0
        %v1315 = vsel %vm945, %v1310, 0
        %1317 = vmatprep.subr.bf16.mxu0 0
        %1318 = vmatpush1.bf16.xpose.msra.mxu0 0
        %1319 = vmatprep.subr.bf16.mxu0 0
        %1320 = vmatpush1.bf16.xpose.msra.mxu0 0
        %1321 = vmatprep.subr.bf16.mxu0 0
        %1322 = vmatpush1.bf16.xpose.msra.mxu0 0
        %1323 = vmatprep.subr.bf16.mxu0 0
        %1324 = vmatpush1.bf16.xpose.msra.mxu0 0
        %1325 = vmatprep.subr.bf16.mxu0 0
        %1326 = vmatpush1.bf16.xpose.msra.mxu0 0
        %1327 = vmatprep.subr.bf16.mxu0 0
        %1328 = vmatpush1.bf16.xpose.msra.mxu0 0
        %1329 = vmatprep.subr.bf16.mxu0 0
        %1330 = vmatpush1.bf16.xpose.msra.mxu0 0
        %1331 = vmatprep.subr.bf16.mxu0 0
        %1332 = vmatpush1.bf16.xpose.msra.mxu0 %v1315
        %1333 = vmatprep.subr.bf16.mxu0 0
        %1334 = vmatpush2.bf16.xpose.msra.mxu0 0
        %1335 = vmatprep.subr.bf16.mxu0 0
        %1336 = vmatpush2.bf16.xpose.msra.mxu0 0
        %1337 = vmatprep.subr.bf16.mxu0 0
        %1338 = vmatpush2.bf16.xpose.msra.mxu0 0
        %1339 = vmatprep.subr.bf16.mxu0 0
        %1340 = vmatpush2.bf16.xpose.msra.mxu0 0
        %1341 = vmatprep.subr.bf16.mxu0 0
        %1342 = vmatpush2.bf16.xpose.msra.mxu0 0
        %1343 = vmatprep.subr.bf16.mxu0 0
        %1344 = vmatpush2.bf16.xpose.msra.mxu0 0
        %1345 = vmatprep.subr.bf16.mxu0 0
        %1346 = vmatpush2.bf16.xpose.msra.mxu0 0
        %1347 = vmatprep.subr.bf16.mxu0 0
        %1348 = vmatpush2.bf16.xpose.msra.mxu0 0
        %1349 = vmatprep.mubr.bf16.mxu0 0
        %1350 = vmatmul.mubr.bf16.gmra.mxu0 %v1312
        %v1351 = vpop.f32.mrf.mxu0
        %v1352 = vadd.f32 0.0, %v1351
        %v1353 = vpop.f32.mrf.mxu0
        %v1354 = vpop.f32.mrf.mxu0
        %v1355 = vadd.f32 0.0, %v1354
        %v1356 = vpop.f32.mrf.mxu0
        %1357 = vdwg.mxu0
        %v1358 = vsel %vm993, %v1352, -inf
        %1359 = vmax.xlane.f32.xlu0 %v1358
        %v1360 = vpop.xlane.xlu0 %1359
        %v1361 = vsel %vm993, %v1355, -inf
        %1362 = vmax.xlane.f32.xlu0 %v1361
        %v1363 = vpop.xlane.xlu0 %1362
        %v1364 = vsub.f32 %v1352, %v1360
        %v1365 = vsub.f32 %v1355, %v1363
        %v1366 = vmul.f32 %v1364, 1.442695
        %v1367 = vpow.pop %v1366
        %v1368 = vmul.f32 %v1365, 1.442695
        %v1369 = vpow.pop %v1368
        %v1370 = vsel %vm993, %v1367, 0.0
        %1371 = vadd.xlane.f32.xlu0 %v1370
        %v1372 = vpop.xlane.xlu0 %1371
        %v1373 = vsel %vm993, %v1369, 0.0
        %1374 = vadd.xlane.f32.xlu0 %v1373
        %v1375 = vpop.xlane.xlu0 %1374
        %v1376 = vrcp.pop %v1372
        %v1377 = vrcp.pop %v1375
        %v1378 = vmul.f32 %v1367, %v1376
        %v1379 = vmul.f32 %v1369, %v1377
        %v1380 = vpack.c.bf16 %v1379, %v1378
        %1381 = vrot.lane.b32.xlu0 %v944, 64
        %v1382 = vpop.permute.xlu0 %1381
        %v1385 = vsel %vm993, %v1380, 0
        %1387 = vmatprep.subr.bf16.mxu0 0
        %1388 = vmatpush1.bf16.msra.mxu0 0
        %1389 = vmatprep.subr.bf16.mxu0 0
        %1390 = vmatpush1.bf16.msra.mxu0 0
        %1391 = vmatprep.subr.bf16.mxu0 0
        %1392 = vmatpush1.bf16.msra.mxu0 0
        %1393 = vmatprep.subr.bf16.mxu0 0
        %1394 = vmatpush1.bf16.msra.mxu0 0
        %1395 = vmatprep.subr.bf16.mxu0 0
        %1396 = vmatpush1.bf16.msra.mxu0 0
        %1397 = vmatprep.subr.bf16.mxu0 0
        %1398 = vmatpush1.bf16.msra.mxu0 0
        %1399 = vmatprep.subr.bf16.mxu0 0
        %1400 = vmatpush1.bf16.msra.mxu0 0
        %1401 = vmatprep.subr.bf16.mxu0 0
        %1402 = vmatpush1.bf16.msra.mxu0 %v1382
        %1403 = vmatprep.subr.bf16.mxu0 0
        %1404 = vmatpush2.bf16.msra.mxu0 0
        %1405 = vmatprep.subr.bf16.mxu0 0
        %1406 = vmatpush2.bf16.msra.mxu0 0
        %1407 = vmatprep.subr.bf16.mxu0 0
        %1408 = vmatpush2.bf16.msra.mxu0 0
        %1409 = vmatprep.subr.bf16.mxu0 0
        %1410 = vmatpush2.bf16.msra.mxu0 0
        %1411 = vmatprep.subr.bf16.mxu0 0
        %1412 = vmatpush2.bf16.msra.mxu0 0
        %1413 = vmatprep.subr.bf16.mxu0 0
        %1414 = vmatpush2.bf16.msra.mxu0 0
        %1415 = vmatprep.subr.bf16.mxu0 0
        %1416 = vmatpush2.bf16.msra.mxu0 0
        %1417 = vmatprep.subr.bf16.mxu0 0
        %1418 = vmatpush2.bf16.msra.mxu0 0
        %1419 = vmatprep.mubr.bf16.mxu0 0
        %1420 = vmatmul.mubr.bf16.gmra.mxu0 %v1385
        %v1421 = vpop.f32.mrf.mxu0
        %v1422 = vadd.f32 0.0, %v1421
        %v1423 = vpop.f32.mrf.mxu0
        %v1424 = vpop.f32.mrf.mxu0
        %v1425 = vadd.f32 0.0, %v1424
        %v1426 = vpop.f32.mrf.mxu0
        %1427 = vdwg.mxu0
        %v1428 = vpack.c.bf16 %v1425, %v1422
        %v1429 = vld [vmem:[#allocation10 + $0x20] sm:$0xf]
        %v1430 = vld [vmem:[#allocation10 + $0x24] sm:$0xf]
        %v1431 = vld [vmem:[#allocation10 + $0x28] sm:$0xf]
        %v1432 = vld [vmem:[#allocation10 + $0x2c] sm:$0xf]
        %v1437 = vunpack.c.l.b16 %v1429
        %v1438 = vunpack.c.l.b16 %v1430
        %v1439 = vunpack.c.l.b16 %v1431
        %v1440 = vunpack.c.l.b16 %v1432
        %v1441 = vpack.c.b16 %v1438, %v1437
        %v1442 = vpack.c.b16 %v1440, %v1439
        %v1446 = vsel %vm945, %v1428, 0
        %1448 = vmatprep.subr.bf16.mxu0 0
        %1449 = vmatpush1.bf16.msra.mxu0 0
        %1450 = vmatprep.subr.bf16.mxu0 0
        %1451 = vmatpush1.bf16.msra.mxu0 0
        %1452 = vmatprep.subr.bf16.mxu0 0
        %1453 = vmatpush1.bf16.msra.mxu0 0
        %1454 = vmatprep.subr.bf16.mxu0 0
        %1455 = vmatpush1.bf16.msra.mxu0 0
        %1456 = vmatprep.subr.bf16.mxu0 0
        %1457 = vmatpush1.bf16.msra.mxu0 0
        %1458 = vmatprep.subr.bf16.mxu0 0
        %1459 = vmatpush1.bf16.msra.mxu0 0
        %1460 = vmatprep.subr.bf16.mxu0 0
        %1461 = vmatpush1.bf16.msra.mxu0 %v1442
        %1462 = vmatprep.subr.bf16.mxu0 0
        %1463 = vmatpush1.bf16.msra.mxu0 %v1441
        %1464 = vmatprep.subr.bf16.mxu0 0
        %1465 = vmatpush2.bf16.msra.mxu0 0
        %1466 = vmatprep.subr.bf16.mxu0 0
        %1467 = vmatpush2.bf16.msra.mxu0 0
        %1468 = vmatprep.subr.bf16.mxu0 0
        %1469 = vmatpush2.bf16.msra.mxu0 0
        %1470 = vmatprep.subr.bf16.mxu0 0
        %1471 = vmatpush2.bf16.msra.mxu0 0
        %1472 = vmatprep.subr.bf16.mxu0 0
        %1473 = vmatpush2.bf16.msra.mxu0 0
        %1474 = vmatprep.subr.bf16.mxu0 0
        %1475 = vmatpush2.bf16.msra.mxu0 0
        %1476 = vmatprep.subr.bf16.mxu0 0
        %1477 = vmatpush2.bf16.msra.mxu0 0
        %1478 = vmatprep.subr.bf16.mxu0 0
        %1479 = vmatpush2.bf16.msra.mxu0 0
        %1480 = vmatprep.mubr.bf16.mxu0 0
        %1481 = vmatmul.mubr.bf16.gmra.mxu0 %v1446
        %v1482 = vpop.f32.mrf.mxu0
        %v1483 = vadd.f32 0.0, %v1482
        %v1484 = vpop.f32.mrf.mxu0
        %v1485 = vpop.f32.mrf.mxu0
        %v1486 = vadd.f32 0.0, %v1485
        %v1487 = vpop.f32.mrf.mxu0
        %1488 = vdwg.mxu0
        %v1489 = vadd.f32 %v1301, %v1483
        %v1490 = vadd.f32 %v1304, %v1486
        %1491 = vrot.lane.b32.xlu0 %v942, 32
        %v1492 = vpop.permute.xlu0 %1491
        %1493 = vrot.lane.b32.xlu0 %v943, 32
        %v1494 = vpop.permute.xlu0 %1493
        %v1496 = vsel %vm945, %v1492, 0
        %v1499 = vsel %vm945, %v1494, 0
        %1501 = vmatprep.subr.bf16.mxu0 0
        %1502 = vmatpush1.bf16.xpose.msra.mxu0 0
        %1503 = vmatprep.subr.bf16.mxu0 0
        %1504 = vmatpush1.bf16.xpose.msra.mxu0 0
        %1505 = vmatprep.subr.bf16.mxu0 0
        %1506 = vmatpush1.bf16.xpose.msra.mxu0 0
        %1507 = vmatprep.subr.bf16.mxu0 0
        %1508 = vmatpush1.bf16.xpose.msra.mxu0 0
        %1509 = vmatprep.subr.bf16.mxu0 0
        %1510 = vmatpush1.bf16.xpose.msra.mxu0 0
        %1511 = vmatprep.subr.bf16.mxu0 0
        %1512 = vmatpush1.bf16.xpose.msra.mxu0 0
        %1513 = vmatprep.subr.bf16.mxu0 0
        %1514 = vmatpush1.bf16.xpose.msra.mxu0 0
        %1515 = vmatprep.subr.bf16.mxu0 0
        %1516 = vmatpush1.bf16.xpose.msra.mxu0 %v1499
        %1517 = vmatprep.subr.bf16.mxu0 0
        %1518 = vmatpush2.bf16.xpose.msra.mxu0 0
        %1519 = vmatprep.subr.bf16.mxu0 0
        %1520 = vmatpush2.bf16.xpose.msra.mxu0 0
        %1521 = vmatprep.subr.bf16.mxu0 0
        %1522 = vmatpush2.bf16.xpose.msra.mxu0 0
        %1523 = vmatprep.subr.bf16.mxu0 0
        %1524 = vmatpush2.bf16.xpose.msra.mxu0 0
        %1525 = vmatprep.subr.bf16.mxu0 0
        %1526 = vmatpush2.bf16.xpose.msra.mxu0 0
        %1527 = vmatprep.subr.bf16.mxu0 0
        %1528 = vmatpush2.bf16.xpose.msra.mxu0 0
        %1529 = vmatprep.subr.bf16.mxu0 0
        %1530 = vmatpush2.bf16.xpose.msra.mxu0 0
        %1531 = vmatprep.subr.bf16.mxu0 0
        %1532 = vmatpush2.bf16.xpose.msra.mxu0 0
        %1533 = vmatprep.mubr.bf16.mxu0 0
        %1534 = vmatmul.mubr.bf16.gmra.mxu0 %v1496
        %v1535 = vpop.f32.mrf.mxu0
        %v1536 = vadd.f32 0.0, %v1535
        %v1537 = vpop.f32.mrf.mxu0
        %v1538 = vpop.f32.mrf.mxu0
        %v1539 = vadd.f32 0.0, %v1538
        %v1540 = vpop.f32.mrf.mxu0
        %1541 = vdwg.mxu0
        %v1542 = vsel %vm993, %v1536, -inf
        %1543 = vmax.xlane.f32.xlu0 %v1542
        %v1544 = vpop.xlane.xlu0 %1543
        %v1545 = vsel %vm993, %v1539, -inf
        %1546 = vmax.xlane.f32.xlu0 %v1545
        %v1547 = vpop.xlane.xlu0 %1546
        %v1548 = vsub.f32 %v1536, %v1544
        %v1549 = vsub.f32 %v1539, %v1547
        %v1550 = vmul.f32 %v1548, 1.442695
        %v1551 = vpow.pop %v1550
        %v1552 = vmul.f32 %v1549, 1.442695
        %v1553 = vpow.pop %v1552
        %v1554 = vsel %vm993, %v1551, 0.0
        %1555 = vadd.xlane.f32.xlu0 %v1554
        %v1556 = vpop.xlane.xlu0 %1555
        %v1557 = vsel %vm993, %v1553, 0.0
        %1558 = vadd.xlane.f32.xlu0 %v1557
        %v1559 = vpop.xlane.xlu0 %1558
        %v1560 = vrcp.pop %v1556
        %v1561 = vrcp.pop %v1559
        %v1562 = vmul.f32 %v1551, %v1560
        %v1563 = vmul.f32 %v1553, %v1561
        %v1564 = vpack.c.bf16 %v1563, %v1562
        %1565 = vrot.lane.b32.xlu0 %v944, 32
        %v1566 = vpop.permute.xlu0 %1565
        %v1569 = vsel %vm993, %v1564, 0
        %1571 = vmatprep.subr.bf16.mxu0 0
        %1572 = vmatpush1.bf16.msra.mxu0 0
        %1573 = vmatprep.subr.bf16.mxu0 0
        %1574 = vmatpush1.bf16.msra.mxu0 0
        %1575 = vmatprep.subr.bf16.mxu0 0
        %1576 = vmatpush1.bf16.msra.mxu0 0
        %1577 = vmatprep.subr.bf16.mxu0 0
        %1578 = vmatpush1.bf16.msra.mxu0 0
        %1579 = vmatprep.subr.bf16.mxu0 0
        %1580 = vmatpush1.bf16.msra.mxu0 0
        %1581 = vmatprep.subr.bf16.mxu0 0
        %1582 = vmatpush1.bf16.msra.mxu0 0
        %1583 = vmatprep.subr.bf16.mxu0 0
        %1584 = vmatpush1.bf16.msra.mxu0 0
        %1585 = vmatprep.subr.bf16.mxu0 0
        %1586 = vmatpush1.bf16.msra.mxu0 %v1566
        %1587 = vmatprep.subr.bf16.mxu0 0
        %1588 = vmatpush2.bf16.msra.mxu0 0
        %1589 = vmatprep.subr.bf16.mxu0 0
        %1590 = vmatpush2.bf16.msra.mxu0 0
        %1591 = vmatprep.subr.bf16.mxu0 0
        %1592 = vmatpush2.bf16.msra.mxu0 0
        %1593 = vmatprep.subr.bf16.mxu0 0
        %1594 = vmatpush2.bf16.msra.mxu0 0
        %1595 = vmatprep.subr.bf16.mxu0 0
        %1596 = vmatpush2.bf16.msra.mxu0 0
        %1597 = vmatprep.subr.bf16.mxu0 0
        %1598 = vmatpush2.bf16.msra.mxu0 0
        %1599 = vmatprep.subr.bf16.mxu0 0
        %1600 = vmatpush2.bf16.msra.mxu0 0
        %1601 = vmatprep.subr.bf16.mxu0 0
        %1602 = vmatpush2.bf16.msra.mxu0 0
        %1603 = vmatprep.mubr.bf16.mxu0 0
        %1604 = vmatmul.mubr.bf16.gmra.mxu0 %v1569
        %v1605 = vpop.f32.mrf.mxu0
        %v1606 = vadd.f32 0.0, %v1605
        %v1607 = vpop.f32.mrf.mxu0
        %v1608 = vpop.f32.mrf.mxu0
        %v1609 = vadd.f32 0.0, %v1608
        %v1610 = vpop.f32.mrf.mxu0
        %1611 = vdwg.mxu0
        %v1612 = vpack.c.bf16 %v1609, %v1606
        %v1613 = vld [vmem:[#allocation10 + $0x30] sm:$0xf]
        %v1614 = vld [vmem:[#allocation10 + $0x34] sm:$0xf]
        %v1615 = vld [vmem:[#allocation10 + $0x38] sm:$0xf]
        %v1616 = vld [vmem:[#allocation10 + $0x3c] sm:$0xf]
        %v1621 = vunpack.c.l.b16 %v1613
        %v1622 = vunpack.c.l.b16 %v1614
        %v1623 = vunpack.c.l.b16 %v1615
        %v1624 = vunpack.c.l.b16 %v1616
        %v1625 = vpack.c.b16 %v1622, %v1621
        %v1626 = vpack.c.b16 %v1624, %v1623
        %v1630 = vsel %vm945, %v1612, 0
        %1632 = vmatprep.subr.bf16.mxu0 0
        %1633 = vmatpush1.bf16.msra.mxu0 0
        %1634 = vmatprep.subr.bf16.mxu0 0
        %1635 = vmatpush1.bf16.msra.mxu0 0
        %1636 = vmatprep.subr.bf16.mxu0 0
        %1637 = vmatpush1.bf16.msra.mxu0 0
        %1638 = vmatprep.subr.bf16.mxu0 0
        %1639 = vmatpush1.bf16.msra.mxu0 0
        %1640 = vmatprep.subr.bf16.mxu0 0
        %1641 = vmatpush1.bf16.msra.mxu0 0
        %1642 = vmatprep.subr.bf16.mxu0 0
        %1643 = vmatpush1.bf16.msra.mxu0 0
        %1644 = vmatprep.subr.bf16.mxu0 0
        %1645 = vmatpush1.bf16.msra.mxu0 %v1626
        %1646 = vmatprep.subr.bf16.mxu0 0
        %1647 = vmatpush1.bf16.msra.mxu0 %v1625
        %1648 = vmatprep.subr.bf16.mxu0 0
        %1649 = vmatpush2.bf16.msra.mxu0 0
        %1650 = vmatprep.subr.bf16.mxu0 0
        %1651 = vmatpush2.bf16.msra.mxu0 0
        %1652 = vmatprep.subr.bf16.mxu0 0
        %1653 = vmatpush2.bf16.msra.mxu0 0
        %1654 = vmatprep.subr.bf16.mxu0 0
        %1655 = vmatpush2.bf16.msra.mxu0 0
        %1656 = vmatprep.subr.bf16.mxu0 0
        %1657 = vmatpush2.bf16.msra.mxu0 0
        %1658 = vmatprep.subr.bf16.mxu0 0
        %1659 = vmatpush2.bf16.msra.mxu0 0
        %1660 = vmatprep.subr.bf16.mxu0 0
        %1661 = vmatpush2.bf16.msra.mxu0 0
        %1662 = vmatprep.subr.bf16.mxu0 0
        %1663 = vmatpush2.bf16.msra.mxu0 0
        %1664 = vmatprep.mubr.bf16.mxu0 0
        %1665 = vmatmul.mubr.bf16.gmra.mxu0 %v1630
        %v1666 = vpop.f32.mrf.mxu0
        %v1667 = vadd.f32 0.0, %v1666
        %v1668 = vpop.f32.mrf.mxu0
        %v1669 = vpop.f32.mrf.mxu0
        %v1670 = vadd.f32 0.0, %v1669
        %v1671 = vpop.f32.mrf.mxu0
        %1672 = vdwg.mxu0
        %v1673 = vadd.f32 %v1489, %v1667
        %v1674 = vadd.f32 %v1490, %v1670
        %v1675 = vld [vmem:[%s7] sm:$0x1]
        %v1677 = vlaneseq
        %v1678 = vshrl.u32 %v1677, 7
        %v1679 = vsub.s32 0, %v1678
        %v1680 = vrot.slane %v1675, %v1679
        %v1682 = vadd.f32 %v1673, %v1680
        %v1683 = vadd.f32 %v1674, %v1680
        %v1684 = vadd.f32 %v673, %v1682
        %v1685 = vadd.f32 %v674, %v1683
        %v1686 = vld [vmem:[%s12] sm:$0x1]
        %v1687 = vld [vmem:[%s13] sm:$0x1]
        %1688 = vadd.xlane.f32.xlu0 %v1684
        %v1689 = vpop.xlane.xlu0 %1688
        %1690 = vadd.xlane.f32.xlu0 %v1685
        %v1691 = vpop.xlane.xlu0 %1690
        %v1692 = vrcp.pop 128.0
        %v1693 = vmul.f32 %v1689, %v1692
        %v1694 = vmul.f32 %v1691, %v1692
        %v1695 = vsub.f32 %v1684, %v1693
        %v1696 = vsub.f32 %v1685, %v1694
        %v1697 = vmul.f32 %v1695, %v1695
        %v1698 = vmul.f32 %v1696, %v1696
        %1699 = vadd.xlane.f32.xlu0 %v1697
        %v1700 = vpop.xlane.xlu0 %1699
        %1701 = vadd.xlane.f32.xlu0 %v1698
        %v1702 = vpop.xlane.xlu0 %1701
        %v1703 = vmul.f32 %v1700, %v1692
        %v1704 = vmul.f32 %v1702, %v1692
        %v1705 = vadd.f32 %v1703, 1e-05
        %v1706 = vadd.f32 %v1704, 1e-05
        %v1707 = vrsqrt.pop %v1705
        %v1708 = vrsqrt.pop %v1706
        %v1709 = vmul.f32 %v1695, %v1707
        %v1710 = vmul.f32 %v1696, %v1708
        %v1712 = vlaneseq
        %v1713 = vshrl.u32 %v1712, 7
        %v1714 = vsub.s32 0, %v1713
        %v1715 = vrot.slane %v1686, %v1714
        %v1717 = vmul.f32 %v1709, %v1715
        %v1718 = vmul.f32 %v1710, %v1715
        %v1720 = vlaneseq
        %v1721 = vshrl.u32 %v1720, 7
        %v1722 = vsub.s32 0, %v1721
        %v1723 = vrot.slane %v1687, %v1722
        %v1725 = vadd.f32 %v1717, %v1723
        %v1726 = vadd.f32 %v1718, %v1723
        %v1727 = vpack.c.bf16 %v1726, %v1725
        %v1728 = vld [vmem:[#allocation11] sm:$0xff]
        %v1729 = vld [vmem:[#allocation11 + $0x8] sm:$0xff]
        %v1730 = vld [vmem:[#allocation11 + $0x10] sm:$0xff]
        %v1731 = vld [vmem:[#allocation11 + $0x18] sm:$0xff]
        %v1732 = vld [vmem:[#allocation11 + $0x20] sm:$0xff]
        %v1733 = vld [vmem:[#allocation11 + $0x28] sm:$0xff]
        %v1734 = vld [vmem:[#allocation11 + $0x30] sm:$0xff]
        %v1735 = vld [vmem:[#allocation11 + $0x38] sm:$0xff]
        %v1736 = vld [vmem:[#allocation11 + $0x40] sm:$0xff]
        %v1737 = vld [vmem:[#allocation11 + $0x48] sm:$0xff]
        %v1738 = vld [vmem:[#allocation11 + $0x50] sm:$0xff]
        %v1739 = vld [vmem:[#allocation11 + $0x58] sm:$0xff]
        %v1740 = vld [vmem:[#allocation11 + $0x60] sm:$0xff]
        %v1741 = vld [vmem:[#allocation11 + $0x68] sm:$0xff]
        %v1742 = vld [vmem:[#allocation11 + $0x70] sm:$0xff]
        %v1743 = vld [vmem:[#allocation11 + $0x78] sm:$0xff]
        %v1744 = vld [vmem:[%s9] sm:$0x3]
        %v1746 = vlaneseq
        %v1747 = vshrl.u32 %v1746, 7
        %v1748 = vsub.s32 0, %v1747
        %v1749 = vrot.slane %v1744, %v1748
        %v1750 = vlaneseq
        %v1751 = vshrl.u32 %v1750, 7
        %v1752 = vsub.s32 1, %v1751
        %v1753 = vrot.slane %v1744, %v1752
        %v1772 = vunpack.c.l.b16 %v1728
        %v1773 = vunpack.c.h.b16 %v1728
        %v1774 = vunpack.c.l.b16 %v1729
        %v1775 = vunpack.c.h.b16 %v1729
        %v1776 = vunpack.c.l.b16 %v1730
        %v1777 = vunpack.c.h.b16 %v1730
        %v1778 = vunpack.c.l.b16 %v1731
        %v1779 = vunpack.c.h.b16 %v1731
        %v1780 = vunpack.c.l.b16 %v1732
        %v1781 = vunpack.c.h.b16 %v1732
        %v1782 = vunpack.c.l.b16 %v1733
        %v1783 = vunpack.c.h.b16 %v1733
        %v1784 = vunpack.c.l.b16 %v1734
        %v1785 = vunpack.c.h.b16 %v1734
        %v1786 = vunpack.c.l.b16 %v1735
        %v1787 = vunpack.c.h.b16 %v1735
        %v1788 = vunpack.c.l.b16 %v1736
        %v1789 = vunpack.c.h.b16 %v1736
        %v1790 = vunpack.c.l.b16 %v1737
        %v1791 = vunpack.c.h.b16 %v1737
        %v1792 = vunpack.c.l.b16 %v1738
        %v1793 = vunpack.c.h.b16 %v1738
        %v1794 = vunpack.c.l.b16 %v1739
        %v1795 = vunpack.c.h.b16 %v1739
        %v1796 = vunpack.c.l.b16 %v1740
        %v1797 = vunpack.c.h.b16 %v1740
        %v1798 = vunpack.c.l.b16 %v1741
        %v1799 = vunpack.c.h.b16 %v1741
        %v1800 = vunpack.c.l.b16 %v1742
        %v1801 = vunpack.c.h.b16 %v1742
        %v1802 = vunpack.c.l.b16 %v1743
        %v1803 = vunpack.c.h.b16 %v1743
        %v1804 = vpack.c.b16 %v1774, %v1772
        %v1805 = vpack.c.b16 %v1775, %v1773
        %v1806 = vpack.c.b16 %v1778, %v1776
        %v1807 = vpack.c.b16 %v1779, %v1777
        %v1808 = vpack.c.b16 %v1782, %v1780
        %v1809 = vpack.c.b16 %v1783, %v1781
        %v1810 = vpack.c.b16 %v1786, %v1784
        %v1811 = vpack.c.b16 %v1787, %v1785
        %v1812 = vpack.c.b16 %v1790, %v1788
        %v1813 = vpack.c.b16 %v1791, %v1789
        %v1814 = vpack.c.b16 %v1794, %v1792
        %v1815 = vpack.c.b16 %v1795, %v1793
        %v1816 = vpack.c.b16 %v1798, %v1796
        %v1817 = vpack.c.b16 %v1799, %v1797
        %v1818 = vpack.c.b16 %v1802, %v1800
        %v1819 = vpack.c.b16 %v1803, %v1801
        %1836 = vmatprep.subr.bf16.mxu0 %v1819
        %1837 = vmatpush1.bf16.msra.mxu0 %v1818
        %1838 = vmatprep.subr.bf16.mxu0 %v1817
        %1839 = vmatpush1.bf16.msra.mxu0 %v1816
        %1840 = vmatprep.subr.bf16.mxu0 %v1815
        %1841 = vmatpush1.bf16.msra.mxu0 %v1814
        %1842 = vmatprep.subr.bf16.mxu0 %v1813
        %1843 = vmatpush1.bf16.msra.mxu0 %v1812
        %1844 = vmatprep.subr.bf16.mxu0 %v1811
        %1845 = vmatpush1.bf16.msra.mxu0 %v1810
        %1846 = vmatprep.subr.bf16.mxu0 %v1809
        %1847 = vmatpush1.bf16.msra.mxu0 %v1808
        %1848 = vmatprep.subr.bf16.mxu0 %v1807
        %1849 = vmatpush1.bf16.msra.mxu0 %v1806
        %1850 = vmatprep.subr.bf16.mxu0 %v1805
        %1851 = vmatpush1.bf16.msra.mxu0 %v1804
        %1852 = vmatprep.subr.bf16.mxu0 0
        %1853 = vmatpush2.bf16.msra.mxu0 0
        %1854 = vmatprep.subr.bf16.mxu0 0
        %1855 = vmatpush2.bf16.msra.mxu0 0
        %1856 = vmatprep.subr.bf16.mxu0 0
        %1857 = vmatpush2.bf16.msra.mxu0 0
        %1858 = vmatprep.subr.bf16.mxu0 0
        %1859 = vmatpush2.bf16.msra.mxu0 0
        %1860 = vmatprep.subr.bf16.mxu0 0
        %1861 = vmatpush2.bf16.msra.mxu0 0
        %1862 = vmatprep.subr.bf16.mxu0 0
        %1863 = vmatpush2.bf16.msra.mxu0 0
        %1864 = vmatprep.subr.bf16.mxu0 0
        %1865 = vmatpush2.bf16.msra.mxu0 0
        %1866 = vmatprep.subr.bf16.mxu0 0
        %1867 = vmatpush2.bf16.msra.mxu0 0
        %1868 = vmatprep.mubr.bf16.mxu0 0
        %1869 = vmatmul.mubr.bf16.gmra.mxu0 %v1727
        %v1870 = vpop.f32.mrf.mxu0
        %v1871 = vadd.f32 %v1749, %v1870
        %v1872 = vpop.f32.mrf.mxu0
        %v1873 = vadd.f32 %v1753, %v1872
        %v1874 = vpop.f32.mrf.mxu0
        %v1875 = vadd.f32 %v1749, %v1874
        %v1876 = vpop.f32.mrf.mxu0
        %v1877 = vadd.f32 %v1753, %v1876
        %1878 = vdwg.mxu0
        %v1879 = vmax.f32 %v1871, 0.0
        %v1880 = vmax.f32 %v1873, 0.0
        %v1881 = vmax.f32 %v1875, 0.0
        %v1882 = vmax.f32 %v1877, 0.0
        %v1883 = vpack.c.bf16 %v1881, %v1879
        %v1884 = vpack.c.bf16 %v1882, %v1880
        %v1885 = vld [vmem:[#allocation13] sm:$0xf]
        %v1886 = vld [vmem:[#allocation13 + $0x4] sm:$0xf]
        %v1887 = vld [vmem:[#allocation13 + $0x8] sm:$0xf]
        %v1888 = vld [vmem:[#allocation13 + $0xc] sm:$0xf]
        %v1889 = vld [vmem:[#allocation13 + $0x10] sm:$0xf]
        %v1890 = vld [vmem:[#allocation13 + $0x14] sm:$0xf]
        %v1891 = vld [vmem:[#allocation13 + $0x18] sm:$0xf]
        %v1892 = vld [vmem:[#allocation13 + $0x1c] sm:$0xf]
        %v1893 = vld [vmem:[#allocation13 + $0x20] sm:$0xf]
        %v1894 = vld [vmem:[#allocation13 + $0x24] sm:$0xf]
        %v1895 = vld [vmem:[#allocation13 + $0x28] sm:$0xf]
        %v1896 = vld [vmem:[#allocation13 + $0x2c] sm:$0xf]
        %v1897 = vld [vmem:[#allocation13 + $0x30] sm:$0xf]
        %v1898 = vld [vmem:[#allocation13 + $0x34] sm:$0xf]
        %v1899 = vld [vmem:[#allocation13 + $0x38] sm:$0xf]
        %v1900 = vld [vmem:[#allocation13 + $0x3c] sm:$0xf]
        %v1901 = vld [vmem:[#allocation13 + $0x40] sm:$0xf]
        %v1902 = vld [vmem:[#allocation13 + $0x44] sm:$0xf]
        %v1903 = vld [vmem:[#allocation13 + $0x48] sm:$0xf]
        %v1904 = vld [vmem:[#allocation13 + $0x4c] sm:$0xf]
        %v1905 = vld [vmem:[#allocation13 + $0x50] sm:$0xf]
        %v1906 = vld [vmem:[#allocation13 + $0x54] sm:$0xf]
        %v1907 = vld [vmem:[#allocation13 + $0x58] sm:$0xf]
        %v1908 = vld [vmem:[#allocation13 + $0x5c] sm:$0xf]
        %v1909 = vld [vmem:[#allocation13 + $0x60] sm:$0xf]
        %v1910 = vld [vmem:[#allocation13 + $0x64] sm:$0xf]
        %v1911 = vld [vmem:[#allocation13 + $0x68] sm:$0xf]
        %v1912 = vld [vmem:[#allocation13 + $0x6c] sm:$0xf]
        %v1913 = vld [vmem:[#allocation13 + $0x70] sm:$0xf]
        %v1914 = vld [vmem:[#allocation13 + $0x74] sm:$0xf]
        %v1915 = vld [vmem:[#allocation13 + $0x78] sm:$0xf]
        %v1916 = vld [vmem:[#allocation13 + $0x7c] sm:$0xf]
        %v1917 = vld [vmem:[%s11] sm:$0x1]
        %v1919 = vlaneseq
        %v1920 = vshrl.u32 %v1919, 7
        %v1921 = vsub.s32 0, %v1920
        %v1922 = vrot.slane %v1917, %v1921
        %v1956 = vunpack.c.l.b16 %v1885
        %v1957 = vunpack.c.l.b16 %v1886
        %v1958 = vunpack.c.l.b16 %v1887
        %v1959 = vunpack.c.l.b16 %v1888
        %v1960 = vunpack.c.l.b16 %v1889
        %v1961 = vunpack.c.l.b16 %v1890
        %v1962 = vunpack.c.l.b16 %v1891
        %v1963 = vunpack.c.l.b16 %v1892
        %v1964 = vunpack.c.l.b16 %v1893
        %v1965 = vunpack.c.l.b16 %v1894
        %v1966 = vunpack.c.l.b16 %v1895
        %v1967 = vunpack.c.l.b16 %v1896
        %v1968 = vunpack.c.l.b16 %v1897
        %v1969 = vunpack.c.l.b16 %v1898
        %v1970 = vunpack.c.l.b16 %v1899
        %v1971 = vunpack.c.l.b16 %v1900
        %v1972 = vunpack.c.l.b16 %v1901
        %v1973 = vunpack.c.l.b16 %v1902
        %v1974 = vunpack.c.l.b16 %v1903
        %v1975 = vunpack.c.l.b16 %v1904
        %v1976 = vunpack.c.l.b16 %v1905
        %v1977 = vunpack.c.l.b16 %v1906
        %v1978 = vunpack.c.l.b16 %v1907
        %v1979 = vunpack.c.l.b16 %v1908
        %v1980 = vunpack.c.l.b16 %v1909
        %v1981 = vunpack.c.l.b16 %v1910
        %v1982 = vunpack.c.l.b16 %v1911
        %v1983 = vunpack.c.l.b16 %v1912
        %v1984 = vunpack.c.l.b16 %v1913
        %v1985 = vunpack.c.l.b16 %v1914
        %v1986 = vunpack.c.l.b16 %v1915
        %v1987 = vunpack.c.l.b16 %v1916
        %v1988 = vpack.c.b16 %v1957, %v1956
        %v1989 = vpack.c.b16 %v1959, %v1958
        %v1990 = vpack.c.b16 %v1961, %v1960
        %v1991 = vpack.c.b16 %v1963, %v1962
        %v1992 = vpack.c.b16 %v1965, %v1964
        %v1993 = vpack.c.b16 %v1967, %v1966
        %v1994 = vpack.c.b16 %v1969, %v1968
        %v1995 = vpack.c.b16 %v1971, %v1970
        %v1996 = vpack.c.b16 %v1973, %v1972
        %v1997 = vpack.c.b16 %v1975, %v1974
        %v1998 = vpack.c.b16 %v1977, %v1976
        %v1999 = vpack.c.b16 %v1979, %v1978
        %v2000 = vpack.c.b16 %v1981, %v1980
        %v2001 = vpack.c.b16 %v1983, %v1982
        %v2002 = vpack.c.b16 %v1985, %v1984
        %v2003 = vpack.c.b16 %v1987, %v1986
        %2020 = vmatprep.subr.bf16.mxu0 0
        %2021 = vmatpush1.bf16.msra.mxu0 %v1995
        %2022 = vmatprep.subr.bf16.mxu0 0
        %2023 = vmatpush1.bf16.msra.mxu0 %v1994
        %2024 = vmatprep.subr.bf16.mxu0 0
        %2025 = vmatpush1.bf16.msra.mxu0 %v1993
        %2026 = vmatprep.subr.bf16.mxu0 0
        %2027 = vmatpush1.bf16.msra.mxu0 %v1992
        %2028 = vmatprep.subr.bf16.mxu0 0
        %2029 = vmatpush1.bf16.msra.mxu0 %v1991
        %2030 = vmatprep.subr.bf16.mxu0 0
        %2031 = vmatpush1.bf16.msra.mxu0 %v1990
        %2032 = vmatprep.subr.bf16.mxu0 0
        %2033 = vmatpush1.bf16.msra.mxu0 %v1989
        %2034 = vmatprep.subr.bf16.mxu0 0
        %2035 = vmatpush1.bf16.msra.mxu0 %v1988
        %2036 = vmatprep.subr.bf16.mxu0 0
        %2037 = vmatpush2.bf16.msra.mxu0 %v2003
        %2038 = vmatprep.subr.bf16.mxu0 0
        %2039 = vmatpush2.bf16.msra.mxu0 %v2002
        %2040 = vmatprep.subr.bf16.mxu0 0
        %2041 = vmatpush2.bf16.msra.mxu0 %v2001
        %2042 = vmatprep.subr.bf16.mxu0 0
        %2043 = vmatpush2.bf16.msra.mxu0 %v2000
        %2044 = vmatprep.subr.bf16.mxu0 0
        %2045 = vmatpush2.bf16.msra.mxu0 %v1999
        %2046 = vmatprep.subr.bf16.mxu0 0
        %2047 = vmatpush2.bf16.msra.mxu0 %v1998
        %2048 = vmatprep.subr.bf16.mxu0 0
        %2049 = vmatpush2.bf16.msra.mxu0 %v1997
        %2050 = vmatprep.subr.bf16.mxu0 0
        %2051 = vmatpush2.bf16.msra.mxu0 %v1996
        %2052 = vmatprep.mubr.bf16.mxu0 %v1884
        %2053 = vmatmul.mubr.bf16.gmra.mxu0 %v1883
        %v2054 = vpop.f32.mrf.mxu0
        %v2055 = vadd.f32 %v1922, %v2054
        %v2056 = vpop.f32.mrf.mxu0
        %v2057 = vpop.f32.mrf.mxu0
        %v2058 = vadd.f32 %v1922, %v2057
        %v2059 = vpop.f32.mrf.mxu0
        %2060 = vdwg.mxu0
        %v2061 = vadd.f32 %v1725, %v2055
        %v2062 = vadd.f32 %v1726, %v2058
        %v2063 = vld [vmem:[%s14] sm:$0x1]
        %v2064 = vld [vmem:[%s15] sm:$0x1]
        %2065 = vadd.xlane.f32.xlu0 %v2061
        %v2066 = vpop.xlane.xlu0 %2065
        %2067 = vadd.xlane.f32.xlu0 %v2062
        %v2068 = vpop.xlane.xlu0 %2067
        %v2069 = vmul.f32 %v2066, %v1692
        %v2070 = vmul.f32 %v2068, %v1692
        %v2071 = vsub.f32 %v2061, %v2069
        %v2072 = vsub.f32 %v2062, %v2070
        %v2073 = vmul.f32 %v2071, %v2071
        %v2074 = vmul.f32 %v2072, %v2072
        %2075 = vadd.xlane.f32.xlu0 %v2073
        %v2076 = vpop.xlane.xlu0 %2075
        %2077 = vadd.xlane.f32.xlu0 %v2074
        %v2078 = vpop.xlane.xlu0 %2077
        %v2079 = vmul.f32 %v2076, %v1692
        %v2080 = vmul.f32 %v2078, %v1692
        %v2081 = vadd.f32 %v2079, 1e-05
        %v2082 = vadd.f32 %v2080, 1e-05
        %v2083 = vrsqrt.pop %v2081
        %v2084 = vrsqrt.pop %v2082
        %v2085 = vmul.f32 %v2071, %v2083
        %v2086 = vmul.f32 %v2072, %v2084
        %v2088 = vlaneseq
        %v2089 = vshrl.u32 %v2088, 7
        %v2090 = vsub.s32 0, %v2089
        %v2091 = vrot.slane %v2063, %v2090
        %v2093 = vmul.f32 %v2085, %v2091
        %v2094 = vmul.f32 %v2086, %v2091
        %v2096 = vlaneseq
        %v2097 = vshrl.u32 %v2096, 7
        %v2098 = vsub.s32 0, %v2097
        %v2099 = vrot.slane %v2064, %v2098
        %v2101 = vadd.f32 %v2093, %v2099
        %v2102 = vadd.f32 %v2094, %v2099
        %2103 = vst [vmem:[%s669] sm:$0xff] %v2101
        %2104 = vst [vmem:[%s669 + $0x8] sm:$0xff] %v2102
        %s2105 = sand.u32 %s408, 1
        %s2106 = scalar_lea.sflag [#allocation4], %s2105
        %s2107 = sand.u32 %s408, 1
        %s2108 = smul.addr %s2107, 16
        %s2109 = scalar_lea.vmem [#allocation14], %s2108
        // Predicated region
        $region113: #{tpu_custom_call.1} parent=83 // pred_check
          %p2110 = pneg %p418
        $region114: #{tpu_custom_call.1} parent=83 // pred_check_branch
          %2112 = sbr.rel (%p2110) target = $region116
        $region115: #{tpu_custom_call.1} parent=83 // pred_region
          %s2113 = smul.u32 2, %s43
          %s2115 = ssub.s32 256, 256
          %2116 = vsyncadd %s2106, %s2115
          %s2117 = smul.addr %s42, 2
          %s2118 = sadd.s32 %s2113, %s2117
          %s2119 = smul.addr %s2118, 128
          %s2120 = scalar_lea.hbm %s16, %s2119
          %s2121 = sshll.u32 %s2109, 4
          %s2122 = int_to_ptr.vmem [resolvable:$true] %s2121
          %2127 = dma.vmem_to_hbm [thread:$0]  %s2122, 256, %s2120, %s2106, 128, 128, 8
        $region116: #{tpu_custom_call.1} parent=83 // pred_fallthru
          _
      $region84: #{tpu_custom_call.1} parent=5 // pred_fallthru
        _
      %p2128 = scmp.le.s32.totalorder 2, %s33
      // Predicated region
      $region117: #{tpu_custom_call.1} parent=5 // pred_check
        %p2129 = pneg %p2128
      $region118: #{tpu_custom_call.1} parent=5 // pred_check_branch
        %2131 = sbr.rel (%p2129) target = $region120
      $region119: #{tpu_custom_call.1} parent=5 // pred_region
        %s2132 = ssub.s32 %s33, 2
        // Predicated region
        $region121: #{tpu_custom_call.1} parent=119 // pred_check
          %p2133 = pneg %p424
        $region122: #{tpu_custom_call.1} parent=119 // pred_check_branch
          %2135 = sbr.rel (%p2133) target = $region124
        $region123: #{tpu_custom_call.1} parent=119 // pred_region
          %s2136 = sand.u32 %s409, 1
          %s2137 = scalar_lea.sflag [#allocation4], %s2136
          %s2138 = sand.u32 %s409, 1
          %s2139 = smul.addr %s2138, 16
          %s2140 = scalar_lea.vmem [#allocation14], %s2139
          %2141 = dma.done %s2137, 256
        $region124: #{tpu_custom_call.1} parent=119 // pred_fallthru
          _
      $region120: #{tpu_custom_call.1} parent=5 // pred_fallthru
        _
    $region6: #{tpu_custom_call.1} parent=1 // loop_footer
      %s37 = sadd.s32 1, %s33
    $region7: #{tpu_custom_call.1} parent=1 // loop_footer_branch
      %32 = sbr.rel target = $region3
    $region8: #{tpu_custom_call.1} parent=1 // loop_exit
      _
    %2142 = vsyncpa [#allocation3], 1
    %s2143 = scalar_lea.sflag [#allocation3], 1
    %2144 = vsyncpa %s2143, 1
    %2145 = vsyncpa [#allocation6], 1
    %s2146 = scalar_lea.sflag [#allocation6], 1
    %2147 = vsyncpa %s2146, 1
    %2148 = vsyncpa [#allocation9], 1
    %2149 = vsyncpa [#allocation12], 1
    %2150 = vsyncpa [#allocation4], 1
    %s2151 = scalar_lea.sflag [#allocation4], 1
    %2152 = vsyncpa %s2151, 1

// kernel: tpu_custom_call.1
$region0: #{tpu_custom_call.1}
  #allocation0 [shape = 'u32[]', space=smem, size = 0x4, offset = 0x4, fixed_abs, tag = 'smem constant byte address 0x4 - core index']
  #allocation1 [shape = 'u32[144,128]{1,0:T(1,128)}', space=vmem, size = 0x12000, scoped, tag = 'internal scratch']
  %s0 = inlined_call_operand.hbm [shape: f32[2,16,128], index: 0, kind: input, shape index: {}]
  %s1 = inlined_call_operand.hbm [shape: f32[2,16,128], index: 1, kind: input, shape index: {}]
  %s2 = inlined_call_operand.hbm [shape: bf16[128,128], index: 2, kind: input, shape index: {}]
  %s3 = inlined_call_operand.vmem [shape: f32[1,128], index: 3, kind: input, shape index: {}]
  %s4 = inlined_call_operand.hbm [shape: bf16[128,256], index: 4, kind: input, shape index: {}]
  %s5 = inlined_call_operand.vmem [shape: f32[1,256], index: 5, kind: input, shape index: {}]
  %s6 = inlined_call_operand.hbm [shape: bf16[128,128], index: 6, kind: input, shape index: {}]
  %s7 = inlined_call_operand.vmem [shape: f32[1,128], index: 7, kind: input, shape index: {}]
  %s8 = inlined_call_operand.hbm [shape: bf16[128,256], index: 8, kind: input, shape index: {}]
  %s9 = inlined_call_operand.vmem [shape: f32[1,256], index: 9, kind: input, shape index: {}]
  %s10 = inlined_call_operand.hbm [shape: bf16[256,128], index: 10, kind: input, shape index: {}]
  %s11 = inlined_call_operand.vmem [shape: f32[1,128], index: 11, kind: input, shape index: {}]
  %s12 = inlined_call_operand.vmem [shape: f32[1,128], index: 12, kind: input, shape index: {}]
  %s13 = inlined_call_operand.vmem [shape: f32[1,128], index: 13, kind: input, shape index: {}]
  %s14 = inlined_call_operand.vmem [shape: f32[1,128], index: 14, kind: input, shape index: {}]
  %s15 = inlined_call_operand.vmem [shape: f32[1,128], index: 15, kind: input, shape index: {}]
  %s16 = inlined_call_operand.hbm [shape: f32[2,16,128], index: 16, kind: output, shape index: {}]
  %s17 = sld [smem:[#allocation0]]
  $region125: #{tpu_custom_call.1} parent=0
    _
  %s19 = ssub.s32 1, %s17
  %s20 = scalar_select 0, %s19, %s17
  $region1: #{tpu_custom_call.1} parent=0
    #allocation2 [shape = 'u8[16384]{0}', space=vmem, size = 0x4000, scoped, tag = 'input window, operand 0']
    #allocation3 [shape = 's32[2]{0}', space=sflag, size = 0x8, scoped, tag = 'scoped memory for tpu_custom_call.1']
    #allocation4 [shape = 's32[2]{0}', space=sflag, size = 0x8, scoped, tag = 'scoped memory for tpu_custom_call.1']
    #allocation5 [shape = 'u8[16384]{0}', space=vmem, size = 0x4000, scoped, tag = 'input window, operand 1']
    #allocation6 [shape = 's32[2]{0}', space=sflag, size = 0x8, scoped, tag = 'scoped memory for tpu_custom_call.1']
    #allocation7 [shape = 'u8[32768]{0}', space=vmem, size = 0x8000, scoped, tag = 'input window, operand 2, single buffered']
    #allocation8 [shape = 'u8[65536]{0}', space=vmem, size = 0x10000, scoped, tag = 'input window, operand 4, single buffered']
    #allocation9 [shape = 's32[1]{0}', space=sflag, size = 0x4, scoped, tag = 'scoped memory for tpu_custom_call.1']
    #allocation10 [shape = 'u8[32768]{0}', space=vmem, size = 0x8000, scoped, tag = 'input window, operand 6, single buffered']
    #allocation11 [shape = 'u8[65536]{0}', space=vmem, size = 0x10000, scoped, tag = 'input window, operand 8, single buffered']
    #allocation12 [shape = 's32[1]{0}', space=sflag, size = 0x4, scoped, tag = 'scoped memory for tpu_custom_call.1']
    #allocation13 [shape = 'u8[65536]{0}', space=vmem, size = 0x10000, scoped, tag = 'input window, operand 10, single buffered']
    #allocation14 [shape = 'u8[16384]{0}', space=vmem, size = 0x4000, scoped, tag = 'output window, operand 0']
    %21 = vsyncpa [#allocation3], 0
    %s22 = scalar_lea.sflag [#allocation3], 1
    %23 = vsyncpa %s22, 0
    %24 = vsyncpa [#allocation6], 0
    %s25 = scalar_lea.sflag [#allocation6], 1
    %26 = vsyncpa %s25, 0
    %27 = vsyncpa [#allocation9], 0
    %28 = vsyncpa [#allocation12], 0
    %29 = vsyncpa [#allocation4], 0
    %s30 = scalar_lea.sflag [#allocation4], 1
    %31 = vsyncpa %s30, 0
    loop: start=0, step=1, limit=4
    $region2: #{tpu_custom_call.1} parent=1 // loop_pre_header
      _
    $region3: #{tpu_custom_call.1} parent=1 // loop_header
      %s33 = sphi 0, %s37
      %p34 = scmp.ge.s32.totalorder %s33, 4
      %s40 = sphi 0, %s52
      %s41 = sphi 0, %s48
      %s42 = sphi 0, %s40
      %s43 = sphi 0, %s41
      %s44 = sphi 0, %s42
      %s45 = sphi 0, %s43
      %s57 = sphi 0, %s59
      %s60 = sphi 0, %s57
      %s61 = sphi 0, %s60
      %s77 = sphi 0, %s61
      %s83 = sphi 0, %s85
      %s86 = sphi 0, %s83
      %s87 = sphi 0, %s86
      %s103 = sphi 0, %s87
      %s107 = sphi 0, %s107
      %s109 = sphi 0, %s107
      %s110 = sphi 0, %s109
      %s124 = sphi 0, %s110
      %s128 = sphi 0, %s128
      %s130 = sphi 0, %s128
      %s131 = sphi 0, %s130
      %s145 = sphi 0, %s131
      %s149 = sphi 0, %s149
      %s151 = sphi 0, %s149
      %s152 = sphi 0, %s151
      %s166 = sphi 0, %s152
      %s170 = sphi 0, %s170
      %s172 = sphi 0, %s170
      %s173 = sphi 0, %s172
      %s187 = sphi 0, %s173
      %s191 = sphi 0, %s191
      %s193 = sphi 0, %s191
      %s194 = sphi 0, %s193
      %s208 = sphi 0, %s194
      %s212 = sphi 0, %s212
      %s214 = sphi 0, %s212
      %s215 = sphi 0, %s214
      %s229 = sphi 0, %s215
      %s233 = sphi 0, %s233
      %s235 = sphi 0, %s233
      %s236 = sphi 0, %s235
      %s250 = sphi 0, %s236
      %s254 = sphi 0, %s254
      %s256 = sphi 0, %s254
      %s257 = sphi 0, %s256
      %s271 = sphi 0, %s257
      %s275 = sphi 0, %s275
      %s277 = sphi 0, %s275
      %s278 = sphi 0, %s277
      %s292 = sphi 0, %s278
      %s296 = sphi 0, %s296
      %s298 = sphi 0, %s296
      %s299 = sphi 0, %s298
      %s313 = sphi 0, %s299
      %s317 = sphi 0, %s317
      %s319 = sphi 0, %s317
      %s320 = sphi 0, %s319
      %s334 = sphi 0, %s320
      %s338 = sphi 0, %s338
      %s340 = sphi 0, %s338
      %s341 = sphi 0, %s340
      %s355 = sphi 0, %s341
      %s359 = sphi 0, %s359
      %s361 = sphi 0, %s359
      %s362 = sphi 0, %s361
      %s376 = sphi 0, %s362
      %s380 = sphi 0, %s380
      %s382 = sphi 0, %s380
      %s383 = sphi 0, %s382
      %s397 = sphi 0, %s383
      %s405 = sphi 0, %s407
      %s408 = sphi 0, %s405
      %s409 = sphi 0, %s408
      %s425 = sphi 0, %s409
    $region4: #{tpu_custom_call.1} parent=1 // loop_header_branch
      %36 = sbr.rel (%p34) target = $region8
    $region5: #{tpu_custom_call.1} parent=1 // loop_body
      %s38 = ssub.s32 %s33, 1
      %s39 = ssub.s32 %s33, 2
      %s46 = sadd.s32 1, %s41
      %p47 = scmp.ge.s32.totalorder %s46, 1
      %s48 = scalar_select %p47, 0, %s46
      %s49 = sadd.s32 1, %s40
      %s50 = scalar_select %p47, %s49, %s40
      %p51 = scmp.ge.s32.totalorder %s50, 2
      %s52 = scalar_select %p51, 0, %s50
      %s53 = ssub.s32 %s40, %s52
      %s54 = ssub.s32 %s41, %s48
      %s55 = sor.u32 %s53, %s54
      %p56 = scmp.eq.s32.totalorder %s55, 0
      %s58 = sadd.s32 %s57, 1
      %s59 = scalar_select %p56, %s57, %s58
      %p62 = pneg %p56
      %p63 = scmp.eq.s32.totalorder %s33, 1
      %p64 = por %p62, %p63
      %p65 = scmp.ne.s32.totalorder %s57, %s60
      %p66 = scmp.eq.s32.totalorder %s33, 0
      %p67 = por %p65, %p66
      %p68 = scmp.ne.s32.totalorder %s57, %s60
      %p69 = scmp.eq.s32.totalorder %s38, 1
      %p70 = por %p68, %p69
      %p71 = scmp.ne.s32.totalorder %s60, %s61
      %p72 = scmp.eq.s32.totalorder %s38, 0
      %p73 = por %p71, %p72
      %p74 = scmp.ne.s32.totalorder %s60, %s61
      %p75 = scmp.eq.s32.totalorder %s39, 1
      %p76 = por %p74, %p75
      %p78 = scmp.ne.s32.totalorder %s61, %s77
      %p79 = scmp.eq.s32.totalorder %s39, 0
      %p80 = por %p78, %p79
      %s81 = ssub.s32 %s40, %s52
      %p82 = scmp.eq.s32.totalorder %s81, 0
      %s84 = sadd.s32 %s83, 1
      %s85 = scalar_select %p82, %s83, %s84
      %p88 = pneg %p82
      %p89 = scmp.eq.s32.totalorder %s33, 1
      %p90 = por %p88, %p89
      %p91 = scmp.ne.s32.totalorder %s83, %s86
      %p92 = scmp.eq.s32.totalorder %s33, 0
      %p93 = por %p91, %p92
      %p94 = scmp.ne.s32.totalorder %s83, %s86
      %p95 = scmp.eq.s32.totalorder %s38, 1
      %p96 = por %p94, %p95
      %p97 = scmp.ne.s32.totalorder %s86, %s87
      %p98 = scmp.eq.s32.totalorder %s38, 0
      %p99 = por %p97, %p98
      %p100 = scmp.ne.s32.totalorder %s86, %s87
      %p101 = scmp.eq.s32.totalorder %s39, 1
      %p102 = por %p100, %p101
      %p104 = scmp.ne.s32.totalorder %s87, %s103
      %p105 = scmp.eq.s32.totalorder %s39, 0
      %p106 = por %p104, %p105
      %s108 = sadd.s32 %s107, 1
      %p111 = scmp.eq.s32.totalorder %s33, 1
      %p112 = scmp.ne.s32.totalorder %s107, %s109
      %p113 = scmp.eq.s32.totalorder %s33, 0
      %p114 = por %p112, %p113
      %p115 = scmp.ne.s32.totalorder %s107, %s109
      %p116 = scmp.eq.s32.totalorder %s38, 1
      %p117 = por %p115, %p116
      %p118 = scmp.ne.s32.totalorder %s109, %s110
      %p119 = scmp.eq.s32.totalorder %s38, 0
      %p120 = por %p118, %p119
      %p121 = scmp.ne.s32.totalorder %s109, %s110
      %p122 = scmp.eq.s32.totalorder %s39, 1
      %p123 = por %p121, %p122
      %p125 = scmp.ne.s32.totalorder %s110, %s124
      %p126 = scmp.eq.s32.totalorder %s39, 0
      %p127 = por %p125, %p126
      %s129 = sadd.s32 %s128, 1
      %p132 = scmp.eq.s32.totalorder %s33, 1
      %p133 = scmp.ne.s32.totalorder %s128, %s130
      %p134 = scmp.eq.s32.totalorder %s33, 0
      %p135 = por %p133, %p134
      %p136 = scmp.ne.s32.totalorder %s128, %s130
      %p137 = scmp.eq.s32.totalorder %s38, 1
      %p138 = por %p136, %p137
      %p139 = scmp.ne.s32.totalorder %s130, %s131
      %p140 = scmp.eq.s32.totalorder %s38, 0
      %p141 = por %p139, %p140
      %p142 = scmp.ne.s32.totalorder %s130, %s131
      %p143 = scmp.eq.s32.totalorder %s39, 1
      %p144 = por %p142, %p143
      %p146 = scmp.ne.s32.totalorder %s131, %s145
      %p147 = scmp.eq.s32.totalorder %s39, 0
      %p148 = por %p146, %p147
      %s150 = sadd.s32 %s149, 1
      %p153 = scmp.eq.s32.totalorder %s33, 1
      %p154 = scmp.ne.s32.totalorder %s149, %s151
      %p155 = scmp.eq.s32.totalorder %s33, 0
      %p156 = por %p154, %p155
      %p157 = scmp.ne.s32.totalorder %s149, %s151
      %p158 = scmp.eq.s32.totalorder %s38, 1
      %p159 = por %p157, %p158
      %p160 = scmp.ne.s32.totalorder %s151, %s152
      %p161 = scmp.eq.s32.totalorder %s38, 0
      %p162 = por %p160, %p161
      %p163 = scmp.ne.s32.totalorder %s151, %s152
      %p164 = scmp.eq.s32.totalorder %s39, 1
      %p165 = por %p163, %p164
      %p167 = scmp.ne.s32.totalorder %s152, %s166
      %p168 = scmp.eq.s32.totalorder %s39, 0
      %p169 = por %p167, %p168
      %s171 = sadd.s32 %s170, 1
      %p174 = scmp.eq.s32.totalorder %s33, 1
      %p175 = scmp.ne.s32.totalorder %s170, %s172
      %p176 = scmp.eq.s32.totalorder %s33, 0
      %p177 = por %p175, %p176
      %p178 = scmp.ne.s32.totalorder %s170, %s172
      %p179 = scmp.eq.s32.totalorder %s38, 1
      %p180 = por %p178, %p179
      %p181 = scmp.ne.s32.totalorder %s172, %s173
      %p182 = scmp.eq.s32.totalorder %s38, 0
      %p183 = por %p181, %p182
      %p184 = scmp.ne.s32.totalorder %s172, %s173
      %p185 = scmp.eq.s32.totalorder %s39, 1
      %p186 = por %p184, %p185
      %p188 = scmp.ne.s32.totalorder %s173, %s187
      %p189 = scmp.eq.s32.totalorder %s39, 0
      %p190 = por %p188, %p189
      %s192 = sadd.s32 %s191, 1
      %p195 = scmp.eq.s32.totalorder %s33, 1
      %p196 = scmp.ne.s32.totalorder %s191, %s193
      %p197 = scmp.eq.s32.totalorder %s33, 0
      %p198 = por %p196, %p197
      %p199 = scmp.ne.s32.totalorder %s191, %s193
      %p200 = scmp.eq.s32.totalorder %s38, 1
      %p201 = por %p199, %p200
      %p202 = scmp.ne.s32.totalorder %s193, %s194
      %p203 = scmp.eq.s32.totalorder %s38, 0
      %p204 = por %p202, %p203
      %p205 = scmp.ne.s32.totalorder %s193, %s194
      %p206 = scmp.eq.s32.totalorder %s39, 1
      %p207 = por %p205, %p206
      %p209 = scmp.ne.s32.totalorder %s194, %s208
      %p210 = scmp.eq.s32.totalorder %s39, 0
      %p211 = por %p209, %p210
      %s213 = sadd.s32 %s212, 1
      %p216 = scmp.eq.s32.totalorder %s33, 1
      %p217 = scmp.ne.s32.totalorder %s212, %s214
      %p218 = scmp.eq.s32.totalorder %s33, 0
      %p219 = por %p217, %p218
      %p220 = scmp.ne.s32.totalorder %s212, %s214
      %p221 = scmp.eq.s32.totalorder %s38, 1
      %p222 = por %p220, %p221
      %p223 = scmp.ne.s32.totalorder %s214, %s215
      %p224 = scmp.eq.s32.totalorder %s38, 0
      %p225 = por %p223, %p224
      %p226 = scmp.ne.s32.totalorder %s214, %s215
      %p227 = scmp.eq.s32.totalorder %s39, 1
      %p228 = por %p226, %p227
      %p230 = scmp.ne.s32.totalorder %s215, %s229
      %p231 = scmp.eq.s32.totalorder %s39, 0
      %p232 = por %p230, %p231
      %s234 = sadd.s32 %s233, 1
      %p237 = scmp.eq.s32.totalorder %s33, 1
      %p238 = scmp.ne.s32.totalorder %s233, %s235
      %p239 = scmp.eq.s32.totalorder %s33, 0
      %p240 = por %p238, %p239
      %p241 = scmp.ne.s32.totalorder %s233, %s235
      %p242 = scmp.eq.s32.totalorder %s38, 1
      %p243 = por %p241, %p242
      %p244 = scmp.ne.s32.totalorder %s235, %s236
      %p245 = scmp.eq.s32.totalorder %s38, 0
      %p246 = por %p244, %p245
      %p247 = scmp.ne.s32.totalorder %s235, %s236
      %p248 = scmp.eq.s32.totalorder %s39, 1
      %p249 = por %p247, %p248
      %p251 = scmp.ne.s32.totalorder %s236, %s250
      %p252 = scmp.eq.s32.totalorder %s39, 0
      %p253 = por %p251, %p252
      %s255 = sadd.s32 %s254, 1
      %p258 = scmp.eq.s32.totalorder %s33, 1
      %p259 = scmp.ne.s32.totalorder %s254, %s256
      %p260 = scmp.eq.s32.totalorder %s33, 0
      %p261 = por %p259, %p260
      %p262 = scmp.ne.s32.totalorder %s254, %s256
      %p263 = scmp.eq.s32.totalorder %s38, 1
      %p264 = por %p262, %p263
      %p265 = scmp.ne.s32.totalorder %s256, %s257
      %p266 = scmp.eq.s32.totalorder %s38, 0
      %p267 = por %p265, %p266
      %p268 = scmp.ne.s32.totalorder %s256, %s257
      %p269 = scmp.eq.s32.totalorder %s39, 1
      %p270 = por %p268, %p269
      %p272 = scmp.ne.s32.totalorder %s257, %s271
      %p273 = scmp.eq.s32.totalorder %s39, 0
      %p274 = por %p272, %p273
      %s276 = sadd.s32 %s275, 1
      %p279 = scmp.eq.s32.totalorder %s33, 1
      %p280 = scmp.ne.s32.totalorder %s275, %s277
      %p281 = scmp.eq.s32.totalorder %s33, 0
      %p282 = por %p280, %p281
      %p283 = scmp.ne.s32.totalorder %s275, %s277
      %p284 = scmp.eq.s32.totalorder %s38, 1
      %p285 = por %p283, %p284
      %p286 = scmp.ne.s32.totalorder %s277, %s278
      %p287 = scmp.eq.s32.totalorder %s38, 0
      %p288 = por %p286, %p287
      %p289 = scmp.ne.s32.totalorder %s277, %s278
      %p290 = scmp.eq.s32.totalorder %s39, 1
      %p291 = por %p289, %p290
      %p293 = scmp.ne.s32.totalorder %s278, %s292
      %p294 = scmp.eq.s32.totalorder %s39, 0
      %p295 = por %p293, %p294
      %s297 = sadd.s32 %s296, 1
      %p300 = scmp.eq.s32.totalorder %s33, 1
      %p301 = scmp.ne.s32.totalorder %s296, %s298
      %p302 = scmp.eq.s32.totalorder %s33, 0
      %p303 = por %p301, %p302
      %p304 = scmp.ne.s32.totalorder %s296, %s298
      %p305 = scmp.eq.s32.totalorder %s38, 1
      %p306 = por %p304, %p305
      %p307 = scmp.ne.s32.totalorder %s298, %s299
      %p308 = scmp.eq.s32.totalorder %s38, 0
      %p309 = por %p307, %p308
      %p310 = scmp.ne.s32.totalorder %s298, %s299
      %p311 = scmp.eq.s32.totalorder %s39, 1
      %p312 = por %p310, %p311
      %p314 = scmp.ne.s32.totalorder %s299, %s313
      %p315 = scmp.eq.s32.totalorder %s39, 0
      %p316 = por %p314, %p315
      %s318 = sadd.s32 %s317, 1
      %p321 = scmp.eq.s32.totalorder %s33, 1
      %p322 = scmp.ne.s32.totalorder %s317, %s319
      %p323 = scmp.eq.s32.totalorder %s33, 0
      %p324 = por %p322, %p323
      %p325 = scmp.ne.s32.totalorder %s317, %s319
      %p326 = scmp.eq.s32.totalorder %s38, 1
      %p327 = por %p325, %p326
      %p328 = scmp.ne.s32.totalorder %s319, %s320
      %p329 = scmp.eq.s32.totalorder %s38, 0
      %p330 = por %p328, %p329
      %p331 = scmp.ne.s32.totalorder %s319, %s320
      %p332 = scmp.eq.s32.totalorder %s39, 1
      %p333 = por %p331, %p332
      %p335 = scmp.ne.s32.totalorder %s320, %s334
      %p336 = scmp.eq.s32.totalorder %s39, 0
      %p337 = por %p335, %p336
      %s339 = sadd.s32 %s338, 1
      %p342 = scmp.eq.s32.totalorder %s33, 1
      %p343 = scmp.ne.s32.totalorder %s338, %s340
      %p344 = scmp.eq.s32.totalorder %s33, 0
      %p345 = por %p343, %p344
      %p346 = scmp.ne.s32.totalorder %s338, %s340
      %p347 = scmp.eq.s32.totalorder %s38, 1
      %p348 = por %p346, %p347
      %p349 = scmp.ne.s32.totalorder %s340, %s341
      %p350 = scmp.eq.s32.totalorder %s38, 0
      %p351 = por %p349, %p350
      %p352 = scmp.ne.s32.totalorder %s340, %s341
      %p353 = scmp.eq.s32.totalorder %s39, 1
      %p354 = por %p352, %p353
      %p356 = scmp.ne.s32.totalorder %s341, %s355
      %p357 = scmp.eq.s32.totalorder %s39, 0
      %p358 = por %p356, %p357
      %s360 = sadd.s32 %s359, 1
      %p363 = scmp.eq.s32.totalorder %s33, 1
      %p364 = scmp.ne.s32.totalorder %s359, %s361
      %p365 = scmp.eq.s32.totalorder %s33, 0
      %p366 = por %p364, %p365
      %p367 = scmp.ne.s32.totalorder %s359, %s361
      %p368 = scmp.eq.s32.totalorder %s38, 1
      %p369 = por %p367, %p368
      %p370 = scmp.ne.s32.totalorder %s361, %s362
      %p371 = scmp.eq.s32.totalorder %s38, 0
      %p372 = por %p370, %p371
      %p373 = scmp.ne.s32.totalorder %s361, %s362
      %p374 = scmp.eq.s32.totalorder %s39, 1
      %p375 = por %p373, %p374
      %p377 = scmp.ne.s32.totalorder %s362, %s376
      %p378 = scmp.eq.s32.totalorder %s39, 0
      %p379 = por %p377, %p378
      %s381 = sadd.s32 %s380, 1
      %p384 = scmp.eq.s32.totalorder %s33, 1
      %p385 = scmp.ne.s32.totalorder %s380, %s382
      %p386 = scmp.eq.s32.totalorder %s33, 0
      %p387 = por %p385, %p386
      %p388 = scmp.ne.s32.totalorder %s380, %s382
      %p389 = scmp.eq.s32.totalorder %s38, 1
      %p390 = por %p388, %p389
      %p391 = scmp.ne.s32.totalorder %s382, %s383
      %p392 = scmp.eq.s32.totalorder %s38, 0
      %p393 = por %p391, %p392
      %p394 = scmp.ne.s32.totalorder %s382, %s383
      %p395 = scmp.eq.s32.totalorder %s39, 1
      %p396 = por %p394, %p395
      %p398 = scmp.ne.s32.totalorder %s383, %s397
      %p399 = scmp.eq.s32.totalorder %s39, 0
      %p400 = por %p398, %p399
      %s401 = ssub.s32 %s40, %s52
      %s402 = ssub.s32 %s41, %s48
      %s403 = sor.u32 %s401, %s402
      %p404 = scmp.eq.s32.totalorder %s403, 0
      %s406 = sadd.s32 %s405, 1
      %s407 = scalar_select %p404, %s405, %s406
      %p410 = pneg %p404
      %p411 = scmp.eq.s32.totalorder %s33, 1
      %p412 = por %p410, %p411
      %p413 = scmp.ne.s32.totalorder %s405, %s408
      %p414 = scmp.eq.s32.totalorder %s33, 0
      %p415 = por %p413, %p414
      %p416 = scmp.ne.s32.totalorder %s405, %s408
      %p417 = scmp.eq.s32.totalorder %s38, 1
      %p418 = por %p416, %p417
      %p419 = scmp.ne.s32.totalorder %s408, %s409
      %p420 = scmp.eq.s32.totalorder %s38, 0
      %p421 = por %p419, %p420
      %p422 = scmp.ne.s32.totalorder %s408, %s409
      %p423 = scmp.eq.s32.totalorder %s39, 1
      %p424 = por %p422, %p423
      %p426 = scmp.ne.s32.totalorder %s409, %s425
      %p427 = scmp.eq.s32.totalorder %s39, 0
      %p428 = por %p426, %p427
      %p429 = scmp.le.s32.totalorder 1, %s33
      %p430 = scmp.lt.s32.totalorder %s33, 3
      %p431 = pnand %p429, %p430
      %p432 = pneg %p431
      // Predicated region
      $region9: #{tpu_custom_call.1} parent=5 // pred_check
        _
      $region10: #{tpu_custom_call.1} parent=5 // pred_check_branch
        %434 = sbr.rel (%p431) target = $region12
      $region11: #{tpu_custom_call.1} parent=5 // pred_region
        %s435 = ssub.s32 %s33, 1
        // Predicated region
        $region13: #{tpu_custom_call.1} parent=11 // pred_check
          %p436 = pneg %p120
        $region14: #{tpu_custom_call.1} parent=11 // pred_check_branch
          %438 = sbr.rel (%p436) target = $region16
        $region15: #{tpu_custom_call.1} parent=11 // pred_region
          %s440 = ssub.s32 1024, 1024
          %441 = vsyncadd [#allocation6], %s440
          %s442 = sshll.u32 [#allocation7], 4
          %s443 = int_to_ptr.vmem [resolvable:$true] %s442
          %448 = dma.hbm_to_vmem [thread:$0]  %s2, 1024, %s443, [#allocation6], 64, 64, 4
        $region16: #{tpu_custom_call.1} parent=11 // pred_fallthru
          _
        // Predicated region
        $region17: #{tpu_custom_call.1} parent=11 // pred_check
          %p449 = pneg %p141
        $region18: #{tpu_custom_call.1} parent=11 // pred_check_branch
          %451 = sbr.rel (%p449) target = $region20
        $region19: #{tpu_custom_call.1} parent=11 // pred_region
          _
        $region20: #{tpu_custom_call.1} parent=11 // pred_fallthru
          _
        // Predicated region
        $region21: #{tpu_custom_call.1} parent=11 // pred_check
          %p452 = pneg %p162
        $region22: #{tpu_custom_call.1} parent=11 // pred_check_branch
          %454 = sbr.rel (%p452) target = $region24
        $region23: #{tpu_custom_call.1} parent=11 // pred_region
          %s456 = ssub.s32 2048, 2048
          %457 = vsyncadd [#allocation9], %s456
          %s458 = sshll.u32 [#allocation8], 4
          %s459 = int_to_ptr.vmem [resolvable:$true] %s458
          %464 = dma.hbm_to_vmem [thread:$0]  %s4, 2048, %s459, [#allocation9], 128, 128, 8
        $region24: #{tpu_custom_call.1} parent=11 // pred_fallthru
          _
        // Predicated region
        $region25: #{tpu_custom_call.1} parent=11 // pred_check
          %p465 = pneg %p183
        $region26: #{tpu_custom_call.1} parent=11 // pred_check_branch
          %467 = sbr.rel (%p465) target = $region28
        $region27: #{tpu_custom_call.1} parent=11 // pred_region
          _
        $region28: #{tpu_custom_call.1} parent=11 // pred_fallthru
          _
        // Predicated region
        $region29: #{tpu_custom_call.1} parent=11 // pred_check
          %p468 = pneg %p204
        $region30: #{tpu_custom_call.1} parent=11 // pred_check_branch
          %470 = sbr.rel (%p468) target = $region32
        $region31: #{tpu_custom_call.1} parent=11 // pred_region
          %s472 = ssub.s32 1024, 1024
          %473 = vsyncadd [#allocation9], %s472
          %s474 = sshll.u32 [#allocation10], 4
          %s475 = int_to_ptr.vmem [resolvable:$true] %s474
          %480 = dma.hbm_to_vmem [thread:$0]  %s6, 1024, %s475, [#allocation9], 64, 64, 4
        $region32: #{tpu_custom_call.1} parent=11 // pred_fallthru
          _
        // Predicated region
        $region33: #{tpu_custom_call.1} parent=11 // pred_check
          %p481 = pneg %p225
        $region34: #{tpu_custom_call.1} parent=11 // pred_check_branch
          %483 = sbr.rel (%p481) target = $region36
        $region35: #{tpu_custom_call.1} parent=11 // pred_region
          _
        $region36: #{tpu_custom_call.1} parent=11 // pred_fallthru
          _
        // Predicated region
        $region37: #{tpu_custom_call.1} parent=11 // pred_check
          %p484 = pneg %p246
        $region38: #{tpu_custom_call.1} parent=11 // pred_check_branch
          %486 = sbr.rel (%p484) target = $region40
        $region39: #{tpu_custom_call.1} parent=11 // pred_region
          %s488 = ssub.s32 2048, 2048
          %489 = vsyncadd [#allocation12], %s488
          %s490 = sshll.u32 [#allocation11], 4
          %s491 = int_to_ptr.vmem [resolvable:$true] %s490
          %496 = dma.hbm_to_vmem [thread:$0]  %s8, 2048, %s491, [#allocation12], 128, 128, 8
        $region40: #{tpu_custom_call.1} parent=11 // pred_fallthru
          _
        // Predicated region
        $region41: #{tpu_custom_call.1} parent=11 // pred_check
          %p497 = pneg %p267
        $region42: #{tpu_custom_call.1} parent=11 // pred_check_branch
          %499 = sbr.rel (%p497) target = $region44
        $region43: #{tpu_custom_call.1} parent=11 // pred_region
          _
        $region44: #{tpu_custom_call.1} parent=11 // pred_fallthru
          _
        // Predicated region
        $region45: #{tpu_custom_call.1} parent=11 // pred_check
          %p500 = pneg %p288
        $region46: #{tpu_custom_call.1} parent=11 // pred_check_branch
          %502 = sbr.rel (%p500) target = $region48
        $region47: #{tpu_custom_call.1} parent=11 // pred_region
          %s504 = ssub.s32 2048, 2048
          %505 = vsyncadd [#allocation12], %s504
          %s506 = sshll.u32 [#allocation13], 4
          %s507 = int_to_ptr.vmem [resolvable:$true] %s506
          %512 = dma.hbm_to_vmem [thread:$0]  %s10, 2048, %s507, [#allocation12], 64, 64, 4
        $region48: #{tpu_custom_call.1} parent=11 // pred_fallthru
          _
        // Predicated region
        $region49: #{tpu_custom_call.1} parent=11 // pred_check
          %p513 = pneg %p309
        $region50: #{tpu_custom_call.1} parent=11 // pred_check_branch
          %515 = sbr.rel (%p513) target = $region52
        $region51: #{tpu_custom_call.1} parent=11 // pred_region
          _
        $region52: #{tpu_custom_call.1} parent=11 // pred_fallthru
          _
        // Predicated region
        $region53: #{tpu_custom_call.1} parent=11 // pred_check
          %p516 = pneg %p330
        $region54: #{tpu_custom_call.1} parent=11 // pred_check_branch
          %518 = sbr.rel (%p516) target = $region56
        $region55: #{tpu_custom_call.1} parent=11 // pred_region
          _
        $region56: #{tpu_custom_call.1} parent=11 // pred_fallthru
          _
        // Predicated region
        $region57: #{tpu_custom_call.1} parent=11 // pred_check
          %p519 = pneg %p351
        $region58: #{tpu_custom_call.1} parent=11 // pred_check_branch
          %521 = sbr.rel (%p519) target = $region60
        $region59: #{tpu_custom_call.1} parent=11 // pred_region
          _
        $region60: #{tpu_custom_call.1} parent=11 // pred_fallthru
          _
        // Predicated region
        $region61: #{tpu_custom_call.1} parent=11 // pred_check
          %p522 = pneg %p372
        $region62: #{tpu_custom_call.1} parent=11 // pred_check_branch
          %524 = sbr.rel (%p522) target = $region64
        $region63: #{tpu_custom_call.1} parent=11 // pred_region
          _
        $region64: #{tpu_custom_call.1} parent=11 // pred_fallthru
          _
        // Predicated region
        $region65: #{tpu_custom_call.1} parent=11 // pred_check
          %p525 = pneg %p393
        $region66: #{tpu_custom_call.1} parent=11 // pred_check_branch
          %527 = sbr.rel (%p525) target = $region68
        $region67: #{tpu_custom_call.1} parent=11 // pred_region
          _
        $region68: #{tpu_custom_call.1} parent=11 // pred_fallthru
          _
      $region12: #{tpu_custom_call.1} parent=5 // pred_fallthru
        _
      %p528 = scmp.lt.s32.totalorder %s33, 2
      // Predicated region
      $region69: #{tpu_custom_call.1} parent=5 // pred_check
        %p529 = pneg %p528
      $region70: #{tpu_custom_call.1} parent=5 // pred_check_branch
        %531 = sbr.rel (%p529) target = $region72
      $region71: #{tpu_custom_call.1} parent=5 // pred_region
        // Predicated region
        $region73: #{tpu_custom_call.1} parent=71 // pred_check
          %p532 = pneg %p67
        $region74: #{tpu_custom_call.1} parent=71 // pred_check_branch
          %534 = sbr.rel (%p532) target = $region76
        $region75: #{tpu_custom_call.1} parent=71 // pred_region
          %s535 = sand.u32 %s57, 1
          %s536 = scalar_lea.sflag [#allocation3], %s535
          %s537 = sand.u32 %s57, 1
          %s538 = smul.addr %s537, 16
          %s539 = scalar_lea.vmem [#allocation2], %s538
          %s540 = smul.u32 2, %s41
          %s542 = ssub.s32 256, 256
          %543 = vsyncadd %s536, %s542
          %s544 = smul.addr %s40, 2
          %s545 = sadd.s32 %s540, %s544
          %s546 = smul.addr %s545, 128
          %s547 = scalar_lea.hbm %s0, %s546
          %s548 = sshll.u32 %s539, 4
          %s549 = int_to_ptr.vmem [resolvable:$true] %s548
          %554 = dma.hbm_to_vmem [thread:$0]  %s547, 256, %s549, %s536, 128, 128, 8
        $region76: #{tpu_custom_call.1} parent=71 // pred_fallthru
          _
        // Predicated region
        $region77: #{tpu_custom_call.1} parent=71 // pred_check
          %p555 = pneg %p93
        $region78: #{tpu_custom_call.1} parent=71 // pred_check_branch
          %557 = sbr.rel (%p555) target = $region80
        $region79: #{tpu_custom_call.1} parent=71 // pred_region
          %s558 = sand.u32 %s33, 1
          %s559 = scalar_lea.sflag [#allocation6], %s558
          %s560 = sand.u32 %s83, 1
          %s561 = smul.addr %s560, 16
          %s562 = scalar_lea.vmem [#allocation5], %s561
          %s564 = ssub.s32 256, 256
          %565 = vsyncadd %s559, %s564
          %s566 = smul.addr %s40, 2
          %s567 = smul.addr %s566, 128
          %s568 = scalar_lea.hbm %s1, %s567
          %s569 = sshll.u32 %s562, 4
          %s570 = int_to_ptr.vmem [resolvable:$true] %s569
          %575 = dma.hbm_to_vmem [thread:$0]  %s568, 256, %s570, %s559, 128, 128, 8
        $region80: #{tpu_custom_call.1} parent=71 // pred_fallthru
          _
      $region72: #{tpu_custom_call.1} parent=5 // pred_fallthru
        _
      %p576 = scmp.le.s32.totalorder 1, %s33
      %p577 = scmp.lt.s32.totalorder %s33, 3
      %p578 = pnand %p576, %p577
      %p579 = pneg %p578
      // Predicated region
      $region81: #{tpu_custom_call.1} parent=5 // pred_check
        _
      $region82: #{tpu_custom_call.1} parent=5 // pred_check_branch
        %581 = sbr.rel (%p578) target = $region84
      $region83: #{tpu_custom_call.1} parent=5 // pred_region
        %s582 = ssub.s32 %s33, 1
        %s583 = sand.u32 %s60, 1
        %s584 = scalar_lea.sflag [#allocation3], %s583
        %s585 = sand.u32 %s60, 1
        %s586 = smul.addr %s585, 16
        %s587 = scalar_lea.vmem [#allocation2], %s586
        // Predicated region
        $region85: #{tpu_custom_call.1} parent=83 // pred_check
          %p588 = pneg %p73
        $region86: #{tpu_custom_call.1} parent=83 // pred_check_branch
          %590 = sbr.rel (%p588) target = $region88
        $region87: #{tpu_custom_call.1} parent=83 // pred_region
          %591 = dma.done %s584, 256
        $region88: #{tpu_custom_call.1} parent=83 // pred_fallthru
          _
        %s592 = sand.u32 %s38, 1
        %s593 = scalar_lea.sflag [#allocation6], %s592
        %s594 = sand.u32 %s86, 1
        %s595 = smul.addr %s594, 16
        %s596 = scalar_lea.vmem [#allocation5], %s595
        // Predicated region
        $region89: #{tpu_custom_call.1} parent=83 // pred_check
          %p597 = pneg %p99
        $region90: #{tpu_custom_call.1} parent=83 // pred_check_branch
          %599 = sbr.rel (%p597) target = $region92
        $region91: #{tpu_custom_call.1} parent=83 // pred_region
          %600 = dma.done %s593, 256
        $region92: #{tpu_custom_call.1} parent=83 // pred_fallthru
          _
        // Predicated region
        $region93: #{tpu_custom_call.1} parent=83 // pred_check
          %p601 = pneg %p120
        $region94: #{tpu_custom_call.1} parent=83 // pred_check_branch
          %603 = sbr.rel (%p601) target = $region96
        $region95: #{tpu_custom_call.1} parent=83 // pred_region
          %604 = dma.done [#allocation6], 1024
        $region96: #{tpu_custom_call.1} parent=83 // pred_fallthru
          _
        // Predicated region
        $region97: #{tpu_custom_call.1} parent=83 // pred_check
          %p605 = pneg %p162
        $region98: #{tpu_custom_call.1} parent=83 // pred_check_branch
          %607 = sbr.rel (%p605) target = $region100
        $region99: #{tpu_custom_call.1} parent=83 // pred_region
          %608 = dma.done [#allocation9], 2048
        $region100: #{tpu_custom_call.1} parent=83 // pred_fallthru
          _
        // Predicated region
        $region101: #{tpu_custom_call.1} parent=83 // pred_check
          %p609 = pneg %p204
        $region102: #{tpu_custom_call.1} parent=83 // pred_check_branch
          %611 = sbr.rel (%p609) target = $region104
        $region103: #{tpu_custom_call.1} parent=83 // pred_region
          %612 = dma.done [#allocation9], 1024
        $region104: #{tpu_custom_call.1} parent=83 // pred_fallthru
          _
        // Predicated region
        $region105: #{tpu_custom_call.1} parent=83 // pred_check
          %p613 = pneg %p246
        $region106: #{tpu_custom_call.1} parent=83 // pred_check_branch
          %615 = sbr.rel (%p613) target = $region108
        $region107: #{tpu_custom_call.1} parent=83 // pred_region
          %616 = dma.done [#allocation12], 2048
        $region108: #{tpu_custom_call.1} parent=83 // pred_fallthru
          _
        // Predicated region
        $region109: #{tpu_custom_call.1} parent=83 // pred_check
          %p617 = pneg %p288
        $region110: #{tpu_custom_call.1} parent=83 // pred_check_branch
          %619 = sbr.rel (%p617) target = $region112
        $region111: #{tpu_custom_call.1} parent=83 // pred_region
          %620 = dma.done [#allocation12], 2048
        $region112: #{tpu_custom_call.1} parent=83 // pred_fallthru
          _
        %s621 = sand.u32 %s60, 1
        %s622 = scalar_lea.sflag [#allocation3], %s621
        %s623 = sand.u32 %s60, 1
        %s624 = smul.addr %s623, 16
        %s625 = scalar_lea.vmem [#allocation2], %s624
        %p626 = pneg %p73
        %p627 = pneg %p70
        %s628 = sand.u32 %s38, 1
        %s629 = scalar_lea.sflag [#allocation6], %s628
        %s630 = sand.u32 %s86, 1
        %s631 = smul.addr %s630, 16
        %s632 = scalar_lea.vmem [#allocation5], %s631
        %p633 = pneg %p99
        %p634 = pneg %p96
        %p635 = pneg %p120
        %p636 = pneg %p117
        %p637 = pneg %p141
        %p638 = pneg %p138
        %p639 = pneg %p162
        %p640 = pneg %p159
        %p641 = pneg %p183
        %p642 = pneg %p180
        %p643 = pneg %p204
        %p644 = pneg %p201
        %p645 = pneg %p225
        %p646 = pneg %p222
        %p647 = pneg %p246
        %p648 = pneg %p243
        %p649 = pneg %p267
        %p650 = pneg %p264
        %p651 = pneg %p288
        %p652 = pneg %p285
        %p653 = pneg %p309
        %p654 = pneg %p306
        %p655 = pneg %p330
        %p656 = pneg %p327
        %p657 = pneg %p351
        %p658 = pneg %p348
        %p659 = pneg %p372
        %p660 = pneg %p369
        %p661 = pneg %p393
        %p662 = pneg %p390
        %p663 = pneg %p421
        %p664 = pneg %p418
        %s665 = sand.u32 %s408, 1
        %s666 = scalar_lea.sflag [#allocation4], %s665
        %s667 = sand.u32 %s408, 1
        %s668 = smul.addr %s667, 16
        %s669 = scalar_lea.vmem [#allocation14], %s668
        %s670 = smul.u32 2, %s43
        %s671 = smul.u32 2, %s43
        %v673 = vld [vmem:[%s587] sm:$0xff]
        %v674 = vld [vmem:[%s587 + $0x8] sm:$0xff]
        %v675 = vld [vmem:[%s596] sm:$0xff]
        %v676 = vld [vmem:[%s596 + $0x8] sm:$0xff]
        %v677 = vpack.c.bf16 %v674, %v673
        %v678 = vpack.c.bf16 %v676, %v675
        %v679 = vld [vmem:[#allocation7] sm:$0xf]
        %v680 = vld [vmem:[#allocation7 + $0x4] sm:$0xf]
        %v681 = vld [vmem:[#allocation7 + $0x8] sm:$0xf]
        %v682 = vld [vmem:[#allocation7 + $0xc] sm:$0xf]
        %v683 = vld [vmem:[#allocation7 + $0x10] sm:$0xf]
        %v684 = vld [vmem:[#allocation7 + $0x14] sm:$0xf]
        %v685 = vld [vmem:[#allocation7 + $0x18] sm:$0xf]
        %v686 = vld [vmem:[#allocation7 + $0x1c] sm:$0xf]
        %v687 = vld [vmem:[#allocation7 + $0x20] sm:$0xf]
        %v688 = vld [vmem:[#allocation7 + $0x24] sm:$0xf]
        %v689 = vld [vmem:[#allocation7 + $0x28] sm:$0xf]
        %v690 = vld [vmem:[#allocation7 + $0x2c] sm:$0xf]
        %v691 = vld [vmem:[#allocation7 + $0x30] sm:$0xf]
        %v692 = vld [vmem:[#allocation7 + $0x34] sm:$0xf]
        %v693 = vld [vmem:[#allocation7 + $0x38] sm:$0xf]
        %v694 = vld [vmem:[#allocation7 + $0x3c] sm:$0xf]
        %v695 = vld [vmem:[%s3] sm:$0x1]
        %v697 = vlaneseq
        %v698 = vshrl.u32 %v697, 7
        %v699 = vsub.s32 0, %v698
        %v700 = vrot.slane %v695, %v699
        %v718 = vunpack.c.l.b16 %v679
        %v719 = vunpack.c.l.b16 %v680
        %v720 = vunpack.c.l.b16 %v681
        %v721 = vunpack.c.l.b16 %v682
        %v722 = vunpack.c.l.b16 %v683
        %v723 = vunpack.c.l.b16 %v684
        %v724 = vunpack.c.l.b16 %v685
        %v725 = vunpack.c.l.b16 %v686
        %v726 = vunpack.c.l.b16 %v687
        %v727 = vunpack.c.l.b16 %v688
        %v728 = vunpack.c.l.b16 %v689
        %v729 = vunpack.c.l.b16 %v690
        %v730 = vunpack.c.l.b16 %v691
        %v731 = vunpack.c.l.b16 %v692
        %v732 = vunpack.c.l.b16 %v693
        %v733 = vunpack.c.l.b16 %v694
        %v734 = vpack.c.b16 %v719, %v718
        %v735 = vpack.c.b16 %v721, %v720
        %v736 = vpack.c.b16 %v723, %v722
        %v737 = vpack.c.b16 %v725, %v724
        %v738 = vpack.c.b16 %v727, %v726
        %v739 = vpack.c.b16 %v729, %v728
        %v740 = vpack.c.b16 %v731, %v730
        %v741 = vpack.c.b16 %v733, %v732
        %750 = vmatprep.subr.bf16.mxu0 0
        %751 = vmatpush1.bf16.msra.mxu0 %v741
        %752 = vmatprep.subr.bf16.mxu0 0
        %753 = vmatpush1.bf16.msra.mxu0 %v740
        %754 = vmatprep.subr.bf16.mxu0 0
        %755 = vmatpush1.bf16.msra.mxu0 %v739
        %756 = vmatprep.subr.bf16.mxu0 0
        %757 = vmatpush1.bf16.msra.mxu0 %v738
        %758 = vmatprep.subr.bf16.mxu0 0
        %759 = vmatpush1.bf16.msra.mxu0 %v737
        %760 = vmatprep.subr.bf16.mxu0 0
        %761 = vmatpush1.bf16.msra.mxu0 %v736
        %762 = vmatprep.subr.bf16.mxu0 0
        %763 = vmatpush1.bf16.msra.mxu0 %v735
        %764 = vmatprep.subr.bf16.mxu0 0
        %765 = vmatpush1.bf16.msra.mxu0 %v734
        %766 = vmatprep.subr.bf16.mxu0 0
        %767 = vmatpush2.bf16.msra.mxu0 0
        %768 = vmatprep.subr.bf16.mxu0 0
        %769 = vmatpush2.bf16.msra.mxu0 0
        %770 = vmatprep.subr.bf16.mxu0 0
        %771 = vmatpush2.bf16.msra.mxu0 0
        %772 = vmatprep.subr.bf16.mxu0 0
        %773 = vmatpush2.bf16.msra.mxu0 0
        %774 = vmatprep.subr.bf16.mxu0 0
        %775 = vmatpush2.bf16.msra.mxu0 0
        %776 = vmatprep.subr.bf16.mxu0 0
        %777 = vmatpush2.bf16.msra.mxu0 0
        %778 = vmatprep.subr.bf16.mxu0 0
        %779 = vmatpush2.bf16.msra.mxu0 0
        %780 = vmatprep.subr.bf16.mxu0 0
        %781 = vmatpush2.bf16.msra.mxu0 0
        %782 = vmatprep.mubr.bf16.mxu0 0
        %783 = vmatmul.mubr.bf16.gmra.mxu0 %v677
        %v784 = vpop.f32.mrf.mxu0
        %v785 = vadd.f32 %v700, %v784
        %v786 = vpop.f32.mrf.mxu0
        %v787 = vpop.f32.mrf.mxu0
        %v788 = vadd.f32 %v700, %v787
        %v789 = vpop.f32.mrf.mxu0
        %790 = vdwg.mxu0
        %v791 = vld [vmem:[#allocation8] sm:$0xff]
        %v792 = vld [vmem:[#allocation8 + $0x8] sm:$0xff]
        %v793 = vld [vmem:[#allocation8 + $0x10] sm:$0xff]
        %v794 = vld [vmem:[#allocation8 + $0x18] sm:$0xff]
        %v795 = vld [vmem:[#allocation8 + $0x20] sm:$0xff]
        %v796 = vld [vmem:[#allocation8 + $0x28] sm:$0xff]
        %v797 = vld [vmem:[#allocation8 + $0x30] sm:$0xff]
        %v798 = vld [vmem:[#allocation8 + $0x38] sm:$0xff]
        %v799 = vld [vmem:[#allocation8 + $0x40] sm:$0xff]
        %v800 = vld [vmem:[#allocation8 + $0x48] sm:$0xff]
        %v801 = vld [vmem:[#allocation8 + $0x50] sm:$0xff]
        %v802 = vld [vmem:[#allocation8 + $0x58] sm:$0xff]
        %v803 = vld [vmem:[#allocation8 + $0x60] sm:$0xff]
        %v804 = vld [vmem:[#allocation8 + $0x68] sm:$0xff]
        %v805 = vld [vmem:[#allocation8 + $0x70] sm:$0xff]
        %v806 = vld [vmem:[#allocation8 + $0x78] sm:$0xff]
        %v807 = vld [vmem:[%s5] sm:$0x3]
        %v809 = vlaneseq
        %v810 = vshrl.u32 %v809, 7
        %v811 = vsub.s32 0, %v810
        %v812 = vrot.slane %v807, %v811
        %v813 = vlaneseq
        %v814 = vshrl.u32 %v813, 7
        %v815 = vsub.s32 1, %v814
        %v816 = vrot.slane %v807, %v815
        %v835 = vunpack.c.l.b16 %v791
        %v836 = vunpack.c.h.b16 %v791
        %v837 = vunpack.c.l.b16 %v792
        %v838 = vunpack.c.h.b16 %v792
        %v839 = vunpack.c.l.b16 %v793
        %v840 = vunpack.c.h.b16 %v793
        %v841 = vunpack.c.l.b16 %v794
        %v842 = vunpack.c.h.b16 %v794
        %v843 = vunpack.c.l.b16 %v795
        %v844 = vunpack.c.h.b16 %v795
        %v845 = vunpack.c.l.b16 %v796
        %v846 = vunpack.c.h.b16 %v796
        %v847 = vunpack.c.l.b16 %v797
        %v848 = vunpack.c.h.b16 %v797
        %v849 = vunpack.c.l.b16 %v798
        %v850 = vunpack.c.h.b16 %v798
        %v851 = vunpack.c.l.b16 %v799
        %v852 = vunpack.c.h.b16 %v799
        %v853 = vunpack.c.l.b16 %v800
        %v854 = vunpack.c.h.b16 %v800
        %v855 = vunpack.c.l.b16 %v801
        %v856 = vunpack.c.h.b16 %v801
        %v857 = vunpack.c.l.b16 %v802
        %v858 = vunpack.c.h.b16 %v802
        %v859 = vunpack.c.l.b16 %v803
        %v860 = vunpack.c.h.b16 %v803
        %v861 = vunpack.c.l.b16 %v804
        %v862 = vunpack.c.h.b16 %v804
        %v863 = vunpack.c.l.b16 %v805
        %v864 = vunpack.c.h.b16 %v805
        %v865 = vunpack.c.l.b16 %v806
        %v866 = vunpack.c.h.b16 %v806
        %v867 = vpack.c.b16 %v837, %v835
        %v868 = vpack.c.b16 %v838, %v836
        %v869 = vpack.c.b16 %v841, %v839
        %v870 = vpack.c.b16 %v842, %v840
        %v871 = vpack.c.b16 %v845, %v843
        %v872 = vpack.c.b16 %v846, %v844
        %v873 = vpack.c.b16 %v849, %v847
        %v874 = vpack.c.b16 %v850, %v848
        %v875 = vpack.c.b16 %v853, %v851
        %v876 = vpack.c.b16 %v854, %v852
        %v877 = vpack.c.b16 %v857, %v855
        %v878 = vpack.c.b16 %v858, %v856
        %v879 = vpack.c.b16 %v861, %v859
        %v880 = vpack.c.b16 %v862, %v860
        %v881 = vpack.c.b16 %v865, %v863
        %v882 = vpack.c.b16 %v866, %v864
        %899 = vmatprep.subr.bf16.mxu0 %v882
        %900 = vmatpush1.bf16.msra.mxu0 %v881
        %901 = vmatprep.subr.bf16.mxu0 %v880
        %902 = vmatpush1.bf16.msra.mxu0 %v879
        %903 = vmatprep.subr.bf16.mxu0 %v878
        %904 = vmatpush1.bf16.msra.mxu0 %v877
        %905 = vmatprep.subr.bf16.mxu0 %v876
        %906 = vmatpush1.bf16.msra.mxu0 %v875
        %907 = vmatprep.subr.bf16.mxu0 %v874
        %908 = vmatpush1.bf16.msra.mxu0 %v873
        %909 = vmatprep.subr.bf16.mxu0 %v872
        %910 = vmatpush1.bf16.msra.mxu0 %v871
        %911 = vmatprep.subr.bf16.mxu0 %v870
        %912 = vmatpush1.bf16.msra.mxu0 %v869
        %913 = vmatprep.subr.bf16.mxu0 %v868
        %914 = vmatpush1.bf16.msra.mxu0 %v867
        %915 = vmatprep.subr.bf16.mxu0 0
        %916 = vmatpush2.bf16.msra.mxu0 0
        %917 = vmatprep.subr.bf16.mxu0 0
        %918 = vmatpush2.bf16.msra.mxu0 0
        %919 = vmatprep.subr.bf16.mxu0 0
        %920 = vmatpush2.bf16.msra.mxu0 0
        %921 = vmatprep.subr.bf16.mxu0 0
        %922 = vmatpush2.bf16.msra.mxu0 0
        %923 = vmatprep.subr.bf16.mxu0 0
        %924 = vmatpush2.bf16.msra.mxu0 0
        %925 = vmatprep.subr.bf16.mxu0 0
        %926 = vmatpush2.bf16.msra.mxu0 0
        %927 = vmatprep.subr.bf16.mxu0 0
        %928 = vmatpush2.bf16.msra.mxu0 0
        %929 = vmatprep.subr.bf16.mxu0 0
        %930 = vmatpush2.bf16.msra.mxu0 0
        %931 = vmatprep.mubr.bf16.mxu0 0
        %932 = vmatmul.mubr.bf16.gmra.mxu0 %v678
        %v933 = vpop.f32.mrf.mxu0
        %v934 = vadd.f32 %v812, %v933
        %v935 = vpop.f32.mrf.mxu0
        %v936 = vadd.f32 %v816, %v935
        %v937 = vpop.f32.mrf.mxu0
        %v938 = vadd.f32 %v812, %v937
        %v939 = vpop.f32.mrf.mxu0
        %v940 = vadd.f32 %v816, %v939
        %941 = vdwg.mxu0
        %v942 = vpack.c.bf16 %v788, %v785
        %v943 = vpack.c.bf16 %v938, %v934
        %v944 = vpack.c.bf16 %v940, %v936
        %vm945 = vcmask 261120
        %v947 = vsel %vm945, %v942, 0
        %v950 = vsel %vm945, %v943, 0
        %952 = vmatprep.subr.bf16.mxu0 0
        %953 = vmatpush1.bf16.xpose.msra.mxu0 0
        %954 = vmatprep.subr.bf16.mxu0 0
        %955 = vmatpush1.bf16.xpose.msra.mxu0 0
        %956 = vmatprep.subr.bf16.mxu0 0
        %957 = vmatpush1.bf16.xpose.msra.mxu0 0
        %958 = vmatprep.subr.bf16.mxu0 0
        %959 = vmatpush1.bf16.xpose.msra.mxu0 0
        %960 = vmatprep.subr.bf16.mxu0 0
        %961 = vmatpush1.bf16.xpose.msra.mxu0 0
        %962 = vmatprep.subr.bf16.mxu0 0
        %963 = vmatpush1.bf16.xpose.msra.mxu0 0
        %964 = vmatprep.subr.bf16.mxu0 0
        %965 = vmatpush1.bf16.xpose.msra.mxu0 0
        %966 = vmatprep.subr.bf16.mxu0 0
        %967 = vmatpush1.bf16.xpose.msra.mxu0 %v950
        %968 = vmatprep.subr.bf16.mxu0 0
        %969 = vmatpush2.bf16.xpose.msra.mxu0 0
        %970 = vmatprep.subr.bf16.mxu0 0
        %971 = vmatpush2.bf16.xpose.msra.mxu0 0
        %972 = vmatprep.subr.bf16.mxu0 0
        %973 = vmatpush2.bf16.xpose.msra.mxu0 0
        %974 = vmatprep.subr.bf16.mxu0 0
        %975 = vmatpush2.bf16.xpose.msra.mxu0 0
        %976 = vmatprep.subr.bf16.mxu0 0
        %977 = vmatpush2.bf16.xpose.msra.mxu0 0
        %978 = vmatprep.subr.bf16.mxu0 0
        %979 = vmatpush2.bf16.xpose.msra.mxu0 0
        %980 = vmatprep.subr.bf16.mxu0 0
        %981 = vmatpush2.bf16.xpose.msra.mxu0 0
        %982 = vmatprep.subr.bf16.mxu0 0
        %983 = vmatpush2.bf16.xpose.msra.mxu0 0
        %984 = vmatprep.mubr.bf16.mxu0 0
        %985 = vmatmul.mubr.bf16.gmra.mxu0 %v947
        %v986 = vpop.f32.mrf.mxu0
        %v987 = vadd.f32 0.0, %v986
        %v988 = vpop.f32.mrf.mxu0
        %v989 = vpop.f32.mrf.mxu0
        %v990 = vadd.f32 0.0, %v989
        %v991 = vpop.f32.mrf.mxu0
        %992 = vdwg.mxu0
        %vm993 = vcmask 130048
        %v994 = vsel %vm993, %v987, -inf
        %995 = vmax.xlane.f32.xlu0 %v994
        %v996 = vpop.xlane.xlu0 %995
        %v997 = vsel %vm993, %v990, -inf
        %998 = vmax.xlane.f32.xlu0 %v997
        %v999 = vpop.xlane.xlu0 %998
        %v1000 = vsub.f32 %v987, %v996
        %v1001 = vsub.f32 %v990, %v999
        %v1002 = vmul.f32 %v1000, 1.442695
        %v1003 = vpow.pop %v1002
        %v1004 = vmul.f32 %v1001, 1.442695
        %v1005 = vpow.pop %v1004
        %v1006 = vsel %vm993, %v1003, 0.0
        %1007 = vadd.xlane.f32.xlu0 %v1006
        %v1008 = vpop.xlane.xlu0 %1007
        %v1009 = vsel %vm993, %v1005, 0.0
        %1010 = vadd.xlane.f32.xlu0 %v1009
        %v1011 = vpop.xlane.xlu0 %1010
        %v1012 = vrcp.pop %v1008
        %v1013 = vrcp.pop %v1011
        %v1014 = vmul.f32 %v1003, %v1012
        %v1015 = vmul.f32 %v1005, %v1013
        %v1016 = vpack.c.bf16 %v1015, %v1014
        %v1018 = vsel %vm993, %v1016, 0
        %1020 = vmatprep.subr.bf16.mxu0 0
        %1021 = vmatpush1.bf16.msra.mxu0 0
        %1022 = vmatprep.subr.bf16.mxu0 0
        %1023 = vmatpush1.bf16.msra.mxu0 0
        %1024 = vmatprep.subr.bf16.mxu0 0
        %1025 = vmatpush1.bf16.msra.mxu0 0
        %1026 = vmatprep.subr.bf16.mxu0 0
        %1027 = vmatpush1.bf16.msra.mxu0 0
        %1028 = vmatprep.subr.bf16.mxu0 0
        %1029 = vmatpush1.bf16.msra.mxu0 0
        %1030 = vmatprep.subr.bf16.mxu0 0
        %1031 = vmatpush1.bf16.msra.mxu0 0
        %1032 = vmatprep.subr.bf16.mxu0 0
        %1033 = vmatpush1.bf16.msra.mxu0 0
        %1034 = vmatprep.subr.bf16.mxu0 0
        %1035 = vmatpush1.bf16.msra.mxu0 %v944
        %1036 = vmatprep.subr.bf16.mxu0 0
        %1037 = vmatpush2.bf16.msra.mxu0 0
        %1038 = vmatprep.subr.bf16.mxu0 0
        %1039 = vmatpush2.bf16.msra.mxu0 0
        %1040 = vmatprep.subr.bf16.mxu0 0
        %1041 = vmatpush2.bf16.msra.mxu0 0
        %1042 = vmatprep.subr.bf16.mxu0 0
        %1043 = vmatpush2.bf16.msra.mxu0 0
        %1044 = vmatprep.subr.bf16.mxu0 0
        %1045 = vmatpush2.bf16.msra.mxu0 0
        %1046 = vmatprep.subr.bf16.mxu0 0
        %1047 = vmatpush2.bf16.msra.mxu0 0
        %1048 = vmatprep.subr.bf16.mxu0 0
        %1049 = vmatpush2.bf16.msra.mxu0 0
        %1050 = vmatprep.subr.bf16.mxu0 0
        %1051 = vmatpush2.bf16.msra.mxu0 0
        %1052 = vmatprep.mubr.bf16.mxu0 0
        %1053 = vmatmul.mubr.bf16.gmra.mxu0 %v1018
        %v1054 = vpop.f32.mrf.mxu0
        %v1055 = vadd.f32 0.0, %v1054
        %v1056 = vpop.f32.mrf.mxu0
        %v1057 = vpop.f32.mrf.mxu0
        %v1058 = vadd.f32 0.0, %v1057
        %v1059 = vpop.f32.mrf.mxu0
        %1060 = vdwg.mxu0
        %v1061 = vpack.c.bf16 %v1058, %v1055
        %v1062 = vld [vmem:[#allocation10] sm:$0xf]
        %v1063 = vld [vmem:[#allocation10 + $0x4] sm:$0xf]
        %v1064 = vld [vmem:[#allocation10 + $0x8] sm:$0xf]
        %v1065 = vld [vmem:[#allocation10 + $0xc] sm:$0xf]
        %1067 = vrot.lane.b32.xlu0 %v942, 96
        %v1068 = vpop.permute.xlu0 %1067
        %1070 = vrot.lane.b32.xlu0 %v943, 96
        %v1071 = vpop.permute.xlu0 %1070
        %v1073 = vsel %vm945, %v1068, 0
        %v1076 = vsel %vm945, %v1071, 0
        %1078 = vmatprep.subr.bf16.mxu0 0
        %1079 = vmatpush1.bf16.xpose.msra.mxu0 0
        %1080 = vmatprep.subr.bf16.mxu0 0
        %1081 = vmatpush1.bf16.xpose.msra.mxu0 0
        %1082 = vmatprep.subr.bf16.mxu0 0
        %1083 = vmatpush1.bf16.xpose.msra.mxu0 0
        %1084 = vmatprep.subr.bf16.mxu0 0
        %1085 = vmatpush1.bf16.xpose.msra.mxu0 0
        %1086 = vmatprep.subr.bf16.mxu0 0
        %1087 = vmatpush1.bf16.xpose.msra.mxu0 0
        %1088 = vmatprep.subr.bf16.mxu0 0
        %1089 = vmatpush1.bf16.xpose.msra.mxu0 0
        %1090 = vmatprep.subr.bf16.mxu0 0
        %1091 = vmatpush1.bf16.xpose.msra.mxu0 0
        %1092 = vmatprep.subr.bf16.mxu0 0
        %1093 = vmatpush1.bf16.xpose.msra.mxu0 %v1076
        %1094 = vmatprep.subr.bf16.mxu0 0
        %1095 = vmatpush2.bf16.xpose.msra.mxu0 0
        %1096 = vmatprep.subr.bf16.mxu0 0
        %1097 = vmatpush2.bf16.xpose.msra.mxu0 0
        %1098 = vmatprep.subr.bf16.mxu0 0
        %1099 = vmatpush2.bf16.xpose.msra.mxu0 0
        %1100 = vmatprep.subr.bf16.mxu0 0
        %1101 = vmatpush2.bf16.xpose.msra.mxu0 0
        %1102 = vmatprep.subr.bf16.mxu0 0
        %1103 = vmatpush2.bf16.xpose.msra.mxu0 0
        %1104 = vmatprep.subr.bf16.mxu0 0
        %1105 = vmatpush2.bf16.xpose.msra.mxu0 0
        %1106 = vmatprep.subr.bf16.mxu0 0
        %1107 = vmatpush2.bf16.xpose.msra.mxu0 0
        %1108 = vmatprep.subr.bf16.mxu0 0
        %1109 = vmatpush2.bf16.xpose.msra.mxu0 0
        %1110 = vmatprep.mubr.bf16.mxu0 0
        %1111 = vmatmul.mubr.bf16.gmra.mxu0 %v1073
        %v1112 = vpop.f32.mrf.mxu0
        %v1113 = vadd.f32 0.0, %v1112
        %v1114 = vpop.f32.mrf.mxu0
        %v1115 = vpop.f32.mrf.mxu0
        %v1116 = vadd.f32 0.0, %v1115
        %v1117 = vpop.f32.mrf.mxu0
        %1118 = vdwg.mxu0
        %v1119 = vsel %vm993, %v1113, -inf
        %1120 = vmax.xlane.f32.xlu0 %v1119
        %v1121 = vpop.xlane.xlu0 %1120
        %v1122 = vsel %vm993, %v1116, -inf
        %1123 = vmax.xlane.f32.xlu0 %v1122
        %v1124 = vpop.xlane.xlu0 %1123
        %v1125 = vsub.f32 %v1113, %v1121
        %v1126 = vsub.f32 %v1116, %v1124
        %v1127 = vmul.f32 %v1125, 1.442695
        %v1128 = vpow.pop %v1127
        %v1129 = vmul.f32 %v1126, 1.442695
        %v1130 = vpow.pop %v1129
        %v1131 = vsel %vm993, %v1128, 0.0
        %1132 = vadd.xlane.f32.xlu0 %v1131
        %v1133 = vpop.xlane.xlu0 %1132
        %v1134 = vsel %vm993, %v1130, 0.0
        %1135 = vadd.xlane.f32.xlu0 %v1134
        %v1136 = vpop.xlane.xlu0 %1135
        %v1137 = vrcp.pop %v1133
        %v1138 = vrcp.pop %v1136
        %v1139 = vmul.f32 %v1128, %v1137
        %v1140 = vmul.f32 %v1130, %v1138
        %v1141 = vpack.c.bf16 %v1140, %v1139
        %1143 = vrot.lane.b32.xlu0 %v944, 96
        %v1144 = vpop.permute.xlu0 %1143
        %v1147 = vsel %vm993, %v1141, 0
        %1149 = vmatprep.subr.bf16.mxu0 0
        %1150 = vmatpush1.bf16.msra.mxu0 0
        %1151 = vmatprep.subr.bf16.mxu0 0
        %1152 = vmatpush1.bf16.msra.mxu0 0
        %1153 = vmatprep.subr.bf16.mxu0 0
        %1154 = vmatpush1.bf16.msra.mxu0 0
        %1155 = vmatprep.subr.bf16.mxu0 0
        %1156 = vmatpush1.bf16.msra.mxu0 0
        %1157 = vmatprep.subr.bf16.mxu0 0
        %1158 = vmatpush1.bf16.msra.mxu0 0
        %1159 = vmatprep.subr.bf16.mxu0 0
        %1160 = vmatpush1.bf16.msra.mxu0 0
        %1161 = vmatprep.subr.bf16.mxu0 0
        %1162 = vmatpush1.bf16.msra.mxu0 0
        %1163 = vmatprep.subr.bf16.mxu0 0
        %1164 = vmatpush1.bf16.msra.mxu0 %v1144
        %1165 = vmatprep.subr.bf16.mxu0 0
        %1166 = vmatpush2.bf16.msra.mxu0 0
        %1167 = vmatprep.subr.bf16.mxu0 0
        %1168 = vmatpush2.bf16.msra.mxu0 0
        %1169 = vmatprep.subr.bf16.mxu0 0
        %1170 = vmatpush2.bf16.msra.mxu0 0
        %1171 = vmatprep.subr.bf16.mxu0 0
        %1172 = vmatpush2.bf16.msra.mxu0 0
        %1173 = vmatprep.subr.bf16.mxu0 0
        %1174 = vmatpush2.bf16.msra.mxu0 0
        %1175 = vmatprep.subr.bf16.mxu0 0
        %1176 = vmatpush2.bf16.msra.mxu0 0
        %1177 = vmatprep.subr.bf16.mxu0 0
        %1178 = vmatpush2.bf16.msra.mxu0 0
        %1179 = vmatprep.subr.bf16.mxu0 0
        %1180 = vmatpush2.bf16.msra.mxu0 0
        %1181 = vmatprep.mubr.bf16.mxu0 0
        %1182 = vmatmul.mubr.bf16.gmra.mxu0 %v1147
        %v1183 = vpop.f32.mrf.mxu0
        %v1184 = vadd.f32 0.0, %v1183
        %v1185 = vpop.f32.mrf.mxu0
        %v1186 = vpop.f32.mrf.mxu0
        %v1187 = vadd.f32 0.0, %v1186
        %v1188 = vpop.f32.mrf.mxu0
        %1189 = vdwg.mxu0
        %v1190 = vpack.c.bf16 %v1187, %v1184
        %v1191 = vld [vmem:[#allocation10 + $0x10] sm:$0xf]
        %v1192 = vld [vmem:[#allocation10 + $0x14] sm:$0xf]
        %v1193 = vld [vmem:[#allocation10 + $0x18] sm:$0xf]
        %v1194 = vld [vmem:[#allocation10 + $0x1c] sm:$0xf]
        %v1199 = vunpack.c.l.b16 %v1191
        %v1200 = vunpack.c.l.b16 %v1192
        %v1201 = vunpack.c.l.b16 %v1193
        %v1202 = vunpack.c.l.b16 %v1194
        %v1203 = vpack.c.b16 %v1200, %v1199
        %v1204 = vpack.c.b16 %v1202, %v1201
        %v1208 = vsel %vm945, %v1190, 0
        %1210 = vmatprep.subr.bf16.mxu0 0
        %1211 = vmatpush1.bf16.msra.mxu0 0
        %1212 = vmatprep.subr.bf16.mxu0 0
        %1213 = vmatpush1.bf16.msra.mxu0 0
        %1214 = vmatprep.subr.bf16.mxu0 0
        %1215 = vmatpush1.bf16.msra.mxu0 0
        %1216 = vmatprep.subr.bf16.mxu0 0
        %1217 = vmatpush1.bf16.msra.mxu0 0
        %1218 = vmatprep.subr.bf16.mxu0 0
        %1219 = vmatpush1.bf16.msra.mxu0 0
        %1220 = vmatprep.subr.bf16.mxu0 0
        %1221 = vmatpush1.bf16.msra.mxu0 0
        %1222 = vmatprep.subr.bf16.mxu0 0
        %1223 = vmatpush1.bf16.msra.mxu0 %v1204
        %1224 = vmatprep.subr.bf16.mxu0 0
        %1225 = vmatpush1.bf16.msra.mxu0 %v1203
        %1226 = vmatprep.subr.bf16.mxu0 0
        %1227 = vmatpush2.bf16.msra.mxu0 0
        %1228 = vmatprep.subr.bf16.mxu0 0
        %1229 = vmatpush2.bf16.msra.mxu0 0
        %1230 = vmatprep.subr.bf16.mxu0 0
        %1231 = vmatpush2.bf16.msra.mxu0 0
        %1232 = vmatprep.subr.bf16.mxu0 0
        %1233 = vmatpush2.bf16.msra.mxu0 0
        %1234 = vmatprep.subr.bf16.mxu0 0
        %1235 = vmatpush2.bf16.msra.mxu0 0
        %1236 = vmatprep.subr.bf16.mxu0 0
        %1237 = vmatpush2.bf16.msra.mxu0 0
        %1238 = vmatprep.subr.bf16.mxu0 0
        %1239 = vmatpush2.bf16.msra.mxu0 0
        %1240 = vmatprep.subr.bf16.mxu0 0
        %1241 = vmatpush2.bf16.msra.mxu0 0
        %1242 = vmatprep.mubr.bf16.mxu0 0
        %1243 = vmatmul.mubr.bf16.gmra.mxu0 %v1208
        %v1244 = vpop.f32.mrf.mxu0
        %v1245 = vadd.f32 0.0, %v1244
        %v1246 = vpop.f32.mrf.mxu0
        %v1247 = vpop.f32.mrf.mxu0
        %v1248 = vadd.f32 0.0, %v1247
        %v1249 = vpop.f32.mrf.mxu0
        %1250 = vdwg.mxu0
        %v1255 = vunpack.c.l.b16 %v1062
        %v1256 = vunpack.c.l.b16 %v1063
        %v1257 = vunpack.c.l.b16 %v1064
        %v1258 = vunpack.c.l.b16 %v1065
        %v1259 = vpack.c.b16 %v1256, %v1255
        %v1260 = vpack.c.b16 %v1258, %v1257
        %v1264 = vsel %vm945, %v1061, 0
        %1266 = vmatprep.subr.bf16.mxu0 0
        %1267 = vmatpush1.bf16.msra.mxu0 0
        %1268 = vmatprep.subr.bf16.mxu0 0
        %1269 = vmatpush1.bf16.msra.mxu0 0
        %1270 = vmatprep.subr.bf16.mxu0 0
        %1271 = vmatpush1.bf16.msra.mxu0 0
        %1272 = vmatprep.subr.bf16.mxu0 0
        %1273 = vmatpush1.bf16.msra.mxu0 0
        %1274 = vmatprep.subr.bf16.mxu0 0
        %1275 = vmatpush1.bf16.msra.mxu0 0
        %1276 = vmatprep.subr.bf16.mxu0 0
        %1277 = vmatpush1.bf16.msra.mxu0 0
        %1278 = vmatprep.subr.bf16.mxu0 0
        %1279 = vmatpush1.bf16.msra.mxu0 %v1260
        %1280 = vmatprep.subr.bf16.mxu0 0
        %1281 = vmatpush1.bf16.msra.mxu0 %v1259
        %1282 = vmatprep.subr.bf16.mxu0 0
        %1283 = vmatpush2.bf16.msra.mxu0 0
        %1284 = vmatprep.subr.bf16.mxu0 0
        %1285 = vmatpush2.bf16.msra.mxu0 0
        %1286 = vmatprep.subr.bf16.mxu0 0
        %1287 = vmatpush2.bf16.msra.mxu0 0
        %1288 = vmatprep.subr.bf16.mxu0 0
        %1289 = vmatpush2.bf16.msra.mxu0 0
        %1290 = vmatprep.subr.bf16.mxu0 0
        %1291 = vmatpush2.bf16.msra.mxu0 0
        %1292 = vmatprep.subr.bf16.mxu0 0
        %1293 = vmatpush2.bf16.msra.mxu0 0
        %1294 = vmatprep.subr.bf16.mxu0 0
        %1295 = vmatpush2.bf16.msra.mxu0 0
        %1296 = vmatprep.subr.bf16.mxu0 0
        %1297 = vmatpush2.bf16.msra.mxu0 0
        %1298 = vmatprep.mubr.bf16.mxu0 0
        %1299 = vmatmul.mubr.bf16.gmra.mxu0 %v1264
        %v1300 = vpop.f32.mrf.mxu0
        %v1301 = vadd.f32 %v1245, %v1300
        %v1302 = vpop.f32.mrf.mxu0
        %v1303 = vpop.f32.mrf.mxu0
        %v1304 = vadd.f32 %v1248, %v1303
        %v1305 = vpop.f32.mrf.mxu0
        %1306 = vdwg.mxu0
        %1307 = vrot.lane.b32.xlu0 %v942, 64
        %v1308 = vpop.permute.xlu0 %1307
        %1309 = vrot.lane.b32.xlu0 %v943, 64
        %v1310 = vpop.permute.xlu0 %1309
        %v1312 = vsel %vm945, %v1308, 0
        %v1315 = vsel %vm945, %v1310, 0
        %1317 = vmatprep.subr.bf16.mxu0 0
        %1318 = vmatpush1.bf16.xpose.msra.mxu0 0
        %1319 = vmatprep.subr.bf16.mxu0 0
        %1320 = vmatpush1.bf16.xpose.msra.mxu0 0
        %1321 = vmatprep.subr.bf16.mxu0 0
        %1322 = vmatpush1.bf16.xpose.msra.mxu0 0
        %1323 = vmatprep.subr.bf16.mxu0 0
        %1324 = vmatpush1.bf16.xpose.msra.mxu0 0
        %1325 = vmatprep.subr.bf16.mxu0 0
        %1326 = vmatpush1.bf16.xpose.msra.mxu0 0
        %1327 = vmatprep.subr.bf16.mxu0 0
        %1328 = vmatpush1.bf16.xpose.msra.mxu0 0
        %1329 = vmatprep.subr.bf16.mxu0 0
        %1330 = vmatpush1.bf16.xpose.msra.mxu0 0
        %1331 = vmatprep.subr.bf16.mxu0 0
        %1332 = vmatpush1.bf16.xpose.msra.mxu0 %v1315
        %1333 = vmatprep.subr.bf16.mxu0 0
        %1334 = vmatpush2.bf16.xpose.msra.mxu0 0
        %1335 = vmatprep.subr.bf16.mxu0 0
        %1336 = vmatpush2.bf16.xpose.msra.mxu0 0
        %1337 = vmatprep.subr.bf16.mxu0 0
        %1338 = vmatpush2.bf16.xpose.msra.mxu0 0
        %1339 = vmatprep.subr.bf16.mxu0 0
        %1340 = vmatpush2.bf16.xpose.msra.mxu0 0
        %1341 = vmatprep.subr.bf16.mxu0 0
        %1342 = vmatpush2.bf16.xpose.msra.mxu0 0
        %1343 = vmatprep.subr.bf16.mxu0 0
        %1344 = vmatpush2.bf16.xpose.msra.mxu0 0
        %1345 = vmatprep.subr.bf16.mxu0 0
        %1346 = vmatpush2.bf16.xpose.msra.mxu0 0
        %1347 = vmatprep.subr.bf16.mxu0 0
        %1348 = vmatpush2.bf16.xpose.msra.mxu0 0
        %1349 = vmatprep.mubr.bf16.mxu0 0
        %1350 = vmatmul.mubr.bf16.gmra.mxu0 %v1312
        %v1351 = vpop.f32.mrf.mxu0
        %v1352 = vadd.f32 0.0, %v1351
        %v1353 = vpop.f32.mrf.mxu0
        %v1354 = vpop.f32.mrf.mxu0
        %v1355 = vadd.f32 0.0, %v1354
        %v1356 = vpop.f32.mrf.mxu0
        %1357 = vdwg.mxu0
        %v1358 = vsel %vm993, %v1352, -inf
        %1359 = vmax.xlane.f32.xlu0 %v1358
        %v1360 = vpop.xlane.xlu0 %1359
        %v1361 = vsel %vm993, %v1355, -inf
        %1362 = vmax.xlane.f32.xlu0 %v1361
        %v1363 = vpop.xlane.xlu0 %1362
        %v1364 = vsub.f32 %v1352, %v1360
        %v1365 = vsub.f32 %v1355, %v1363
        %v1366 = vmul.f32 %v1364, 1.442695
        %v1367 = vpow.pop %v1366
        %v1368 = vmul.f32 %v1365, 1.442695
        %v1369 = vpow.pop %v1368
        %v1370 = vsel %vm993, %v1367, 0.0
        %1371 = vadd.xlane.f32.xlu0 %v1370
        %v1372 = vpop.xlane.xlu0 %1371
        %v1373 = vsel %vm993, %v1369, 0.0
        %1374 = vadd.xlane.f32.xlu0 %v1373
        %v1375 = vpop.xlane.xlu0 %1374
        %v1376 = vrcp.pop %v1372
        %v1377 = vrcp.pop %v1375
        %v1378 = vmul.f32 %v1367, %v1376
        %v1379 = vmul.f32 %v1369, %v1377
        %v1380 = vpack.c.bf16 %v1379, %v1378
        %1381 = vrot.lane.b32.xlu0 %v944, 64
        %v1382 = vpop.permute.xlu0 %1381
        %v1385 = vsel %vm993, %v1380, 0
        %1387 = vmatprep.subr.bf16.mxu0 0
        %1388 = vmatpush1.bf16.msra.mxu0 0
        %1389 = vmatprep.subr.bf16.mxu0 0
        %1390 = vmatpush1.bf16.msra.mxu0 0
        %1391 = vmatprep.subr.bf16.mxu0 0
        %1392 = vmatpush1.bf16.msra.mxu0 0
        %1393 = vmatprep.subr.bf16.mxu0 0
        %1394 = vmatpush1.bf16.msra.mxu0 0
        %1395 = vmatprep.subr.bf16.mxu0 0
        %1396 = vmatpush1.bf16.msra.mxu0 0
        %1397 = vmatprep.subr.bf16.mxu0 0
        %1398 = vmatpush1.bf16.msra.mxu0 0
        %1399 = vmatprep.subr.bf16.mxu0 0
        %1400 = vmatpush1.bf16.msra.mxu0 0
        %1401 = vmatprep.subr.bf16.mxu0 0
        %1402 = vmatpush1.bf16.msra.mxu0 %v1382
        %1403 = vmatprep.subr.bf16.mxu0 0
        %1404 = vmatpush2.bf16.msra.mxu0 0
        %1405 = vmatprep.subr.bf16.mxu0 0
        %1406 = vmatpush2.bf16.msra.mxu0 0
        %1407 = vmatprep.subr.bf16.mxu0 0
        %1408 = vmatpush2.bf16.msra.mxu0 0
        %1409 = vmatprep.subr.bf16.mxu0 0
        %1410 = vmatpush2.bf16.msra.mxu0 0
        %1411 = vmatprep.subr.bf16.mxu0 0
        %1412 = vmatpush2.bf16.msra.mxu0 0
        %1413 = vmatprep.subr.bf16.mxu0 0
        %1414 = vmatpush2.bf16.msra.mxu0 0
        %1415 = vmatprep.subr.bf16.mxu0 0
        %1416 = vmatpush2.bf16.msra.mxu0 0
        %1417 = vmatprep.subr.bf16.mxu0 0
        %1418 = vmatpush2.bf16.msra.mxu0 0
        %1419 = vmatprep.mubr.bf16.mxu0 0
        %1420 = vmatmul.mubr.bf16.gmra.mxu0 %v1385
        %v1421 = vpop.f32.mrf.mxu0
        %v1422 = vadd.f32 0.0, %v1421
        %v1423 = vpop.f32.mrf.mxu0
        %v1424 = vpop.f32.mrf.mxu0
        %v1425 = vadd.f32 0.0, %v1424
        %v1426 = vpop.f32.mrf.mxu0
        %1427 = vdwg.mxu0
        %v1428 = vpack.c.bf16 %v1425, %v1422
        %v1429 = vld [vmem:[#allocation10 + $0x20] sm:$0xf]
        %v1430 = vld [vmem:[#allocation10 + $0x24] sm:$0xf]
        %v1431 = vld [vmem:[#allocation10 + $0x28] sm:$0xf]
        %v1432 = vld [vmem:[#allocation10 + $0x2c] sm:$0xf]
        %v1437 = vunpack.c.l.b16 %v1429
        %v1438 = vunpack.c.l.b16 %v1430
        %v1439 = vunpack.c.l.b16 %v1431
        %v1440 = vunpack.c.l.b16 %v1432
        %v1441 = vpack.c.b16 %v1438, %v1437
        %v1442 = vpack.c.b16 %v1440, %v1439
        %v1446 = vsel %vm945, %v1428, 0
        %1448 = vmatprep.subr.bf16.mxu0 0
        %1449 = vmatpush1.bf16.msra.mxu0 0
        %1450 = vmatprep.subr.bf16.mxu0 0
        %1451 = vmatpush1.bf16.msra.mxu0 0
        %1452 = vmatprep.subr.bf16.mxu0 0
        %1453 = vmatpush1.bf16.msra.mxu0 0
        %1454 = vmatprep.subr.bf16.mxu0 0
        %1455 = vmatpush1.bf16.msra.mxu0 0
        %1456 = vmatprep.subr.bf16.mxu0 0
        %1457 = vmatpush1.bf16.msra.mxu0 0
        %1458 = vmatprep.subr.bf16.mxu0 0
        %1459 = vmatpush1.bf16.msra.mxu0 0
        %1460 = vmatprep.subr.bf16.mxu0 0
        %1461 = vmatpush1.bf16.msra.mxu0 %v1442
        %1462 = vmatprep.subr.bf16.mxu0 0
        %1463 = vmatpush1.bf16.msra.mxu0 %v1441
        %1464 = vmatprep.subr.bf16.mxu0 0
        %1465 = vmatpush2.bf16.msra.mxu0 0
        %1466 = vmatprep.subr.bf16.mxu0 0
        %1467 = vmatpush2.bf16.msra.mxu0 0
        %1468 = vmatprep.subr.bf16.mxu0 0
        %1469 = vmatpush2.bf16.msra.mxu0 0
        %1470 = vmatprep.subr.bf16.mxu0 0
        %1471 = vmatpush2.bf16.msra.mxu0 0
        %1472 = vmatprep.subr.bf16.mxu0 0
        %1473 = vmatpush2.bf16.msra.mxu0 0
        %1474 = vmatprep.subr.bf16.mxu0 0
        %1475 = vmatpush2.bf16.msra.mxu0 0
        %1476 = vmatprep.subr.bf16.mxu0 0
        %1477 = vmatpush2.bf16.msra.mxu0 0
        %1478 = vmatprep.subr.bf16.mxu0 0
        %1479 = vmatpush2.bf16.msra.mxu0 0
        %1480 = vmatprep.mubr.bf16.mxu0 0
        %1481 = vmatmul.mubr.bf16.gmra.mxu0 %v1446
        %v1482 = vpop.f32.mrf.mxu0
        %v1483 = vadd.f32 0.0, %v1482
        %v1484 = vpop.f32.mrf.mxu0
        %v1485 = vpop.f32.mrf.mxu0
        %v1486 = vadd.f32 0.0, %v1485
        %v1487 = vpop.f32.mrf.mxu0
        %1488 = vdwg.mxu0
        %v1489 = vadd.f32 %v1301, %v1483
        %v1490 = vadd.f32 %v1304, %v1486
        %1491 = vrot.lane.b32.xlu0 %v942, 32
        %v1492 = vpop.permute.xlu0 %1491
        %1493 = vrot.lane.b32.xlu0 %v943, 32
        %v1494 = vpop.permute.xlu0 %1493
        %v1496 = vsel %vm945, %v1492, 0
        %v1499 = vsel %vm945, %v1494, 0
        %1501 = vmatprep.subr.bf16.mxu0 0
        %1502 = vmatpush1.bf16.xpose.msra.mxu0 0
        %1503 = vmatprep.subr.bf16.mxu0 0
        %1504 = vmatpush1.bf16.xpose.msra.mxu0 0
        %1505 = vmatprep.subr.bf16.mxu0 0
        %1506 = vmatpush1.bf16.xpose.msra.mxu0 0
        %1507 = vmatprep.subr.bf16.mxu0 0
        %1508 = vmatpush1.bf16.xpose.msra.mxu0 0
        %1509 = vmatprep.subr.bf16.mxu0 0
        %1510 = vmatpush1.bf16.xpose.msra.mxu0 0
        %1511 = vmatprep.subr.bf16.mxu0 0
        %1512 = vmatpush1.bf16.xpose.msra.mxu0 0
        %1513 = vmatprep.subr.bf16.mxu0 0
        %1514 = vmatpush1.bf16.xpose.msra.mxu0 0
        %1515 = vmatprep.subr.bf16.mxu0 0
        %1516 = vmatpush1.bf16.xpose.msra.mxu0 %v1499
        %1517 = vmatprep.subr.bf16.mxu0 0
        %1518 = vmatpush2.bf16.xpose.msra.mxu0 0
        %1519 = vmatprep.subr.bf16.mxu0 0
        %1520 = vmatpush2.bf16.xpose.msra.mxu0 0
        %1521 = vmatprep.subr.bf16.mxu0 0
        %1522 = vmatpush2.bf16.xpose.msra.mxu0 0
        %1523 = vmatprep.subr.bf16.mxu0 0
        %1524 = vmatpush2.bf16.xpose.msra.mxu0 0
        %1525 = vmatprep.subr.bf16.mxu0 0
        %1526 = vmatpush2.bf16.xpose.msra.mxu0 0
        %1527 = vmatprep.subr.bf16.mxu0 0
        %1528 = vmatpush2.bf16.xpose.msra.mxu0 0
        %1529 = vmatprep.subr.bf16.mxu0 0
        %1530 = vmatpush2.bf16.xpose.msra.mxu0 0
        %1531 = vmatprep.subr.bf16.mxu0 0
        %1532 = vmatpush2.bf16.xpose.msra.mxu0 0
        %1533 = vmatprep.mubr.bf16.mxu0 0
        %1534 = vmatmul.mubr.bf16.gmra.mxu0 %v1496
        %v1535 = vpop.f32.mrf.mxu0
        %v1536 = vadd.f32 0.0, %v1535
        %v1537 = vpop.f32.mrf.mxu0
        %v1538 = vpop.f32.mrf.mxu0
        %v1539 = vadd.f32 0.0, %v1538
        %v1540 = vpop.f32.mrf.mxu0
        %1541 = vdwg.mxu0
        %v1542 = vsel %vm993, %v1536, -inf
        %1543 = vmax.xlane.f32.xlu0 %v1542
        %v1544 = vpop.xlane.xlu0 %1543
        %v1545 = vsel %vm993, %v1539, -inf
        %1546 = vmax.xlane.f32.xlu0 %v1545
        %v1547 = vpop.xlane.xlu0 %1546
        %v1548 = vsub.f32 %v1536, %v1544
        %v1549 = vsub.f32 %v1539, %v1547
        %v1550 = vmul.f32 %v1548, 1.442695
        %v1551 = vpow.pop %v1550
        %v1552 = vmul.f32 %v1549, 1.442695
        %v1553 = vpow.pop %v1552
        %v1554 = vsel %vm993, %v1551, 0.0
        %1555 = vadd.xlane.f32.xlu0 %v1554
        %v1556 = vpop.xlane.xlu0 %1555
        %v1557 = vsel %vm993, %v1553, 0.0
        %1558 = vadd.xlane.f32.xlu0 %v1557
        %v1559 = vpop.xlane.xlu0 %1558
        %v1560 = vrcp.pop %v1556
        %v1561 = vrcp.pop %v1559
        %v1562 = vmul.f32 %v1551, %v1560
        %v1563 = vmul.f32 %v1553, %v1561
        %v1564 = vpack.c.bf16 %v1563, %v1562
        %1565 = vrot.lane.b32.xlu0 %v944, 32
        %v1566 = vpop.permute.xlu0 %1565
        %v1569 = vsel %vm993, %v1564, 0
        %1571 = vmatprep.subr.bf16.mxu0 0
        %1572 = vmatpush1.bf16.msra.mxu0 0
        %1573 = vmatprep.subr.bf16.mxu0 0
        %1574 = vmatpush1.bf16.msra.mxu0 0
        %1575 = vmatprep.subr.bf16.mxu0 0
        %1576 = vmatpush1.bf16.msra.mxu0 0
        %1577 = vmatprep.subr.bf16.mxu0 0
        %1578 = vmatpush1.bf16.msra.mxu0 0
        %1579 = vmatprep.subr.bf16.mxu0 0
        %1580 = vmatpush1.bf16.msra.mxu0 0
        %1581 = vmatprep.subr.bf16.mxu0 0
        %1582 = vmatpush1.bf16.msra.mxu0 0
        %1583 = vmatprep.subr.bf16.mxu0 0
        %1584 = vmatpush1.bf16.msra.mxu0 0
        %1585 = vmatprep.subr.bf16.mxu0 0
        %1586 = vmatpush1.bf16.msra.mxu0 %v1566
        %1587 = vmatprep.subr.bf16.mxu0 0
        %1588 = vmatpush2.bf16.msra.mxu0 0
        %1589 = vmatprep.subr.bf16.mxu0 0
        %1590 = vmatpush2.bf16.msra.mxu0 0
        %1591 = vmatprep.subr.bf16.mxu0 0
        %1592 = vmatpush2.bf16.msra.mxu0 0
        %1593 = vmatprep.subr.bf16.mxu0 0
        %1594 = vmatpush2.bf16.msra.mxu0 0
        %1595 = vmatprep.subr.bf16.mxu0 0
        %1596 = vmatpush2.bf16.msra.mxu0 0
        %1597 = vmatprep.subr.bf16.mxu0 0
        %1598 = vmatpush2.bf16.msra.mxu0 0
        %1599 = vmatprep.subr.bf16.mxu0 0
        %1600 = vmatpush2.bf16.msra.mxu0 0
        %1601 = vmatprep.subr.bf16.mxu0 0
        %1602 = vmatpush2.bf16.msra.mxu0 0
        %1603 = vmatprep.mubr.bf16.mxu0 0
        %1604 = vmatmul.mubr.bf16.gmra.mxu0 %v1569
        %v1605 = vpop.f32.mrf.mxu0
        %v1606 = vadd.f32 0.0, %v1605
        %v1607 = vpop.f32.mrf.mxu0
        %v1608 = vpop.f32.mrf.mxu0
        %v1609 = vadd.f32 0.0, %v1608
        %v1610 = vpop.f32.mrf.mxu0
        %1611 = vdwg.mxu0
        %v1612 = vpack.c.bf16 %v1609, %v1606
        %v1613 = vld [vmem:[#allocation10 + $0x30] sm:$0xf]
        %v1614 = vld [vmem:[#allocation10 + $0x34] sm:$0xf]
        %v1615 = vld [vmem:[#allocation10 + $0x38] sm:$0xf]
        %v1616 = vld [vmem:[#allocation10 + $0x3c] sm:$0xf]
        %v1621 = vunpack.c.l.b16 %v1613
        %v1622 = vunpack.c.l.b16 %v1614
        %v1623 = vunpack.c.l.b16 %v1615
        %v1624 = vunpack.c.l.b16 %v1616
        %v1625 = vpack.c.b16 %v1622, %v1621
        %v1626 = vpack.c.b16 %v1624, %v1623
        %v1630 = vsel %vm945, %v1612, 0
        %1632 = vmatprep.subr.bf16.mxu0 0
        %1633 = vmatpush1.bf16.msra.mxu0 0
        %1634 = vmatprep.subr.bf16.mxu0 0
        %1635 = vmatpush1.bf16.msra.mxu0 0
        %1636 = vmatprep.subr.bf16.mxu0 0
        %1637 = vmatpush1.bf16.msra.mxu0 0
        %1638 = vmatprep.subr.bf16.mxu0 0
        %1639 = vmatpush1.bf16.msra.mxu0 0
        %1640 = vmatprep.subr.bf16.mxu0 0
        %1641 = vmatpush1.bf16.msra.mxu0 0
        %1642 = vmatprep.subr.bf16.mxu0 0
        %1643 = vmatpush1.bf16.msra.mxu0 0
        %1644 = vmatprep.subr.bf16.mxu0 0
        %1645 = vmatpush1.bf16.msra.mxu0 %v1626
        %1646 = vmatprep.subr.bf16.mxu0 0
        %1647 = vmatpush1.bf16.msra.mxu0 %v1625
        %1648 = vmatprep.subr.bf16.mxu0 0
        %1649 = vmatpush2.bf16.msra.mxu0 0
        %1650 = vmatprep.subr.bf16.mxu0 0
        %1651 = vmatpush2.bf16.msra.mxu0 0
        %1652 = vmatprep.subr.bf16.mxu0 0
        %1653 = vmatpush2.bf16.msra.mxu0 0
        %1654 = vmatprep.subr.bf16.mxu0 0
        %1655 = vmatpush2.bf16.msra.mxu0 0
        %1656 = vmatprep.subr.bf16.mxu0 0
        %1657 = vmatpush2.bf16.msra.mxu0 0
        %1658 = vmatprep.subr.bf16.mxu0 0
        %1659 = vmatpush2.bf16.msra.mxu0 0
        %1660 = vmatprep.subr.bf16.mxu0 0
        %1661 = vmatpush2.bf16.msra.mxu0 0
        %1662 = vmatprep.subr.bf16.mxu0 0
        %1663 = vmatpush2.bf16.msra.mxu0 0
        %1664 = vmatprep.mubr.bf16.mxu0 0
        %1665 = vmatmul.mubr.bf16.gmra.mxu0 %v1630
        %v1666 = vpop.f32.mrf.mxu0
        %v1667 = vadd.f32 0.0, %v1666
        %v1668 = vpop.f32.mrf.mxu0
        %v1669 = vpop.f32.mrf.mxu0
        %v1670 = vadd.f32 0.0, %v1669
        %v1671 = vpop.f32.mrf.mxu0
        %1672 = vdwg.mxu0
        %v1673 = vadd.f32 %v1489, %v1667
        %v1674 = vadd.f32 %v1490, %v1670
        %v1675 = vld [vmem:[%s7] sm:$0x1]
        %v1677 = vlaneseq
        %v1678 = vshrl.u32 %v1677, 7
        %v1679 = vsub.s32 0, %v1678
        %v1680 = vrot.slane %v1675, %v1679
        %v1682 = vadd.f32 %v1673, %v1680
        %v1683 = vadd.f32 %v1674, %v1680
        %v1684 = vadd.f32 %v673, %v1682
        %v1685 = vadd.f32 %v674, %v1683
        %v1686 = vld [vmem:[%s12] sm:$0x1]
        %v1687 = vld [vmem:[%s13] sm:$0x1]
        %1688 = vadd.xlane.f32.xlu0 %v1684
        %v1689 = vpop.xlane.xlu0 %1688
        %1690 = vadd.xlane.f32.xlu0 %v1685
        %v1691 = vpop.xlane.xlu0 %1690
        %v1692 = vrcp.pop 128.0
        %v1693 = vmul.f32 %v1689, %v1692
        %v1694 = vmul.f32 %v1691, %v1692
        %v1695 = vsub.f32 %v1684, %v1693
        %v1696 = vsub.f32 %v1685, %v1694
        %v1697 = vmul.f32 %v1695, %v1695
        %v1698 = vmul.f32 %v1696, %v1696
        %1699 = vadd.xlane.f32.xlu0 %v1697
        %v1700 = vpop.xlane.xlu0 %1699
        %1701 = vadd.xlane.f32.xlu0 %v1698
        %v1702 = vpop.xlane.xlu0 %1701
        %v1703 = vmul.f32 %v1700, %v1692
        %v1704 = vmul.f32 %v1702, %v1692
        %v1705 = vadd.f32 %v1703, 1e-05
        %v1706 = vadd.f32 %v1704, 1e-05
        %v1707 = vrsqrt.pop %v1705
        %v1708 = vrsqrt.pop %v1706
        %v1709 = vmul.f32 %v1695, %v1707
        %v1710 = vmul.f32 %v1696, %v1708
        %v1712 = vlaneseq
        %v1713 = vshrl.u32 %v1712, 7
        %v1714 = vsub.s32 0, %v1713
        %v1715 = vrot.slane %v1686, %v1714
        %v1717 = vmul.f32 %v1709, %v1715
        %v1718 = vmul.f32 %v1710, %v1715
        %v1720 = vlaneseq
        %v1721 = vshrl.u32 %v1720, 7
        %v1722 = vsub.s32 0, %v1721
        %v1723 = vrot.slane %v1687, %v1722
        %v1725 = vadd.f32 %v1717, %v1723
        %v1726 = vadd.f32 %v1718, %v1723
        %v1727 = vpack.c.bf16 %v1726, %v1725
        %v1728 = vld [vmem:[#allocation11] sm:$0xff]
        %v1729 = vld [vmem:[#allocation11 + $0x8] sm:$0xff]
        %v1730 = vld [vmem:[#allocation11 + $0x10] sm:$0xff]
        %v1731 = vld [vmem:[#allocation11 + $0x18] sm:$0xff]
        %v1732 = vld [vmem:[#allocation11 + $0x20] sm:$0xff]
        %v1733 = vld [vmem:[#allocation11 + $0x28] sm:$0xff]
        %v1734 = vld [vmem:[#allocation11 + $0x30] sm:$0xff]
        %v1735 = vld [vmem:[#allocation11 + $0x38] sm:$0xff]
        %v1736 = vld [vmem:[#allocation11 + $0x40] sm:$0xff]
        %v1737 = vld [vmem:[#allocation11 + $0x48] sm:$0xff]
        %v1738 = vld [vmem:[#allocation11 + $0x50] sm:$0xff]
        %v1739 = vld [vmem:[#allocation11 + $0x58] sm:$0xff]
        %v1740 = vld [vmem:[#allocation11 + $0x60] sm:$0xff]
        %v1741 = vld [vmem:[#allocation11 + $0x68] sm:$0xff]
        %v1742 = vld [vmem:[#allocation11 + $0x70] sm:$0xff]
        %v1743 = vld [vmem:[#allocation11 + $0x78] sm:$0xff]
        %v1744 = vld [vmem:[%s9] sm:$0x3]
        %v1746 = vlaneseq
        %v1747 = vshrl.u32 %v1746, 7
        %v1748 = vsub.s32 0, %v1747
        %v1749 = vrot.slane %v1744, %v1748
        %v1750 = vlaneseq
        %v1751 = vshrl.u32 %v1750, 7
        %v1752 = vsub.s32 1, %v1751
        %v1753 = vrot.slane %v1744, %v1752
        %v1772 = vunpack.c.l.b16 %v1728
        %v1773 = vunpack.c.h.b16 %v1728
        %v1774 = vunpack.c.l.b16 %v1729
        %v1775 = vunpack.c.h.b16 %v1729
        %v1776 = vunpack.c.l.b16 %v1730
        %v1777 = vunpack.c.h.b16 %v1730
        %v1778 = vunpack.c.l.b16 %v1731
        %v1779 = vunpack.c.h.b16 %v1731
        %v1780 = vunpack.c.l.b16 %v1732
        %v1781 = vunpack.c.h.b16 %v1732
        %v1782 = vunpack.c.l.b16 %v1733
        %v1783 = vunpack.c.h.b16 %v1733
        %v1784 = vunpack.c.l.b16 %v1734
        %v1785 = vunpack.c.h.b16 %v1734
        %v1786 = vunpack.c.l.b16 %v1735
        %v1787 = vunpack.c.h.b16 %v1735
        %v1788 = vunpack.c.l.b16 %v1736
        %v1789 = vunpack.c.h.b16 %v1736
        %v1790 = vunpack.c.l.b16 %v1737
        %v1791 = vunpack.c.h.b16 %v1737
        %v1792 = vunpack.c.l.b16 %v1738
        %v1793 = vunpack.c.h.b16 %v1738
        %v1794 = vunpack.c.l.b16 %v1739
        %v1795 = vunpack.c.h.b16 %v1739
        %v1796 = vunpack.c.l.b16 %v1740
        %v1797 = vunpack.c.h.b16 %v1740
        %v1798 = vunpack.c.l.b16 %v1741
        %v1799 = vunpack.c.h.b16 %v1741
        %v1800 = vunpack.c.l.b16 %v1742
        %v1801 = vunpack.c.h.b16 %v1742
        %v1802 = vunpack.c.l.b16 %v1743
        %v1803 = vunpack.c.h.b16 %v1743
        %v1804 = vpack.c.b16 %v1774, %v1772
        %v1805 = vpack.c.b16 %v1775, %v1773
        %v1806 = vpack.c.b16 %v1778, %v1776
        %v1807 = vpack.c.b16 %v1779, %v1777
        %v1808 = vpack.c.b16 %v1782, %v1780
        %v1809 = vpack.c.b16 %v1783, %v1781
        %v1810 = vpack.c.b16 %v1786, %v1784
        %v1811 = vpack.c.b16 %v1787, %v1785
        %v1812 = vpack.c.b16 %v1790, %v1788
        %v1813 = vpack.c.b16 %v1791, %v1789
        %v1814 = vpack.c.b16 %v1794, %v1792
        %v1815 = vpack.c.b16 %v1795, %v1793
        %v1816 = vpack.c.b16 %v1798, %v1796
        %v1817 = vpack.c.b16 %v1799, %v1797
        %v1818 = vpack.c.b16 %v1802, %v1800
        %v1819 = vpack.c.b16 %v1803, %v1801
        %1836 = vmatprep.subr.bf16.mxu0 %v1819
        %1837 = vmatpush1.bf16.msra.mxu0 %v1818
        %1838 = vmatprep.subr.bf16.mxu0 %v1817
        %1839 = vmatpush1.bf16.msra.mxu0 %v1816
        %1840 = vmatprep.subr.bf16.mxu0 %v1815
        %1841 = vmatpush1.bf16.msra.mxu0 %v1814
        %1842 = vmatprep.subr.bf16.mxu0 %v1813
        %1843 = vmatpush1.bf16.msra.mxu0 %v1812
        %1844 = vmatprep.subr.bf16.mxu0 %v1811
        %1845 = vmatpush1.bf16.msra.mxu0 %v1810
        %1846 = vmatprep.subr.bf16.mxu0 %v1809
        %1847 = vmatpush1.bf16.msra.mxu0 %v1808
        %1848 = vmatprep.subr.bf16.mxu0 %v1807
        %1849 = vmatpush1.bf16.msra.mxu0 %v1806
        %1850 = vmatprep.subr.bf16.mxu0 %v1805
        %1851 = vmatpush1.bf16.msra.mxu0 %v1804
        %1852 = vmatprep.subr.bf16.mxu0 0
        %1853 = vmatpush2.bf16.msra.mxu0 0
        %1854 = vmatprep.subr.bf16.mxu0 0
        %1855 = vmatpush2.bf16.msra.mxu0 0
        %1856 = vmatprep.subr.bf16.mxu0 0
        %1857 = vmatpush2.bf16.msra.mxu0 0
        %1858 = vmatprep.subr.bf16.mxu0 0
        %1859 = vmatpush2.bf16.msra.mxu0 0
        %1860 = vmatprep.subr.bf16.mxu0 0
        %1861 = vmatpush2.bf16.msra.mxu0 0
        %1862 = vmatprep.subr.bf16.mxu0 0
        %1863 = vmatpush2.bf16.msra.mxu0 0
        %1864 = vmatprep.subr.bf16.mxu0 0
        %1865 = vmatpush2.bf16.msra.mxu0 0
        %1866 = vmatprep.subr.bf16.mxu0 0
        %1867 = vmatpush2.bf16.msra.mxu0 0
        %1868 = vmatprep.mubr.bf16.mxu0 0
        %1869 = vmatmul.mubr.bf16.gmra.mxu0 %v1727
        %v1870 = vpop.f32.mrf.mxu0
        %v1871 = vadd.f32 %v1749, %v1870
        %v1872 = vpop.f32.mrf.mxu0
        %v1873 = vadd.f32 %v1753, %v1872
        %v1874 = vpop.f32.mrf.mxu0
        %v1875 = vadd.f32 %v1749, %v1874
        %v1876 = vpop.f32.mrf.mxu0
        %v1877 = vadd.f32 %v1753, %v1876
        %1878 = vdwg.mxu0
        %v1879 = vmax.f32 %v1871, 0.0
        %v1880 = vmax.f32 %v1873, 0.0
        %v1881 = vmax.f32 %v1875, 0.0
        %v1882 = vmax.f32 %v1877, 0.0
        %v1883 = vpack.c.bf16 %v1881, %v1879
        %v1884 = vpack.c.bf16 %v1882, %v1880
        %v1885 = vld [vmem:[#allocation13] sm:$0xf]
        %v1886 = vld [vmem:[#allocation13 + $0x4] sm:$0xf]
        %v1887 = vld [vmem:[#allocation13 + $0x8] sm:$0xf]
        %v1888 = vld [vmem:[#allocation13 + $0xc] sm:$0xf]
        %v1889 = vld [vmem:[#allocation13 + $0x10] sm:$0xf]
        %v1890 = vld [vmem:[#allocation13 + $0x14] sm:$0xf]
        %v1891 = vld [vmem:[#allocation13 + $0x18] sm:$0xf]
        %v1892 = vld [vmem:[#allocation13 + $0x1c] sm:$0xf]
        %v1893 = vld [vmem:[#allocation13 + $0x20] sm:$0xf]
        %v1894 = vld [vmem:[#allocation13 + $0x24] sm:$0xf]
        %v1895 = vld [vmem:[#allocation13 + $0x28] sm:$0xf]
        %v1896 = vld [vmem:[#allocation13 + $0x2c] sm:$0xf]
        %v1897 = vld [vmem:[#allocation13 + $0x30] sm:$0xf]
        %v1898 = vld [vmem:[#allocation13 + $0x34] sm:$0xf]
        %v1899 = vld [vmem:[#allocation13 + $0x38] sm:$0xf]
        %v1900 = vld [vmem:[#allocation13 + $0x3c] sm:$0xf]
        %v1901 = vld [vmem:[#allocation13 + $0x40] sm:$0xf]
        %v1902 = vld [vmem:[#allocation13 + $0x44] sm:$0xf]
        %v1903 = vld [vmem:[#allocation13 + $0x48] sm:$0xf]
        %v1904 = vld [vmem:[#allocation13 + $0x4c] sm:$0xf]
        %v1905 = vld [vmem:[#allocation13 + $0x50] sm:$0xf]
        %v1906 = vld [vmem:[#allocation13 + $0x54] sm:$0xf]
        %v1907 = vld [vmem:[#allocation13 + $0x58] sm:$0xf]
        %v1908 = vld [vmem:[#allocation13 + $0x5c] sm:$0xf]
        %v1909 = vld [vmem:[#allocation13 + $0x60] sm:$0xf]
        %v1910 = vld [vmem:[#allocation13 + $0x64] sm:$0xf]
        %v1911 = vld [vmem:[#allocation13 + $0x68] sm:$0xf]
        %v1912 = vld [vmem:[#allocation13 + $0x6c] sm:$0xf]
        %v1913 = vld [vmem:[#allocation13 + $0x70] sm:$0xf]
        %v1914 = vld [vmem:[#allocation13 + $0x74] sm:$0xf]
        %v1915 = vld [vmem:[#allocation13 + $0x78] sm:$0xf]
        %v1916 = vld [vmem:[#allocation13 + $0x7c] sm:$0xf]
        %v1917 = vld [vmem:[%s11] sm:$0x1]
        %v1919 = vlaneseq
        %v1920 = vshrl.u32 %v1919, 7
        %v1921 = vsub.s32 0, %v1920
        %v1922 = vrot.slane %v1917, %v1921
        %v1956 = vunpack.c.l.b16 %v1885
        %v1957 = vunpack.c.l.b16 %v1886
        %v1958 = vunpack.c.l.b16 %v1887
        %v1959 = vunpack.c.l.b16 %v1888
        %v1960 = vunpack.c.l.b16 %v1889
        %v1961 = vunpack.c.l.b16 %v1890
        %v1962 = vunpack.c.l.b16 %v1891
        %v1963 = vunpack.c.l.b16 %v1892
        %v1964 = vunpack.c.l.b16 %v1893
        %v1965 = vunpack.c.l.b16 %v1894
        %v1966 = vunpack.c.l.b16 %v1895
        %v1967 = vunpack.c.l.b16 %v1896
        %v1968 = vunpack.c.l.b16 %v1897
        %v1969 = vunpack.c.l.b16 %v1898
        %v1970 = vunpack.c.l.b16 %v1899
        %v1971 = vunpack.c.l.b16 %v1900
        %v1972 = vunpack.c.l.b16 %v1901
        %v1973 = vunpack.c.l.b16 %v1902
        %v1974 = vunpack.c.l.b16 %v1903
        %v1975 = vunpack.c.l.b16 %v1904
        %v1976 = vunpack.c.l.b16 %v1905
        %v1977 = vunpack.c.l.b16 %v1906
        %v1978 = vunpack.c.l.b16 %v1907
        %v1979 = vunpack.c.l.b16 %v1908
        %v1980 = vunpack.c.l.b16 %v1909
        %v1981 = vunpack.c.l.b16 %v1910
        %v1982 = vunpack.c.l.b16 %v1911
        %v1983 = vunpack.c.l.b16 %v1912
        %v1984 = vunpack.c.l.b16 %v1913
        %v1985 = vunpack.c.l.b16 %v1914
        %v1986 = vunpack.c.l.b16 %v1915
        %v1987 = vunpack.c.l.b16 %v1916
        %v1988 = vpack.c.b16 %v1957, %v1956
        %v1989 = vpack.c.b16 %v1959, %v1958
        %v1990 = vpack.c.b16 %v1961, %v1960
        %v1991 = vpack.c.b16 %v1963, %v1962
        %v1992 = vpack.c.b16 %v1965, %v1964
        %v1993 = vpack.c.b16 %v1967, %v1966
        %v1994 = vpack.c.b16 %v1969, %v1968
        %v1995 = vpack.c.b16 %v1971, %v1970
        %v1996 = vpack.c.b16 %v1973, %v1972
        %v1997 = vpack.c.b16 %v1975, %v1974
        %v1998 = vpack.c.b16 %v1977, %v1976
        %v1999 = vpack.c.b16 %v1979, %v1978
        %v2000 = vpack.c.b16 %v1981, %v1980
        %v2001 = vpack.c.b16 %v1983, %v1982
        %v2002 = vpack.c.b16 %v1985, %v1984
        %v2003 = vpack.c.b16 %v1987, %v1986
        %2020 = vmatprep.subr.bf16.mxu0 0
        %2021 = vmatpush1.bf16.msra.mxu0 %v1995
        %2022 = vmatprep.subr.bf16.mxu0 0
        %2023 = vmatpush1.bf16.msra.mxu0 %v1994
        %2024 = vmatprep.subr.bf16.mxu0 0
        %2025 = vmatpush1.bf16.msra.mxu0 %v1993
        %2026 = vmatprep.subr.bf16.mxu0 0
        %2027 = vmatpush1.bf16.msra.mxu0 %v1992
        %2028 = vmatprep.subr.bf16.mxu0 0
        %2029 = vmatpush1.bf16.msra.mxu0 %v1991
        %2030 = vmatprep.subr.bf16.mxu0 0
        %2031 = vmatpush1.bf16.msra.mxu0 %v1990
        %2032 = vmatprep.subr.bf16.mxu0 0
        %2033 = vmatpush1.bf16.msra.mxu0 %v1989
        %2034 = vmatprep.subr.bf16.mxu0 0
        %2035 = vmatpush1.bf16.msra.mxu0 %v1988
        %2036 = vmatprep.subr.bf16.mxu0 0
        %2037 = vmatpush2.bf16.msra.mxu0 %v2003
        %2038 = vmatprep.subr.bf16.mxu0 0
        %2039 = vmatpush2.bf16.msra.mxu0 %v2002
        %2040 = vmatprep.subr.bf16.mxu0 0
        %2041 = vmatpush2.bf16.msra.mxu0 %v2001
        %2042 = vmatprep.subr.bf16.mxu0 0
        %2043 = vmatpush2.bf16.msra.mxu0 %v2000
        %2044 = vmatprep.subr.bf16.mxu0 0
        %2045 = vmatpush2.bf16.msra.mxu0 %v1999
        %2046 = vmatprep.subr.bf16.mxu0 0
        %2047 = vmatpush2.bf16.msra.mxu0 %v1998
        %2048 = vmatprep.subr.bf16.mxu0 0
        %2049 = vmatpush2.bf16.msra.mxu0 %v1997
        %2050 = vmatprep.subr.bf16.mxu0 0
        %2051 = vmatpush2.bf16.msra.mxu0 %v1996
        %2052 = vmatprep.mubr.bf16.mxu0 %v1884
        %2053 = vmatmul.mubr.bf16.gmra.mxu0 %v1883
        %v2054 = vpop.f32.mrf.mxu0
        %v2055 = vadd.f32 %v1922, %v2054
        %v2056 = vpop.f32.mrf.mxu0
        %v2057 = vpop.f32.mrf.mxu0
        %v2058 = vadd.f32 %v1922, %v2057
        %v2059 = vpop.f32.mrf.mxu0
        %2060 = vdwg.mxu0
        %v2061 = vadd.f32 %v1725, %v2055
        %v2062 = vadd.f32 %v1726, %v2058
        %v2063 = vld [vmem:[%s14] sm:$0x1]
        %v2064 = vld [vmem:[%s15] sm:$0x1]
        %2065 = vadd.xlane.f32.xlu0 %v2061
        %v2066 = vpop.xlane.xlu0 %2065
        %2067 = vadd.xlane.f32.xlu0 %v2062
        %v2068 = vpop.xlane.xlu0 %2067
        %v2069 = vmul.f32 %v2066, %v1692
        %v2070 = vmul.f32 %v2068, %v1692
        %v2071 = vsub.f32 %v2061, %v2069
        %v2072 = vsub.f32 %v2062, %v2070
        %v2073 = vmul.f32 %v2071, %v2071
        %v2074 = vmul.f32 %v2072, %v2072
        %2075 = vadd.xlane.f32.xlu0 %v2073
        %v2076 = vpop.xlane.xlu0 %2075
        %2077 = vadd.xlane.f32.xlu0 %v2074
        %v2078 = vpop.xlane.xlu0 %2077
        %v2079 = vmul.f32 %v2076, %v1692
        %v2080 = vmul.f32 %v2078, %v1692
        %v2081 = vadd.f32 %v2079, 1e-05
        %v2082 = vadd.f32 %v2080, 1e-05
        %v2083 = vrsqrt.pop %v2081
        %v2084 = vrsqrt.pop %v2082
        %v2085 = vmul.f32 %v2071, %v2083
        %v2086 = vmul.f32 %v2072, %v2084
        %v2088 = vlaneseq
        %v2089 = vshrl.u32 %v2088, 7
        %v2090 = vsub.s32 0, %v2089
        %v2091 = vrot.slane %v2063, %v2090
        %v2093 = vmul.f32 %v2085, %v2091
        %v2094 = vmul.f32 %v2086, %v2091
        %v2096 = vlaneseq
        %v2097 = vshrl.u32 %v2096, 7
        %v2098 = vsub.s32 0, %v2097
        %v2099 = vrot.slane %v2064, %v2098
        %v2101 = vadd.f32 %v2093, %v2099
        %v2102 = vadd.f32 %v2094, %v2099
        %2103 = vst [vmem:[%s669] sm:$0xff] %v2101
        %2104 = vst [vmem:[%s669 + $0x8] sm:$0xff] %v2102
        %s2105 = sand.u32 %s408, 1
        %s2106 = scalar_lea.sflag [#allocation4], %s2105
        %s2107 = sand.u32 %s408, 1
        %s2108 = smul.addr %s2107, 16
        %s2109 = scalar_lea.vmem [#allocation14], %s2108
        // Predicated region
        $region113: #{tpu_custom_call.1} parent=83 // pred_check
          %p2110 = pneg %p418
        $region114: #{tpu_custom_call.1} parent=83 // pred_check_branch
          %2112 = sbr.rel (%p2110) target = $region116
        $region115: #{tpu_custom_call.1} parent=83 // pred_region
          %s2113 = smul.u32 2, %s43
          %s2115 = ssub.s32 256, 256
          %2116 = vsyncadd %s2106, %s2115
          %s2117 = smul.addr %s42, 2
          %s2118 = sadd.s32 %s2113, %s2117
          %s2119 = smul.addr %s2118, 128
          %s2120 = scalar_lea.hbm %s16, %s2119
          %s2121 = sshll.u32 %s2109, 4
          %s2122 = int_to_ptr.vmem [resolvable:$true] %s2121
          %2127 = dma.vmem_to_hbm [thread:$0]  %s2122, 256, %s2120, %s2106, 128, 128, 8
        $region116: #{tpu_custom_call.1} parent=83 // pred_fallthru
          _
      $region84: #{tpu_custom_call.1} parent=5 // pred_fallthru
        _
      %p2128 = scmp.le.s32.totalorder 2, %s33
      // Predicated region
      $region117: #{tpu_custom_call.1} parent=5 // pred_check
        %p2129 = pneg %p2128
      $region118: #{tpu_custom_call.1} parent=5 // pred_check_branch
        %2131 = sbr.rel (%p2129) target = $region120
      $region119: #{tpu_custom_call.1} parent=5 // pred_region
        %s2132 = ssub.s32 %s33, 2
        // Predicated region
        $region121: #{tpu_custom_call.1} parent=119 // pred_check
          %p2133 = pneg %p424
        $region122: #{tpu_custom_call.1} parent=119 // pred_check_branch
          %2135 = sbr.rel (%p2133) target = $region124
        $region123: #{tpu_custom_call.1} parent=119 // pred_region
          %s2136 = sand.u32 %s409, 1
          %s2137 = scalar_lea.sflag [#allocation4], %s2136
          %s2138 = sand.u32 %s409, 1
          %s2139 = smul.addr %s2138, 16
          %s2140 = scalar_lea.vmem [#allocation14], %s2139
          %2141 = dma.done %s2137, 256
        $region124: #{tpu_custom_call.1} parent=119 // pred_fallthru
          _
      $region120: #{tpu_custom_call.1} parent=5 // pred_fallthru
        _
    $region6: #{tpu_custom_call.1} parent=1 // loop_footer
      %s37 = sadd.s32 1, %s33
    $region7: #{tpu_custom_call.1} parent=1 // loop_footer_branch
      %32 = sbr.rel target = $region3
    $region8: #{tpu_custom_call.1} parent=1 // loop_exit
      _
    %2142 = vsyncpa [#allocation3], 1
    %s2143 = scalar_lea.sflag [#allocation3], 1
    %2144 = vsyncpa %s2143, 1
    %2145 = vsyncpa [#allocation6], 1
    %s2146 = scalar_lea.sflag [#allocation6], 1
    %2147 = vsyncpa %s2146, 1
    %2148 = vsyncpa [#allocation9], 1
    %2149 = vsyncpa [#allocation12], 1
    %2150 = vsyncpa [#allocation4], 1
    %s2151 = scalar_lea.sflag [#allocation4], 1
    %2152 = vsyncpa %s2151, 1

</llo_original>
